<compile_context>
chip_gen: v7x
topology: tpu7x:2x2x1
jax: 0.10.0
libtpu: 0.0.40
codegen_flags: <defaults>
</compile_context>

<pallas_src>
import math

import jax
import jax.numpy as jnp
from jax.experimental import pallas as pl
from jax.experimental.pallas import tpu as pltpu


def _layer_norm(h, gamma, beta, eps=1e-5):
    # gamma/beta: (1, D); biased variance to match PyTorch LayerNorm.  All f32.
    mean = jnp.mean(h, axis=-1, keepdims=True)
    var = jnp.mean(jnp.square(h - mean), axis=-1, keepdims=True)
    return (h - mean) * jax.lax.rsqrt(var + eps) * gamma + beta


def make_eeg2vec_kernel(num_convs, nhead, batch_block, seq_len):
    """Fused CNN encoder + one transformer encoder layer per grid step.

    grid = (batch_blocks, num_layers); the CNN stack runs only at layer-step 0 and the
    activation is carried across layer steps in `x_scr` (persistent VMEM scratch).
    """
    bb, t = batch_block, seq_len

    def kernel(*refs):
        x_ref = refs[0]
        conv_refs = refs[1:1 + 2 * num_convs]
        (wqkv_ref, wo_ref, w1_ref, w2_ref, b1_ref,
         vec_ref) = refs[1 + 2 * num_convs:7 + 2 * num_convs]
        o_ref = refs[7 + 2 * num_convs]
        x_scr = refs[8 + 2 * num_convs]            # (bb*t, D) f32 carry across layer steps

        l = pl.program_id(1)
        d = x_scr.shape[1]
        dh = d // nhead

        # -------- CNN encoder: runs once per batch block, at layer step 0 --------------
        @pl.when(l == 0)
        def _():
            x3 = x_ref[...]                                     # (bb, T_in, C_in) f32
            for i in range(num_convs):
                w_ref = conv_refs[2 * i]                        # (K, C_in, C_out) bf16
                bias = conv_refs[2 * i + 1][...]                # (1, C_out) f32
                _, t_in, c_in = x3.shape
                ksz, _, c_out = w_ref.shape
                t_out = t_in - ksz + 1
                # Valid conv as K shifted matmuls accumulated in f32 (keeps the channel
                # layout lane-aligned; no lane-axis im2col concatenate).
                acc = jnp.zeros((bb * t_out, c_out), jnp.float32)
                for j in range(ksz):
                    xs = x3[:, j:j + t_out, :].reshape(bb * t_out, c_in)
                    acc = acc + jnp.dot(xs.astype(jnp.bfloat16), w_ref[j],
                                        preferred_element_type=jnp.float32)
                y = jnp.maximum(acc + bias, 0.0)                # fused ReLU, f32
                if i + 1 < num_convs:
                    x3 = y.reshape(bb, t_out, c_out)
                else:
                    x_scr[...] = y                              # (bb*t, d_model)

        # -------- One post-norm transformer encoder layer (weights streamed for layer l) ----
        wqkv = wqkv_ref[0]                                      # (D, 3D) bf16
        wo = wo_ref[0]                                          # (D, D)  bf16
        w1 = w1_ref[0]                                          # (D, F)  bf16
        w2 = w2_ref[0]                                          # (F, D)  bf16
        b1 = b1_ref[0]                                          # (1, F)  f32
        vec = vec_ref[0]                                        # (9, D)  f32: bq,bk,bv,bo,g1,b1n,b2,g2,b2n

        x2 = x_scr[...]                                         # (bb*t, D) f32
        qkv = jnp.dot(x2.astype(jnp.bfloat16), wqkv,
                      preferred_element_type=jnp.float32)       # (bb*t, 3D) f32
        q = (qkv[:, 0:d] + vec[0:1, :]).astype(jnp.bfloat16).reshape(bb, t, d)
        k = (qkv[:, d:2 * d] + vec[1:2, :]).astype(jnp.bfloat16).reshape(bb, t, d)
        v = (qkv[:, 2 * d:3 * d] + vec[2:3, :]).astype(jnp.bfloat16).reshape(bb, t, d)

        # Multi-head attention: QK^T / PV batched over the bb rows (3-D einsum); heads are
        # re-merged so the output projection is a single full-K matmul.
        scale = 1.0 / math.sqrt(dh)
        ctx_heads = []
        for h in range(nhead):
            lo, hi = h * dh, (h + 1) * dh
            s = jnp.einsum('btd,bsd->bts', q[:, :, lo:hi], k[:, :, lo:hi],
                           preferred_element_type=jnp.float32) * scale
            s = s - jnp.max(s, axis=-1, keepdims=True)          # f32 softmax
            p = jnp.exp(s)
            p = p * pl.reciprocal(jnp.sum(p, axis=-1, keepdims=True), approx=True)
            ctx_heads.append(
                jnp.einsum('bts,bsd->btd', p.astype(jnp.bfloat16), v[:, :, lo:hi],
                           preferred_element_type=jnp.float32))
        ctx = jnp.concatenate(ctx_heads, axis=-1).reshape(bb * t, d)
        attn = jnp.dot(ctx.astype(jnp.bfloat16), wo,
                       preferred_element_type=jnp.float32) + vec[3:4, :]

        h1 = _layer_norm(x2 + attn, vec[4:5, :], vec[5:6, :])   # (bb*t, D) f32

        f = jnp.dot(h1.astype(jnp.bfloat16), w1, preferred_element_type=jnp.float32) + b1
        f = jnp.maximum(f, 0.0)
        f = jnp.dot(f.astype(jnp.bfloat16), w2, preferred_element_type=jnp.float32) + vec[6:7, :]

        xo = _layer_norm(h1 + f, vec[7:8, :], vec[8:9, :])
        x_scr[...] = xo                                         # carry to the next layer step

        @pl.when(l == pl.num_programs(1) - 1)
        def _():
            o_ref[...] = xo.astype(o_ref.dtype)                 # lane-dense (bb*t, D) store

    return kernel


# -----------------------------------------------------------------------------
# Wrapper: single pallas_call, grid = (batch_blocks, num_layers).
# -----------------------------------------------------------------------------
def eeg2vec_forward(x_ncw, convs, layers, nhead, *, batch_block=None):
    """convs: list of ((K, C_in, C_out) bf16 weight, (1, C_out) f32 bias).
    layers: (wqkv (L,D,3D) bf16, wo (L,D,D) bf16, w1 (L,D,F) bf16, w2 (L,F,D) bf16,
             b1 (L,1,F) f32, vec (L,9,D) f32)."""
    x = jnp.transpose(x_ncw, (0, 2, 1)).astype(jnp.float32)     # NCW -> (B, T, C)
    B, T_in, C_in = x.shape
    Bb = batch_block if batch_block is not None else math.gcd(B, 4)
    assert B % Bb == 0

    args = [x]
    in_specs = [pl.BlockSpec((Bb, T_in, C_in), lambda bi, l: (bi, 0, 0))]

    t, c = T_in, C_in
    for (w, b) in convs:
        ksz, c_in_w, c_out = w.shape
        assert c_in_w == c
        args += [w, b]
        # Constant-index weight blocks: DMA'd once, stay resident across the grid.
        in_specs += [pl.BlockSpec((ksz, c_in_w, c_out), lambda bi, l: (0, 0, 0)),
                     pl.BlockSpec((1, c_out), lambda bi, l: (0, 0))]
        t, c = t - ksz + 1, c_out
    T_f, D = t, c

    wqkv, wo, w1, w2, b1, vec = layers
    L = wqkv.shape[0]
    F = w1.shape[-1]
    assert D % nhead == 0 and wqkv.shape[1] == D
    args += [wqkv, wo, w1, w2, b1, vec]
    # Layer-streamed slabs: one layer's weights are DMA'd per step along the "arbitrary" axis.
    in_specs += [
        pl.BlockSpec((1, D, 3 * D), lambda bi, l: (l, 0, 0)),
        pl.BlockSpec((1, D, D), lambda bi, l: (l, 0, 0)),
        pl.BlockSpec((1, D, F), lambda bi, l: (l, 0, 0)),
        pl.BlockSpec((1, F, D), lambda bi, l: (l, 0, 0)),
        pl.BlockSpec((1, 1, F), lambda bi, l: (l, 0, 0)),
        pl.BlockSpec((1, 9, D), lambda bi, l: (l, 0, 0)),
    ]

    kernel = make_eeg2vec_kernel(len(convs), nhead, Bb, T_f)

    out2d = pl.pallas_call(
        kernel,
        out_shape=jax.ShapeDtypeStruct((B * T_f, D), jnp.float32),
        grid=(B // Bb, L),
        in_specs=in_specs,
        out_specs=pl.BlockSpec((Bb * T_f, D), lambda bi, l: (bi, 0)),
        scratch_shapes=[pltpu.VMEM((Bb * T_f, D), jnp.float32)],
        compiler_params=pltpu.CompilerParams(
            dimension_semantics=("parallel", "arbitrary"),
            vmem_limit_bytes=32 * 1024 * 1024),
    )(*args)
    return out2d.reshape(B, T_f, D)


# -----------------------------------------------------------------------------
# Parameter init (deterministic, synthetic), packed/cast for the fused kernel.
# -----------------------------------------------------------------------------
def init_params(key, conv_sizes, kernel_sizes, d_model, dim_feedforward,
                num_encoder_layers):
    assert conv_sizes[-1] == d_model
    convs = []
    for i, ksz in enumerate(kernel_sizes):
        c_in, c_out = conv_sizes[i], conv_sizes[i + 1]
        key, k1, k2 = jax.random.split(key, 3)
        # NOTE: PyTorch Conv1d stores weights as (C_out, C_in, K); a real checkpoint must be
        # transposed to (K, C_in, C_out) before use here.
        w = jax.random.normal(k1, (ksz, c_in, c_out), jnp.float32) / math.sqrt(c_in * ksz)
        b = 0.01 * jax.random.normal(k2, (1, c_out), jnp.float32)
        convs.append((w.astype(jnp.bfloat16), b))

    s_d = 1.0 / math.sqrt(d_model)
    s_f = 1.0 / math.sqrt(dim_feedforward)
    wqkv_l, wo_l, w1_l, w2_l, b1_l, vec_l = [], [], [], [], [], []
    for _ in range(num_encoder_layers):
        key, *ks = jax.random.split(key, 13)
        wq = jax.random.normal(ks[0], (d_model, d_model), jnp.float32) * s_d
        wk = jax.random.normal(ks[1], (d_model, d_model), jnp.float32) * s_d
        wv = jax.random.normal(ks[2], (d_model, d_model), jnp.float32) * s_d
        wqkv_l.append(jnp.concatenate([wq, wk, wv], axis=1))                 # (D, 3D)
        bq = 0.01 * jax.random.normal(ks[3], (d_model,), jnp.float32)
        bk = 0.01 * jax.random.normal(ks[4], (d_model,), jnp.float32)
        bv = 0.01 * jax.random.normal(ks[5], (d_model,), jnp.float32)
        wo_l.append(jax.random.normal(ks[6], (d_model, d_model), jnp.float32) * s_d)
        bo = 0.01 * jax.random.normal(ks[7], (d_model,), jnp.float32)
        ln1g = jnp.ones((d_model,), jnp.float32)
        ln1b = jnp.zeros((d_model,), jnp.float32)
        w1_l.append(jax.random.normal(ks[8], (d_model, dim_feedforward), jnp.float32) * s_d)
        b1_l.append(0.01 * jax.random.normal(ks[9], (1, dim_feedforward), jnp.float32))
        w2_l.append(jax.random.normal(ks[10], (dim_feedforward, d_model), jnp.float32) * s_f)
        b2 = 0.01 * jax.random.normal(ks[11], (d_model,), jnp.float32)
        ln2g = jnp.ones((d_model,), jnp.float32)
        ln2b = jnp.zeros((d_model,), jnp.float32)
        vec_l.append(jnp.stack([bq, bk, bv, bo, ln1g, ln1b, b2, ln2g, ln2b], axis=0))

    layers = (jnp.stack(wqkv_l).astype(jnp.bfloat16),
              jnp.stack(wo_l).astype(jnp.bfloat16),
              jnp.stack(w1_l).astype(jnp.bfloat16),
              jnp.stack(w2_l).astype(jnp.bfloat16),
              jnp.stack(b1_l),                                   # (L, 1, F) f32
              jnp.stack(vec_l))                                  # (L, 9, D) f32
    return convs, layers


if __name__ == "__main__":
    # Small config consistent with the module's constructor.  d_model = 128 keeps the last
    # dim lane-dense (no masked vst) and the MXU tiles 128-aligned on v5e.
    conv_sizes = [4, 32, 128]        # EEG channels -> ... -> d_model
    kernel_sizes = [3, 3]
    d_model = 128
    nhead = 4
    num_encoder_layers = 2
    dim_feedforward = 256

    B, C_in, T = 8, 4, 20            # PyTorch NCW input for Conv1d

    key = jax.random.PRNGKey(0)
    key_x, key_p = jax.random.split(key)
    x = jax.random.normal(key_x, (B, C_in, T), jnp.float32)
    convs, layers = init_params(key_p, conv_sizes, kernel_sizes, d_model,
                                dim_feedforward, num_encoder_layers)

    out = eeg2vec_forward(x, convs, layers, nhead, batch_block=4)
    jax.block_until_ready(out)

    t_final = T - sum(k - 1 for k in kernel_sizes)
    assert out.shape == (B, t_final, d_model), out.shape
    assert bool(jnp.all(jnp.isfinite(out)))
    print("KERNEL_OK")
</pallas_src>

<mosaic_0001>
module attributes {stable_mosaic.version = 11 : i64} {
  func.func @kernel(%arg0: i32, %arg1: i32, %arg2: memref<4x20x4xf32, #tpu.memory_space<vmem>>, %arg3: memref<3x4x32xbf16, #tpu.memory_space<vmem>>, %arg4: memref<1x32xf32, #tpu.memory_space<vmem>>, %arg5: memref<3x32x128xbf16, #tpu.memory_space<vmem>>, %arg6: memref<1x128xf32, #tpu.memory_space<vmem>>, %arg7: memref<1x128x384xbf16, #tpu.memory_space<vmem>>, %arg8: memref<1x128x128xbf16, #tpu.memory_space<vmem>>, %arg9: memref<1x128x256xbf16, #tpu.memory_space<vmem>>, %arg10: memref<1x256x128xbf16, #tpu.memory_space<vmem>>, %arg11: memref<1x1x256xf32, #tpu.memory_space<vmem>>, %arg12: memref<1x9x128xf32, #tpu.memory_space<vmem>>, %arg13: memref<64x128xf32, #tpu.memory_space<vmem>>, %arg14: memref<64x128xf32, #tpu.memory_space<vmem>>) attributes {dimension_semantics = [#tpu.dimension_semantics<parallel>, #tpu.dimension_semantics<arbitrary>], iteration_bounds = array<i64: 2, 2>, scalar_prefetch = 0 : i64, scratch_operands = 1 : i64, tpu.core_type = #tpu.core_type<tc>, window_params = [{transform_indices = @transform_0, window_bounds = array<i64: 4, 20, 4>}, {pipeline_mode = #tpu.pipeline_mode<synchronous>, transform_indices = @transform_1, window_bounds = array<i64: 3, 4, 32>}, {pipeline_mode = #tpu.pipeline_mode<synchronous>, transform_indices = @transform_2, window_bounds = array<i64: 1, 32>}, {pipeline_mode = #tpu.pipeline_mode<synchronous>, transform_indices = @transform_3, window_bounds = array<i64: 3, 32, 128>}, {pipeline_mode = #tpu.pipeline_mode<synchronous>, transform_indices = @transform_4, window_bounds = array<i64: 1, 128>}, {transform_indices = @transform_5, window_bounds = array<i64: 1, 128, 384>}, {transform_indices = @transform_6, window_bounds = array<i64: 1, 128, 128>}, {transform_indices = @transform_7, window_bounds = array<i64: 1, 128, 256>}, {transform_indices = @transform_8, window_bounds = array<i64: 1, 256, 128>}, {transform_indices = @transform_9, window_bounds = array<i64: 1, 1, 256>}, {transform_indices = @transform_10, window_bounds = array<i64: 1, 9, 128>}, {transform_indices = @transform_11, window_bounds = array<i64: 64, 128>}]} {
    %c0_i32 = arith.constant 0 : i32
    %0 = arith.cmpi eq, %arg1, %c0_i32 : i32
    %1 = arith.extui %0 : i1 to i32
    %c0_i32_0 = arith.constant 0 : i32
    %2 = arith.cmpi ne, %1, %c0_i32_0 : i32
    scf.if %2 {
      %c0_57 = arith.constant 0 : index
      %c0_58 = arith.constant 0 : index
      %c0_59 = arith.constant 0 : index
      %180 = vector.load %arg2[%c0_57, %c0_58, %c0_59] : memref<4x20x4xf32, #tpu.memory_space<vmem>>, vector<4x20x4xf32>
      %c0_60 = arith.constant 0 : index
      %c0_61 = arith.constant 0 : index
      %181 = vector.load %arg4[%c0_60, %c0_61] : memref<1x32xf32, #tpu.memory_space<vmem>>, vector<1x32xf32>
      %cst_62 = arith.constant 0.000000e+00 : f32
      %182 = vector.broadcast %cst_62 : f32 to vector<72x32xf32>
      %183 = vector.extract_strided_slice %180 {offsets = [0, 0, 0], sizes = [4, 18, 4], strides = [1, 1, 1]} : vector<4x20x4xf32> to vector<4x18x4xf32>
      %184 = vector.shape_cast %183 : vector<4x18x4xf32> to vector<72x4xf32>
      %185 = arith.truncf %184 : vector<72x4xf32> to vector<72x4xbf16>
      %c0_63 = arith.constant 0 : index
      %c0_64 = arith.constant 0 : index
      %c0_65 = arith.constant 0 : index
      %186 = vector.load %arg3[%c0_63, %c0_64, %c0_65] : memref<3x4x32xbf16, #tpu.memory_space<vmem>>, vector<1x4x32xbf16>
      %187 = vector.shape_cast %186 : vector<1x4x32xbf16> to vector<4x32xbf16>
      %cst_66 = arith.constant dense<0.000000e+00> : vector<72x32xf32>
      %188 = tpu.matmul %185, %187, %cst_66 {dimension_numbers = #tpu.dot_dimension_numbers<[1], [0], [0], [1], [0, 0, 1, 1], [], []>} : vector<72x4xbf16>, vector<4x32xbf16>, vector<72x32xf32> -> vector<72x32xf32>
      %189 = arith.addf %182, %188 : vector<72x32xf32>
      %190 = vector.extract_strided_slice %180 {offsets = [0, 1, 0], sizes = [4, 18, 4], strides = [1, 1, 1]} : vector<4x20x4xf32> to vector<4x18x4xf32>
      %191 = vector.shape_cast %190 : vector<4x18x4xf32> to vector<72x4xf32>
      %192 = arith.truncf %191 : vector<72x4xf32> to vector<72x4xbf16>
      %c1 = arith.constant 1 : index
      %c0_67 = arith.constant 0 : index
      %c0_68 = arith.constant 0 : index
      %193 = vector.load %arg3[%c1, %c0_67, %c0_68] : memref<3x4x32xbf16, #tpu.memory_space<vmem>>, vector<1x4x32xbf16>
      %194 = vector.shape_cast %193 : vector<1x4x32xbf16> to vector<4x32xbf16>
      %cst_69 = arith.constant dense<0.000000e+00> : vector<72x32xf32>
      %195 = tpu.matmul %192, %194, %cst_69 {dimension_numbers = #tpu.dot_dimension_numbers<[1], [0], [0], [1], [0, 0, 1, 1], [], []>} : vector<72x4xbf16>, vector<4x32xbf16>, vector<72x32xf32> -> vector<72x32xf32>
      %196 = arith.addf %189, %195 : vector<72x32xf32>
      %197 = vector.extract_strided_slice %180 {offsets = [0, 2, 0], sizes = [4, 18, 4], strides = [1, 1, 1]} : vector<4x20x4xf32> to vector<4x18x4xf32>
      %198 = vector.shape_cast %197 : vector<4x18x4xf32> to vector<72x4xf32>
      %199 = arith.truncf %198 : vector<72x4xf32> to vector<72x4xbf16>
      %c2 = arith.constant 2 : index
      %c0_70 = arith.constant 0 : index
      %c0_71 = arith.constant 0 : index
      %200 = vector.load %arg3[%c2, %c0_70, %c0_71] : memref<3x4x32xbf16, #tpu.memory_space<vmem>>, vector<1x4x32xbf16>
      %201 = vector.shape_cast %200 : vector<1x4x32xbf16> to vector<4x32xbf16>
      %cst_72 = arith.constant dense<0.000000e+00> : vector<72x32xf32>
      %202 = tpu.matmul %199, %201, %cst_72 {dimension_numbers = #tpu.dot_dimension_numbers<[1], [0], [0], [1], [0, 0, 1, 1], [], []>} : vector<72x4xbf16>, vector<4x32xbf16>, vector<72x32xf32> -> vector<72x32xf32>
      %203 = arith.addf %196, %202 : vector<72x32xf32>
      %204 = vector.broadcast %181 : vector<1x32xf32> to vector<72x32xf32>
      %205 = arith.addf %203, %204 : vector<72x32xf32>
      %cst_73 = arith.constant 0.000000e+00 : f32
      %206 = vector.broadcast %cst_73 : f32 to vector<72x32xf32>
      %207 = arith.maximumf %205, %206 : vector<72x32xf32>
      %208 = vector.shape_cast %207 : vector<72x32xf32> to vector<4x18x32xf32>
      %c0_74 = arith.constant 0 : index
      %c0_75 = arith.constant 0 : index
      %209 = vector.load %arg6[%c0_74, %c0_75] : memref<1x128xf32, #tpu.memory_space<vmem>>, vector<1x128xf32>
      %cst_76 = arith.constant 0.000000e+00 : f32
      %210 = vector.broadcast %cst_76 : f32 to vector<64x128xf32>
      %211 = vector.extract_strided_slice %208 {offsets = [0, 0, 0], sizes = [4, 16, 32], strides = [1, 1, 1]} : vector<4x18x32xf32> to vector<4x16x32xf32>
      %212 = vector.shape_cast %211 : vector<4x16x32xf32> to vector<64x32xf32>
      %213 = arith.truncf %212 : vector<64x32xf32> to vector<64x32xbf16>
      %c0_77 = arith.constant 0 : index
      %c0_78 = arith.constant 0 : index
      %c0_79 = arith.constant 0 : index
      %214 = vector.load %arg5[%c0_77, %c0_78, %c0_79] : memref<3x32x128xbf16, #tpu.memory_space<vmem>>, vector<1x32x128xbf16>
      %215 = vector.shape_cast %214 : vector<1x32x128xbf16> to vector<32x128xbf16>
      %cst_80 = arith.constant dense<0.000000e+00> : vector<64x128xf32>
      %216 = tpu.matmul %213, %215, %cst_80 {dimension_numbers = #tpu.dot_dimension_numbers<[1], [0], [0], [1], [0, 0, 1, 1], [], []>} : vector<64x32xbf16>, vector<32x128xbf16>, vector<64x128xf32> -> vector<64x128xf32>
      %217 = arith.addf %210, %216 : vector<64x128xf32>
      %218 = vector.extract_strided_slice %208 {offsets = [0, 1, 0], sizes = [4, 16, 32], strides = [1, 1, 1]} : vector<4x18x32xf32> to vector<4x16x32xf32>
      %219 = vector.shape_cast %218 : vector<4x16x32xf32> to vector<64x32xf32>
      %220 = arith.truncf %219 : vector<64x32xf32> to vector<64x32xbf16>
      %c1_81 = arith.constant 1 : index
      %c0_82 = arith.constant 0 : index
      %c0_83 = arith.constant 0 : index
      %221 = vector.load %arg5[%c1_81, %c0_82, %c0_83] : memref<3x32x128xbf16, #tpu.memory_space<vmem>>, vector<1x32x128xbf16>
      %222 = vector.shape_cast %221 : vector<1x32x128xbf16> to vector<32x128xbf16>
      %cst_84 = arith.constant dense<0.000000e+00> : vector<64x128xf32>
      %223 = tpu.matmul %220, %222, %cst_84 {dimension_numbers = #tpu.dot_dimension_numbers<[1], [0], [0], [1], [0, 0, 1, 1], [], []>} : vector<64x32xbf16>, vector<32x128xbf16>, vector<64x128xf32> -> vector<64x128xf32>
      %224 = arith.addf %217, %223 : vector<64x128xf32>
      %225 = vector.extract_strided_slice %208 {offsets = [0, 2, 0], sizes = [4, 16, 32], strides = [1, 1, 1]} : vector<4x18x32xf32> to vector<4x16x32xf32>
      %226 = vector.shape_cast %225 : vector<4x16x32xf32> to vector<64x32xf32>
      %227 = arith.truncf %226 : vector<64x32xf32> to vector<64x32xbf16>
      %c2_85 = arith.constant 2 : index
      %c0_86 = arith.constant 0 : index
      %c0_87 = arith.constant 0 : index
      %228 = vector.load %arg5[%c2_85, %c0_86, %c0_87] : memref<3x32x128xbf16, #tpu.memory_space<vmem>>, vector<1x32x128xbf16>
      %229 = vector.shape_cast %228 : vector<1x32x128xbf16> to vector<32x128xbf16>
      %cst_88 = arith.constant dense<0.000000e+00> : vector<64x128xf32>
      %230 = tpu.matmul %227, %229, %cst_88 {dimension_numbers = #tpu.dot_dimension_numbers<[1], [0], [0], [1], [0, 0, 1, 1], [], []>} : vector<64x32xbf16>, vector<32x128xbf16>, vector<64x128xf32> -> vector<64x128xf32>
      %231 = arith.addf %224, %230 : vector<64x128xf32>
      %232 = vector.broadcast %209 : vector<1x128xf32> to vector<64x128xf32>
      %233 = arith.addf %231, %232 : vector<64x128xf32>
      %cst_89 = arith.constant 0.000000e+00 : f32
      %234 = vector.broadcast %cst_89 : f32 to vector<64x128xf32>
      %235 = arith.maximumf %233, %234 : vector<64x128xf32>
      %c0_90 = arith.constant 0 : index
      %c0_91 = arith.constant 0 : index
      %236 = vector.load %arg14[%c0_90, %c0_91] : memref<64x128xf32, #tpu.memory_space<vmem>>, vector<64x128xf32>
      tpu.vector_store %arg14[%c0_90, %c0_91], %235 {strides = array<i32>} : memref<64x128xf32, #tpu.memory_space<vmem>>, vector<64x128xf32>,
    } else {
    }
    %c0 = arith.constant 0 : index
    %c0_1 = arith.constant 0 : index
    %c0_2 = arith.constant 0 : index
    %3 = vector.load %arg7[%c0, %c0_1, %c0_2] : memref<1x128x384xbf16, #tpu.memory_space<vmem>>, vector<1x128x384xbf16>
    %4 = vector.shape_cast %3 : vector<1x128x384xbf16> to vector<128x384xbf16>
    %c0_3 = arith.constant 0 : index
    %c0_4 = arith.constant 0 : index
    %c0_5 = arith.constant 0 : index
    %5 = vector.load %arg8[%c0_3, %c0_4, %c0_5] : memref<1x128x128xbf16, #tpu.memory_space<vmem>>, vector<1x128x128xbf16>
    %6 = vector.shape_cast %5 : vector<1x128x128xbf16> to vector<128x128xbf16>
    %c0_6 = arith.constant 0 : index
    %c0_7 = arith.constant 0 : index
    %c0_8 = arith.constant 0 : index
    %7 = vector.load %arg9[%c0_6, %c0_7, %c0_8] : memref<1x128x256xbf16, #tpu.memory_space<vmem>>, vector<1x128x256xbf16>
    %8 = vector.shape_cast %7 : vector<1x128x256xbf16> to vector<128x256xbf16>
    %c0_9 = arith.constant 0 : index
    %c0_10 = arith.constant 0 : index
    %c0_11 = arith.constant 0 : index
    %9 = vector.load %arg10[%c0_9, %c0_10, %c0_11] : memref<1x256x128xbf16, #tpu.memory_space<vmem>>, vector<1x256x128xbf16>
    %10 = vector.shape_cast %9 : vector<1x256x128xbf16> to vector<256x128xbf16>
    %c0_12 = arith.constant 0 : index
    %c0_13 = arith.constant 0 : index
    %c0_14 = arith.constant 0 : index
    %11 = vector.load %arg11[%c0_12, %c0_13, %c0_14] : memref<1x1x256xf32, #tpu.memory_space<vmem>>, vector<1x1x256xf32>
    %12 = vector.shape_cast %11 : vector<1x1x256xf32> to vector<1x256xf32>
    %c0_15 = arith.constant 0 : index
    %c0_16 = arith.constant 0 : index
    %c0_17 = arith.constant 0 : index
    %13 = vector.load %arg12[%c0_15, %c0_16, %c0_17] : memref<1x9x128xf32, #tpu.memory_space<vmem>>, vector<1x9x128xf32>
    %14 = vector.shape_cast %13 : vector<1x9x128xf32> to vector<9x128xf32>
    %c0_18 = arith.constant 0 : index
    %c0_19 = arith.constant 0 : index
    %15 = vector.load %arg14[%c0_18, %c0_19] : memref<64x128xf32, #tpu.memory_space<vmem>>, vector<64x128xf32>
    %16 = arith.truncf %15 : vector<64x128xf32> to vector<64x128xbf16>
    %cst = arith.constant dense<0.000000e+00> : vector<64x384xf32>
    %17 = tpu.matmul %16, %4, %cst {dimension_numbers = #tpu.dot_dimension_numbers<[1], [0], [0], [1], [0, 0, 1, 1], [], []>} : vector<64x128xbf16>, vector<128x384xbf16>, vector<64x384xf32> -> vector<64x384xf32>
    %18 = vector.extract_strided_slice %17 {offsets = [0, 0], sizes = [64, 128], strides = [1, 1]} : vector<64x384xf32> to vector<64x128xf32>
    %19 = vector.extract_strided_slice %14 {offsets = [0, 0], sizes = [1, 128], strides = [1, 1]} : vector<9x128xf32> to vector<1x128xf32>
    %20 = vector.broadcast %19 : vector<1x128xf32> to vector<64x128xf32>
    %21 = arith.addf %18, %20 : vector<64x128xf32>
    %22 = arith.truncf %21 : vector<64x128xf32> to vector<64x128xbf16>
    %23 = vector.shape_cast %22 : vector<64x128xbf16> to vector<4x16x128xbf16>
    %24 = vector.extract_strided_slice %17 {offsets = [0, 128], sizes = [64, 128], strides = [1, 1]} : vector<64x384xf32> to vector<64x128xf32>
    %25 = vector.extract_strided_slice %14 {offsets = [1, 0], sizes = [1, 128], strides = [1, 1]} : vector<9x128xf32> to vector<1x128xf32>
    %26 = vector.broadcast %25 : vector<1x128xf32> to vector<64x128xf32>
    %27 = arith.addf %24, %26 : vector<64x128xf32>
    %28 = arith.truncf %27 : vector<64x128xf32> to vector<64x128xbf16>
    %29 = vector.shape_cast %28 : vector<64x128xbf16> to vector<4x16x128xbf16>
    %30 = vector.extract_strided_slice %17 {offsets = [0, 256], sizes = [64, 128], strides = [1, 1]} : vector<64x384xf32> to vector<64x128xf32>
    %31 = vector.extract_strided_slice %14 {offsets = [2, 0], sizes = [1, 128], strides = [1, 1]} : vector<9x128xf32> to vector<1x128xf32>
    %32 = vector.broadcast %31 : vector<1x128xf32> to vector<64x128xf32>
    %33 = arith.addf %30, %32 : vector<64x128xf32>
    %34 = arith.truncf %33 : vector<64x128xf32> to vector<64x128xbf16>
    %35 = vector.shape_cast %34 : vector<64x128xbf16> to vector<4x16x128xbf16>
    %36 = vector.extract_strided_slice %23 {offsets = [0, 0, 0], sizes = [4, 16, 32], strides = [1, 1, 1]} : vector<4x16x128xbf16> to vector<4x16x32xbf16>
    %37 = vector.extract_strided_slice %29 {offsets = [0, 0, 0], sizes = [4, 16, 32], strides = [1, 1, 1]} : vector<4x16x128xbf16> to vector<4x16x32xbf16>
    "tpu.trace_start"() <{level = 10 : i32, message = "btd,bsd->bts"}> : () -> ()
    %cst_20 = arith.constant dense<0.000000e+00> : vector<4x16x16xf32>
    %38 = tpu.matmul %36, %37, %cst_20 {dimension_numbers = #tpu.dot_dimension_numbers<[2], [2], [1], [1], [0, 0, 0, 1, 1, 1], [0], [0]>} : vector<4x16x32xbf16>, vector<4x16x32xbf16>, vector<4x16x16xf32> -> vector<4x16x16xf32>
    "tpu.trace_stop"() : () -> ()
    %cst_21 = arith.constant 0.176776692 : f32
    %39 = vector.broadcast %cst_21 : f32 to vector<4x16x16xf32>
    %40 = arith.mulf %38, %39 : vector<4x16x16xf32>
    %cst_22 = arith.constant dense<0xFF800000> : vector<4x16xf32>
    %41 = vector.multi_reduction <maximumf>, %40, %cst_22 [2] : vector<4x16x16xf32> to vector<4x16xf32>
    %42 = vector.shape_cast %41 : vector<4x16xf32> to vector<4x16x1xf32>
    %43 = vector.broadcast %42 : vector<4x16x1xf32> to vector<4x16x16xf32>
    %44 = arith.subf %40, %43 : vector<4x16x16xf32>
    %45 = math.exp %44 : vector<4x16x16xf32>
    %cst_23 = arith.constant dense<0.000000e+00> : vector<4x16xf32>
    %46 = vector.multi_reduction <add>, %45, %cst_23 [2] : vector<4x16x16xf32> to vector<4x16xf32>
    %47 = vector.shape_cast %46 : vector<4x16xf32> to vector<4x16x1xf32>
    %48 = tpu.reciprocal %47 {approx = true} : vector<4x16x1xf32> -> vector<4x16x1xf32>
    %49 = vector.broadcast %48 : vector<4x16x1xf32> to vector<4x16x16xf32>
    %50 = arith.mulf %45, %49 : vector<4x16x16xf32>
    %51 = arith.truncf %50 : vector<4x16x16xf32> to vector<4x16x16xbf16>
    %52 = vector.extract_strided_slice %35 {offsets = [0, 0, 0], sizes = [4, 16, 32], strides = [1, 1, 1]} : vector<4x16x128xbf16> to vector<4x16x32xbf16>
    "tpu.trace_start"() <{level = 10 : i32, message = "bts,bsd->btd"}> : () -> ()
    %cst_24 = arith.constant dense<0.000000e+00> : vector<4x16x32xf32>
    %53 = tpu.matmul %51, %52, %cst_24 {dimension_numbers = #tpu.dot_dimension_numbers<[2], [1], [1], [2], [0, 0, 0, 1, 1, 2], [0], [0]>} : vector<4x16x16xbf16>, vector<4x16x32xbf16>, vector<4x16x32xf32> -> vector<4x16x32xf32>
    "tpu.trace_stop"() : () -> ()
    %54 = vector.extract_strided_slice %23 {offsets = [0, 0, 32], sizes = [4, 16, 32], strides = [1, 1, 1]} : vector<4x16x128xbf16> to vector<4x16x32xbf16>
    %55 = vector.extract_strided_slice %29 {offsets = [0, 0, 32], sizes = [4, 16, 32], strides = [1, 1, 1]} : vector<4x16x128xbf16> to vector<4x16x32xbf16>
    "tpu.trace_start"() <{level = 10 : i32, message = "btd,bsd->bts"}> : () -> ()
    %cst_25 = arith.constant dense<0.000000e+00> : vector<4x16x16xf32>
    %56 = tpu.matmul %54, %55, %cst_25 {dimension_numbers = #tpu.dot_dimension_numbers<[2], [2], [1], [1], [0, 0, 0, 1, 1, 1], [0], [0]>} : vector<4x16x32xbf16>, vector<4x16x32xbf16>, vector<4x16x16xf32> -> vector<4x16x16xf32>
    "tpu.trace_stop"() : () -> ()
    %cst_26 = arith.constant 0.176776692 : f32
    %57 = vector.broadcast %cst_26 : f32 to vector<4x16x16xf32>
    %58 = arith.mulf %56, %57 : vector<4x16x16xf32>
    %cst_27 = arith.constant dense<0xFF800000> : vector<4x16xf32>
    %59 = vector.multi_reduction <maximumf>, %58, %cst_27 [2] : vector<4x16x16xf32> to vector<4x16xf32>
    %60 = vector.shape_cast %59 : vector<4x16xf32> to vector<4x16x1xf32>
    %61 = vector.broadcast %60 : vector<4x16x1xf32> to vector<4x16x16xf32>
    %62 = arith.subf %58, %61 : vector<4x16x16xf32>
    %63 = math.exp %62 : vector<4x16x16xf32>
    %cst_28 = arith.constant dense<0.000000e+00> : vector<4x16xf32>
    %64 = vector.multi_reduction <add>, %63, %cst_28 [2] : vector<4x16x16xf32> to vector<4x16xf32>
    %65 = vector.shape_cast %64 : vector<4x16xf32> to vector<4x16x1xf32>
    %66 = tpu.reciprocal %65 {approx = true} : vector<4x16x1xf32> -> vector<4x16x1xf32>
    %67 = vector.broadcast %66 : vector<4x16x1xf32> to vector<4x16x16xf32>
    %68 = arith.mulf %63, %67 : vector<4x16x16xf32>
    %69 = arith.truncf %68 : vector<4x16x16xf32> to vector<4x16x16xbf16>
    %70 = vector.extract_strided_slice %35 {offsets = [0, 0, 32], sizes = [4, 16, 32], strides = [1, 1, 1]} : vector<4x16x128xbf16> to vector<4x16x32xbf16>
    "tpu.trace_start"() <{level = 10 : i32, message = "bts,bsd->btd"}> : () -> ()
    %cst_29 = arith.constant dense<0.000000e+00> : vector<4x16x32xf32>
    %71 = tpu.matmul %69, %70, %cst_29 {dimension_numbers = #tpu.dot_dimension_numbers<[2], [1], [1], [2], [0, 0, 0, 1, 1, 2], [0], [0]>} : vector<4x16x16xbf16>, vector<4x16x32xbf16>, vector<4x16x32xf32> -> vector<4x16x32xf32>
    "tpu.trace_stop"() : () -> ()
    %72 = vector.extract_strided_slice %23 {offsets = [0, 0, 64], sizes = [4, 16, 32], strides = [1, 1, 1]} : vector<4x16x128xbf16> to vector<4x16x32xbf16>
    %73 = vector.extract_strided_slice %29 {offsets = [0, 0, 64], sizes = [4, 16, 32], strides = [1, 1, 1]} : vector<4x16x128xbf16> to vector<4x16x32xbf16>
    "tpu.trace_start"() <{level = 10 : i32, message = "btd,bsd->bts"}> : () -> ()
    %cst_30 = arith.constant dense<0.000000e+00> : vector<4x16x16xf32>
    %74 = tpu.matmul %72, %73, %cst_30 {dimension_numbers = #tpu.dot_dimension_numbers<[2], [2], [1], [1], [0, 0, 0, 1, 1, 1], [0], [0]>} : vector<4x16x32xbf16>, vector<4x16x32xbf16>, vector<4x16x16xf32> -> vector<4x16x16xf32>
    "tpu.trace_stop"() : () -> ()
    %cst_31 = arith.constant 0.176776692 : f32
    %75 = vector.broadcast %cst_31 : f32 to vector<4x16x16xf32>
    %76 = arith.mulf %74, %75 : vector<4x16x16xf32>
    %cst_32 = arith.constant dense<0xFF800000> : vector<4x16xf32>
    %77 = vector.multi_reduction <maximumf>, %76, %cst_32 [2] : vector<4x16x16xf32> to vector<4x16xf32>
    %78 = vector.shape_cast %77 : vector<4x16xf32> to vector<4x16x1xf32>
    %79 = vector.broadcast %78 : vector<4x16x1xf32> to vector<4x16x16xf32>
    %80 = arith.subf %76, %79 : vector<4x16x16xf32>
    %81 = math.exp %80 : vector<4x16x16xf32>
    %cst_33 = arith.constant dense<0.000000e+00> : vector<4x16xf32>
    %82 = vector.multi_reduction <add>, %81, %cst_33 [2] : vector<4x16x16xf32> to vector<4x16xf32>
    %83 = vector.shape_cast %82 : vector<4x16xf32> to vector<4x16x1xf32>
    %84 = tpu.reciprocal %83 {approx = true} : vector<4x16x1xf32> -> vector<4x16x1xf32>
    %85 = vector.broadcast %84 : vector<4x16x1xf32> to vector<4x16x16xf32>
    %86 = arith.mulf %81, %85 : vector<4x16x16xf32>
    %87 = arith.truncf %86 : vector<4x16x16xf32> to vector<4x16x16xbf16>
    %88 = vector.extract_strided_slice %35 {offsets = [0, 0, 64], sizes = [4, 16, 32], strides = [1, 1, 1]} : vector<4x16x128xbf16> to vector<4x16x32xbf16>
    "tpu.trace_start"() <{level = 10 : i32, message = "bts,bsd->btd"}> : () -> ()
    %cst_34 = arith.constant dense<0.000000e+00> : vector<4x16x32xf32>
    %89 = tpu.matmul %87, %88, %cst_34 {dimension_numbers = #tpu.dot_dimension_numbers<[2], [1], [1], [2], [0, 0, 0, 1, 1, 2], [0], [0]>} : vector<4x16x16xbf16>, vector<4x16x32xbf16>, vector<4x16x32xf32> -> vector<4x16x32xf32>
    "tpu.trace_stop"() : () -> ()
    %90 = vector.extract_strided_slice %23 {offsets = [0, 0, 96], sizes = [4, 16, 32], strides = [1, 1, 1]} : vector<4x16x128xbf16> to vector<4x16x32xbf16>
    %91 = vector.extract_strided_slice %29 {offsets = [0, 0, 96], sizes = [4, 16, 32], strides = [1, 1, 1]} : vector<4x16x128xbf16> to vector<4x16x32xbf16>
    "tpu.trace_start"() <{level = 10 : i32, message = "btd,bsd->bts"}> : () -> ()
    %cst_35 = arith.constant dense<0.000000e+00> : vector<4x16x16xf32>
    %92 = tpu.matmul %90, %91, %cst_35 {dimension_numbers = #tpu.dot_dimension_numbers<[2], [2], [1], [1], [0, 0, 0, 1, 1, 1], [0], [0]>} : vector<4x16x32xbf16>, vector<4x16x32xbf16>, vector<4x16x16xf32> -> vector<4x16x16xf32>
    "tpu.trace_stop"() : () -> ()
    %cst_36 = arith.constant 0.176776692 : f32
    %93 = vector.broadcast %cst_36 : f32 to vector<4x16x16xf32>
    %94 = arith.mulf %92, %93 : vector<4x16x16xf32>
    %cst_37 = arith.constant dense<0xFF800000> : vector<4x16xf32>
    %95 = vector.multi_reduction <maximumf>, %94, %cst_37 [2] : vector<4x16x16xf32> to vector<4x16xf32>
    %96 = vector.shape_cast %95 : vector<4x16xf32> to vector<4x16x1xf32>
    %97 = vector.broadcast %96 : vector<4x16x1xf32> to vector<4x16x16xf32>
    %98 = arith.subf %94, %97 : vector<4x16x16xf32>
    %99 = math.exp %98 : vector<4x16x16xf32>
    %cst_38 = arith.constant dense<0.000000e+00> : vector<4x16xf32>
    %100 = vector.multi_reduction <add>, %99, %cst_38 [2] : vector<4x16x16xf32> to vector<4x16xf32>
    %101 = vector.shape_cast %100 : vector<4x16xf32> to vector<4x16x1xf32>
    %102 = tpu.reciprocal %101 {approx = true} : vector<4x16x1xf32> -> vector<4x16x1xf32>
    %103 = vector.broadcast %102 : vector<4x16x1xf32> to vector<4x16x16xf32>
    %104 = arith.mulf %99, %103 : vector<4x16x16xf32>
    %105 = arith.truncf %104 : vector<4x16x16xf32> to vector<4x16x16xbf16>
    %106 = vector.extract_strided_slice %35 {offsets = [0, 0, 96], sizes = [4, 16, 32], strides = [1, 1, 1]} : vector<4x16x128xbf16> to vector<4x16x32xbf16>
    "tpu.trace_start"() <{level = 10 : i32, message = "bts,bsd->btd"}> : () -> ()
    %cst_39 = arith.constant dense<0.000000e+00> : vector<4x16x32xf32>
    %107 = tpu.matmul %105, %106, %cst_39 {dimension_numbers = #tpu.dot_dimension_numbers<[2], [1], [1], [2], [0, 0, 0, 1, 1, 2], [0], [0]>} : vector<4x16x16xbf16>, vector<4x16x32xbf16>, vector<4x16x32xf32> -> vector<4x16x32xf32>
    "tpu.trace_stop"() : () -> ()
    %108 = tpu.concatenate %53, %71, %89, %107 in 2 : vector<4x16x32xf32>, vector<4x16x32xf32>, vector<4x16x32xf32>, vector<4x16x32xf32> -> vector<4x16x128xf32>
    %109 = vector.shape_cast %108 : vector<4x16x128xf32> to vector<64x128xf32>
    %110 = arith.truncf %109 : vector<64x128xf32> to vector<64x128xbf16>
    %cst_40 = arith.constant dense<0.000000e+00> : vector<64x128xf32>
    %111 = tpu.matmul %110, %6, %cst_40 {dimension_numbers = #tpu.dot_dimension_numbers<[1], [0], [0], [1], [0, 0, 1, 1], [], []>} : vector<64x128xbf16>, vector<128x128xbf16>, vector<64x128xf32> -> vector<64x128xf32>
    %112 = vector.extract_strided_slice %14 {offsets = [3, 0], sizes = [1, 128], strides = [1, 1]} : vector<9x128xf32> to vector<1x128xf32>
    %113 = vector.broadcast %112 : vector<1x128xf32> to vector<64x128xf32>
    %114 = arith.addf %111, %113 : vector<64x128xf32>
    %115 = arith.addf %15, %114 : vector<64x128xf32>
    %116 = vector.extract_strided_slice %14 {offsets = [4, 0], sizes = [1, 128], strides = [1, 1]} : vector<9x128xf32> to vector<1x128xf32>
    %117 = vector.extract_strided_slice %14 {offsets = [5, 0], sizes = [1, 128], strides = [1, 1]} : vector<9x128xf32> to vector<1x128xf32>
    %cst_41 = arith.constant dense<0.000000e+00> : vector<64xf32>
    %118 = vector.multi_reduction <add>, %115, %cst_41 [1] : vector<64x128xf32> to vector<64xf32>
    %119 = vector.shape_cast %118 : vector<64xf32> to vector<64x1xf32>
    %cst_42 = arith.constant 1.280000e+02 : f32
    %120 = vector.broadcast %cst_42 : f32 to vector<64x1xf32>
    %121 = arith.divf %119, %120 : vector<64x1xf32>
    %122 = vector.broadcast %121 : vector<64x1xf32> to vector<64x128xf32>
    %123 = arith.subf %115, %122 : vector<64x128xf32>
    %124 = arith.mulf %123, %123 : vector<64x128xf32>
    %cst_43 = arith.constant dense<0.000000e+00> : vector<64xf32>
    %125 = vector.multi_reduction <add>, %124, %cst_43 [1] : vector<64x128xf32> to vector<64xf32>
    %126 = vector.shape_cast %125 : vector<64xf32> to vector<64x1xf32>
    %cst_44 = arith.constant 1.280000e+02 : f32
    %127 = vector.broadcast %cst_44 : f32 to vector<64x1xf32>
    %128 = arith.divf %126, %127 : vector<64x1xf32>
    %129 = vector.broadcast %121 : vector<64x1xf32> to vector<64x128xf32>
    %130 = arith.subf %115, %129 : vector<64x128xf32>
    %cst_45 = arith.constant 9.99999974E-6 : f32
    %131 = vector.broadcast %cst_45 : f32 to vector<64x1xf32>
    %132 = arith.addf %128, %131 : vector<64x1xf32>
    %133 = math.rsqrt %132 : vector<64x1xf32>
    %134 = vector.broadcast %133 : vector<64x1xf32> to vector<64x128xf32>
    %135 = arith.mulf %130, %134 : vector<64x128xf32>
    %136 = vector.broadcast %116 : vector<1x128xf32> to vector<64x128xf32>
    %137 = arith.mulf %135, %136 : vector<64x128xf32>
    %138 = vector.broadcast %117 : vector<1x128xf32> to vector<64x128xf32>
    %139 = arith.addf %137, %138 : vector<64x128xf32>
    %140 = arith.truncf %139 : vector<64x128xf32> to vector<64x128xbf16>
    %cst_46 = arith.constant dense<0.000000e+00> : vector<64x256xf32>
    %141 = tpu.matmul %140, %8, %cst_46 {dimension_numbers = #tpu.dot_dimension_numbers<[1], [0], [0], [1], [0, 0, 1, 1], [], []>} : vector<64x128xbf16>, vector<128x256xbf16>, vector<64x256xf32> -> vector<64x256xf32>
    %142 = vector.broadcast %12 : vector<1x256xf32> to vector<64x256xf32>
    %143 = arith.addf %141, %142 : vector<64x256xf32>
    %cst_47 = arith.constant 0.000000e+00 : f32
    %144 = vector.broadcast %cst_47 : f32 to vector<64x256xf32>
    %145 = arith.maximumf %143, %144 : vector<64x256xf32>
    %146 = arith.truncf %145 : vector<64x256xf32> to vector<64x256xbf16>
    %cst_48 = arith.constant dense<0.000000e+00> : vector<64x128xf32>
    %147 = tpu.matmul %146, %10, %cst_48 {dimension_numbers = #tpu.dot_dimension_numbers<[1], [0], [0], [1], [0, 0, 1, 1], [], []>} : vector<64x256xbf16>, vector<256x128xbf16>, vector<64x128xf32> -> vector<64x128xf32>
    %148 = vector.extract_strided_slice %14 {offsets = [6, 0], sizes = [1, 128], strides = [1, 1]} : vector<9x128xf32> to vector<1x128xf32>
    %149 = vector.broadcast %148 : vector<1x128xf32> to vector<64x128xf32>
    %150 = arith.addf %147, %149 : vector<64x128xf32>
    %151 = arith.addf %139, %150 : vector<64x128xf32>
    %152 = vector.extract_strided_slice %14 {offsets = [7, 0], sizes = [1, 128], strides = [1, 1]} : vector<9x128xf32> to vector<1x128xf32>
    %153 = vector.extract_strided_slice %14 {offsets = [8, 0], sizes = [1, 128], strides = [1, 1]} : vector<9x128xf32> to vector<1x128xf32>
    %cst_49 = arith.constant dense<0.000000e+00> : vector<64xf32>
    %154 = vector.multi_reduction <add>, %151, %cst_49 [1] : vector<64x128xf32> to vector<64xf32>
    %155 = vector.shape_cast %154 : vector<64xf32> to vector<64x1xf32>
    %cst_50 = arith.constant 1.280000e+02 : f32
    %156 = vector.broadcast %cst_50 : f32 to vector<64x1xf32>
    %157 = arith.divf %155, %156 : vector<64x1xf32>
    %158 = vector.broadcast %157 : vector<64x1xf32> to vector<64x128xf32>
    %159 = arith.subf %151, %158 : vector<64x128xf32>
    %160 = arith.mulf %159, %159 : vector<64x128xf32>
    %cst_51 = arith.constant dense<0.000000e+00> : vector<64xf32>
    %161 = vector.multi_reduction <add>, %160, %cst_51 [1] : vector<64x128xf32> to vector<64xf32>
    %162 = vector.shape_cast %161 : vector<64xf32> to vector<64x1xf32>
    %cst_52 = arith.constant 1.280000e+02 : f32
    %163 = vector.broadcast %cst_52 : f32 to vector<64x1xf32>
    %164 = arith.divf %162, %163 : vector<64x1xf32>
    %165 = vector.broadcast %157 : vector<64x1xf32> to vector<64x128xf32>
    %166 = arith.subf %151, %165 : vector<64x128xf32>
    %cst_53 = arith.constant 9.99999974E-6 : f32
    %167 = vector.broadcast %cst_53 : f32 to vector<64x1xf32>
    %168 = arith.addf %164, %167 : vector<64x1xf32>
    %169 = math.rsqrt %168 : vector<64x1xf32>
    %170 = vector.broadcast %169 : vector<64x1xf32> to vector<64x128xf32>
    %171 = arith.mulf %166, %170 : vector<64x128xf32>
    %172 = vector.broadcast %152 : vector<1x128xf32> to vector<64x128xf32>
    %173 = arith.mulf %171, %172 : vector<64x128xf32>
    %174 = vector.broadcast %153 : vector<1x128xf32> to vector<64x128xf32>
    %175 = arith.addf %173, %174 : vector<64x128xf32>
    %c0_54 = arith.constant 0 : index
    %c0_55 = arith.constant 0 : index
    %176 = vector.load %arg14[%c0_54, %c0_55] : memref<64x128xf32, #tpu.memory_space<vmem>>, vector<64x128xf32>
    tpu.vector_store %arg14[%c0_54, %c0_55], %175 {strides = array<i32>} : memref<64x128xf32, #tpu.memory_space<vmem>>, vector<64x128xf32>,
    %c1_i32 = arith.constant 1 : i32
    %177 = arith.cmpi eq, %arg1, %c1_i32 : i32
    %178 = arith.extui %177 : i1 to i32
    %c0_i32_56 = arith.constant 0 : i32
    %179 = arith.cmpi ne, %178, %c0_i32_56 : i32
    scf.if %179 {
      %c0_57 = arith.constant 0 : index
      %c0_58 = arith.constant 0 : index
      %180 = vector.load %arg13[%c0_57, %c0_58] : memref<64x128xf32, #tpu.memory_space<vmem>>, vector<64x128xf32>
      tpu.vector_store %arg13[%c0_57, %c0_58], %175 {strides = array<i32>} : memref<64x128xf32, #tpu.memory_space<vmem>>, vector<64x128xf32>,
    } else {
    }
    return
  }
  func.func @transform_0(%arg0: i32, %arg1: i32) -> (i32, i32, i32) {
    %c0_i32 = arith.constant 0 : i32
    %c0_i32_0 = arith.constant 0 : i32
    %c0_i32_1 = arith.constant 0 : i32
    return %arg0, %c0_i32, %c0_i32_0 : i32, i32, i32
  }
  func.func @transform_1(%arg0: i32, %arg1: i32) -> (i32, i32, i32) {
    %c0_i32 = arith.constant 0 : i32
    %c0_i32_0 = arith.constant 0 : i32
    %c0_i32_1 = arith.constant 0 : i32
    %c0_i32_2 = arith.constant 0 : i32
    return %c0_i32, %c0_i32_0, %c0_i32_1 : i32, i32, i32
  }
  func.func @transform_2(%arg0: i32, %arg1: i32) -> (i32, i32) {
    %c0_i32 = arith.constant 0 : i32
    %c0_i32_0 = arith.constant 0 : i32
    %c0_i32_1 = arith.constant 0 : i32
    return %c0_i32, %c0_i32_0 : i32, i32
  }
  func.func @transform_3(%arg0: i32, %arg1: i32) -> (i32, i32, i32) {
    %c0_i32 = arith.constant 0 : i32
    %c0_i32_0 = arith.constant 0 : i32
    %c0_i32_1 = arith.constant 0 : i32
    %c0_i32_2 = arith.constant 0 : i32
    return %c0_i32, %c0_i32_0, %c0_i32_1 : i32, i32, i32
  }
  func.func @transform_4(%arg0: i32, %arg1: i32) -> (i32, i32) {
    %c0_i32 = arith.constant 0 : i32
    %c0_i32_0 = arith.constant 0 : i32
    %c0_i32_1 = arith.constant 0 : i32
    return %c0_i32, %c0_i32_0 : i32, i32
  }
  func.func @transform_5(%arg0: i32, %arg1: i32) -> (i32, i32, i32) {
    %c0_i32 = arith.constant 0 : i32
    %c0_i32_0 = arith.constant 0 : i32
    %c0_i32_1 = arith.constant 0 : i32
    return %arg1, %c0_i32, %c0_i32_0 : i32, i32, i32
  }
  func.func @transform_6(%arg0: i32, %arg1: i32) -> (i32, i32, i32) {
    %c0_i32 = arith.constant 0 : i32
    %c0_i32_0 = arith.constant 0 : i32
    %c0_i32_1 = arith.constant 0 : i32
    return %arg1, %c0_i32, %c0_i32_0 : i32, i32, i32
  }
  func.func @transform_7(%arg0: i32, %arg1: i32) -> (i32, i32, i32) {
    %c0_i32 = arith.constant 0 : i32
    %c0_i32_0 = arith.constant 0 : i32
    %c0_i32_1 = arith.constant 0 : i32
    return %arg1, %c0_i32, %c0_i32_0 : i32, i32, i32
  }
  func.func @transform_8(%arg0: i32, %arg1: i32) -> (i32, i32, i32) {
    %c0_i32 = arith.constant 0 : i32
    %c0_i32_0 = arith.constant 0 : i32
    %c0_i32_1 = arith.constant 0 : i32
    return %arg1, %c0_i32, %c0_i32_0 : i32, i32, i32
  }
  func.func @transform_9(%arg0: i32, %arg1: i32) -> (i32, i32, i32) {
    %c0_i32 = arith.constant 0 : i32
    %c0_i32_0 = arith.constant 0 : i32
    %c0_i32_1 = arith.constant 0 : i32
    return %arg1, %c0_i32, %c0_i32_0 : i32, i32, i32
  }
  func.func @transform_10(%arg0: i32, %arg1: i32) -> (i32, i32, i32) {
    %c0_i32 = arith.constant 0 : i32
    %c0_i32_0 = arith.constant 0 : i32
    %c0_i32_1 = arith.constant 0 : i32
    return %arg1, %c0_i32, %c0_i32_0 : i32, i32, i32
  }
  func.func @transform_11(%arg0: i32, %arg1: i32) -> (i32, i32) {
    %c0_i32 = arith.constant 0 : i32
    %c0_i32_0 = arith.constant 0 : i32
    return %arg0, %c0_i32 : i32, i32
  }
}

</mosaic_0001>

<llo_original>
// kernel: tpu_custom_call.1
$region0: #{tpu_custom_call.1}
  #allocation0 [shape = 'u32[]', space=smem, size = 0x4, offset = 0x4, fixed_abs, tag = 'smem constant byte address 0x4 - core index']
  #allocation1 [shape = 'u32[144,128]{1,0:T(1,128)}', space=vmem, size = 0x12000, scoped, tag = 'internal scratch']
  #allocation2 [shape = 'f32[64,128]{1,0:T(8,128)}', space=vmem, size = 0x8000, scoped, tag = 'scratch operand']
  %s0 = inlined_call_operand.vmem [shape: f32[8,20,4], index: 0, kind: input, shape index: {}]
  %s1 = inlined_call_operand.vmem [shape: bf16[3,4,32], index: 1, kind: input, shape index: {}]
  %s2 = inlined_call_operand.vmem [shape: f32[1,32], index: 2, kind: input, shape index: {}]
  %s3 = inlined_call_operand.hbm [shape: bf16[3,32,128], index: 3, kind: input, shape index: {}]
  %s4 = inlined_call_operand.vmem [shape: f32[1,128], index: 4, kind: input, shape index: {}]
  %s5 = inlined_call_operand.hbm [shape: bf16[2,128,384], index: 5, kind: input, shape index: {}]
  %s6 = inlined_call_operand.hbm [shape: bf16[2,128,128], index: 6, kind: input, shape index: {}]
  %s7 = inlined_call_operand.vmem [shape: bf16[2,128,256], index: 7, kind: input, shape index: {}]
  %s8 = inlined_call_operand.hbm [shape: bf16[2,256,128], index: 8, kind: input, shape index: {}]
  %s9 = inlined_call_operand.vmem [shape: f32[2,1,256], index: 9, kind: input, shape index: {}]
  %s10 = inlined_call_operand.vmem [shape: f32[2,9,128], index: 10, kind: input, shape index: {}]
  %s11 = inlined_call_operand.hbm [shape: f32[128,128], index: 11, kind: output, shape index: {}]
  %s12 = sld [smem:[#allocation0]]
  $region101: #{tpu_custom_call.1} parent=0
    _
  %s14 = ssub.s32 1, %s12
  %s15 = scalar_select 0, %s14, %s12
  $region1: #{tpu_custom_call.1} parent=0
    #allocation3 [shape = 'u8[24576]{0}', space=vmem, size = 0x6000, scoped, tag = 'input window, operand 3, single buffered']
    #allocation4 [shape = 's32[2]{0}', space=sflag, size = 0x8, scoped, tag = 'scoped memory for tpu_custom_call.1']
    #allocation5 [shape = 's32[2]{0}', space=sflag, size = 0x8, scoped, tag = 'scoped memory for tpu_custom_call.1']
    #allocation6 [shape = 'u8[196608]{0}', space=vmem, size = 0x30000, scoped, tag = 'input window, operand 5']
    #allocation7 [shape = 's32[2]{0}', space=sflag, size = 0x8, scoped, tag = 'scoped memory for tpu_custom_call.1']
    #allocation8 [shape = 'u8[65536]{0}', space=vmem, size = 0x10000, scoped, tag = 'input window, operand 6']
    #allocation9 [shape = 'u8[131072]{0}', space=vmem, size = 0x20000, scoped, tag = 'input window, operand 8']
    #allocation10 [shape = 's32[2]{0}', space=sflag, size = 0x8, scoped, tag = 'scoped memory for tpu_custom_call.1']
    #allocation11 [shape = 'u8[65536]{0}', space=vmem, size = 0x10000, scoped, tag = 'output window, operand 0']
    %16 = vsyncpa [#allocation4], 0
    %17 = vsyncpa [#allocation7], 0
    %s18 = scalar_lea.sflag [#allocation7], 1
    %19 = vsyncpa %s18, 0
    %20 = vsyncpa [#allocation10], 0
    %s21 = scalar_lea.sflag [#allocation10], 1
    %22 = vsyncpa %s21, 0
    %23 = vsyncpa [#allocation5], 0
    %s24 = scalar_lea.sflag [#allocation5], 1
    %25 = vsyncpa %s24, 0
    loop: start=0, step=1, limit=6
    $region2: #{tpu_custom_call.1} parent=1 // loop_pre_header
      _
    $region3: #{tpu_custom_call.1} parent=1 // loop_header
      %s27 = sphi 0, %s31
      %p28 = scmp.ge.s32.totalorder %s27, 6
      %s34 = sphi 0, %s46
      %s35 = sphi 0, %s42
      %s36 = sphi 0, %s34
      %s37 = sphi 0, %s35
      %s38 = sphi 0, %s36
      %s39 = sphi 0, %s37
      %s49 = sphi 0, %s51
      %s52 = sphi 0, %s49
      %s53 = sphi 0, %s52
      %s69 = sphi 0, %s53
      %s73 = sphi 0, %s73
      %s75 = sphi 0, %s73
      %s76 = sphi 0, %s75
      %s90 = sphi 0, %s76
      %s94 = sphi 0, %s94
      %s96 = sphi 0, %s94
      %s97 = sphi 0, %s96
      %s111 = sphi 0, %s97
      %s115 = sphi 0, %s115
      %s117 = sphi 0, %s115
      %s118 = sphi 0, %s117
      %s132 = sphi 0, %s118
      %s136 = sphi 0, %s136
      %s138 = sphi 0, %s136
      %s139 = sphi 0, %s138
      %s153 = sphi 0, %s139
      %s159 = sphi 0, %s161
      %s162 = sphi 0, %s159
      %s163 = sphi 0, %s162
      %s179 = sphi 0, %s163
      %s185 = sphi 0, %s187
      %s188 = sphi 0, %s185
      %s189 = sphi 0, %s188
      %s205 = sphi 0, %s189
      %s211 = sphi 0, %s213
      %s214 = sphi 0, %s211
      %s215 = sphi 0, %s214
      %s231 = sphi 0, %s215
      %s237 = sphi 0, %s239
      %s240 = sphi 0, %s237
      %s241 = sphi 0, %s240
      %s257 = sphi 0, %s241
      %s263 = sphi 0, %s265
      %s266 = sphi 0, %s263
      %s267 = sphi 0, %s266
      %s283 = sphi 0, %s267
      %s289 = sphi 0, %s291
      %s292 = sphi 0, %s289
      %s293 = sphi 0, %s292
      %s309 = sphi 0, %s293
      %s315 = sphi 0, %s317
      %s318 = sphi 0, %s315
      %s319 = sphi 0, %s318
      %s335 = sphi 0, %s319
    $region4: #{tpu_custom_call.1} parent=1 // loop_header_branch
      %30 = sbr.rel (%p28) target = $region8
    $region5: #{tpu_custom_call.1} parent=1 // loop_body
      %s32 = ssub.s32 %s27, 1
      %s33 = ssub.s32 %s27, 2
      %s40 = sadd.s32 1, %s35
      %p41 = scmp.ge.s32.totalorder %s40, 2
      %s42 = scalar_select %p41, 0, %s40
      %s43 = sadd.s32 1, %s34
      %s44 = scalar_select %p41, %s43, %s34
      %p45 = scmp.ge.s32.totalorder %s44, 2
      %s46 = scalar_select %p45, 0, %s44
      %s47 = ssub.s32 %s34, %s46
      %p48 = scmp.eq.s32.totalorder %s47, 0
      %s50 = sadd.s32 %s49, 1
      %s51 = scalar_select %p48, %s49, %s50
      %p54 = pneg %p48
      %p55 = scmp.eq.s32.totalorder %s27, 3
      %p56 = por %p54, %p55
      %p57 = scmp.ne.s32.totalorder %s49, %s52
      %p58 = scmp.eq.s32.totalorder %s27, 0
      %p59 = por %p57, %p58
      %p60 = scmp.ne.s32.totalorder %s49, %s52
      %p61 = scmp.eq.s32.totalorder %s32, 3
      %p62 = por %p60, %p61
      %p63 = scmp.ne.s32.totalorder %s52, %s53
      %p64 = scmp.eq.s32.totalorder %s32, 0
      %p65 = por %p63, %p64
      %p66 = scmp.ne.s32.totalorder %s52, %s53
      %p67 = scmp.eq.s32.totalorder %s33, 3
      %p68 = por %p66, %p67
      %p70 = scmp.ne.s32.totalorder %s53, %s69
      %p71 = scmp.eq.s32.totalorder %s33, 0
      %p72 = por %p70, %p71
      %s74 = sadd.s32 %s73, 1
      %p77 = scmp.eq.s32.totalorder %s27, 3
      %p78 = scmp.ne.s32.totalorder %s73, %s75
      %p79 = scmp.eq.s32.totalorder %s27, 0
      %p80 = por %p78, %p79
      %p81 = scmp.ne.s32.totalorder %s73, %s75
      %p82 = scmp.eq.s32.totalorder %s32, 3
      %p83 = por %p81, %p82
      %p84 = scmp.ne.s32.totalorder %s75, %s76
      %p85 = scmp.eq.s32.totalorder %s32, 0
      %p86 = por %p84, %p85
      %p87 = scmp.ne.s32.totalorder %s75, %s76
      %p88 = scmp.eq.s32.totalorder %s33, 3
      %p89 = por %p87, %p88
      %p91 = scmp.ne.s32.totalorder %s76, %s90
      %p92 = scmp.eq.s32.totalorder %s33, 0
      %p93 = por %p91, %p92
      %s95 = sadd.s32 %s94, 1
      %p98 = scmp.eq.s32.totalorder %s27, 3
      %p99 = scmp.ne.s32.totalorder %s94, %s96
      %p100 = scmp.eq.s32.totalorder %s27, 0
      %p101 = por %p99, %p100
      %p102 = scmp.ne.s32.totalorder %s94, %s96
      %p103 = scmp.eq.s32.totalorder %s32, 3
      %p104 = por %p102, %p103
      %p105 = scmp.ne.s32.totalorder %s96, %s97
      %p106 = scmp.eq.s32.totalorder %s32, 0
      %p107 = por %p105, %p106
      %p108 = scmp.ne.s32.totalorder %s96, %s97
      %p109 = scmp.eq.s32.totalorder %s33, 3
      %p110 = por %p108, %p109
      %p112 = scmp.ne.s32.totalorder %s97, %s111
      %p113 = scmp.eq.s32.totalorder %s33, 0
      %p114 = por %p112, %p113
      %s116 = sadd.s32 %s115, 1
      %p119 = scmp.eq.s32.totalorder %s27, 3
      %p120 = scmp.ne.s32.totalorder %s115, %s117
      %p121 = scmp.eq.s32.totalorder %s27, 0
      %p122 = por %p120, %p121
      %p123 = scmp.ne.s32.totalorder %s115, %s117
      %p124 = scmp.eq.s32.totalorder %s32, 3
      %p125 = por %p123, %p124
      %p126 = scmp.ne.s32.totalorder %s117, %s118
      %p127 = scmp.eq.s32.totalorder %s32, 0
      %p128 = por %p126, %p127
      %p129 = scmp.ne.s32.totalorder %s117, %s118
      %p130 = scmp.eq.s32.totalorder %s33, 3
      %p131 = por %p129, %p130
      %p133 = scmp.ne.s32.totalorder %s118, %s132
      %p134 = scmp.eq.s32.totalorder %s33, 0
      %p135 = por %p133, %p134
      %s137 = sadd.s32 %s136, 1
      %p140 = scmp.eq.s32.totalorder %s27, 3
      %p141 = scmp.ne.s32.totalorder %s136, %s138
      %p142 = scmp.eq.s32.totalorder %s27, 0
      %p143 = por %p141, %p142
      %p144 = scmp.ne.s32.totalorder %s136, %s138
      %p145 = scmp.eq.s32.totalorder %s32, 3
      %p146 = por %p144, %p145
      %p147 = scmp.ne.s32.totalorder %s138, %s139
      %p148 = scmp.eq.s32.totalorder %s32, 0
      %p149 = por %p147, %p148
      %p150 = scmp.ne.s32.totalorder %s138, %s139
      %p151 = scmp.eq.s32.totalorder %s33, 3
      %p152 = por %p150, %p151
      %p154 = scmp.ne.s32.totalorder %s139, %s153
      %p155 = scmp.eq.s32.totalorder %s33, 0
      %p156 = por %p154, %p155
      %s157 = ssub.s32 %s35, %s42
      %p158 = scmp.eq.s32.totalorder %s157, 0
      %s160 = sadd.s32 %s159, 1
      %s161 = scalar_select %p158, %s159, %s160
      %p164 = pneg %p158
      %p165 = scmp.eq.s32.totalorder %s27, 3
      %p166 = por %p164, %p165
      %p167 = scmp.ne.s32.totalorder %s159, %s162
      %p168 = scmp.eq.s32.totalorder %s27, 0
      %p169 = por %p167, %p168
      %p170 = scmp.ne.s32.totalorder %s159, %s162
      %p171 = scmp.eq.s32.totalorder %s32, 3
      %p172 = por %p170, %p171
      %p173 = scmp.ne.s32.totalorder %s162, %s163
      %p174 = scmp.eq.s32.totalorder %s32, 0
      %p175 = por %p173, %p174
      %p176 = scmp.ne.s32.totalorder %s162, %s163
      %p177 = scmp.eq.s32.totalorder %s33, 3
      %p178 = por %p176, %p177
      %p180 = scmp.ne.s32.totalorder %s163, %s179
      %p181 = scmp.eq.s32.totalorder %s33, 0
      %p182 = por %p180, %p181
      %s183 = ssub.s32 %s35, %s42
      %p184 = scmp.eq.s32.totalorder %s183, 0
      %s186 = sadd.s32 %s185, 1
      %s187 = scalar_select %p184, %s185, %s186
      %p190 = pneg %p184
      %p191 = scmp.eq.s32.totalorder %s27, 3
      %p192 = por %p190, %p191
      %p193 = scmp.ne.s32.totalorder %s185, %s188
      %p194 = scmp.eq.s32.totalorder %s27, 0
      %p195 = por %p193, %p194
      %p196 = scmp.ne.s32.totalorder %s185, %s188
      %p197 = scmp.eq.s32.totalorder %s32, 3
      %p198 = por %p196, %p197
      %p199 = scmp.ne.s32.totalorder %s188, %s189
      %p200 = scmp.eq.s32.totalorder %s32, 0
      %p201 = por %p199, %p200
      %p202 = scmp.ne.s32.totalorder %s188, %s189
      %p203 = scmp.eq.s32.totalorder %s33, 3
      %p204 = por %p202, %p203
      %p206 = scmp.ne.s32.totalorder %s189, %s205
      %p207 = scmp.eq.s32.totalorder %s33, 0
      %p208 = por %p206, %p207
      %s209 = ssub.s32 %s35, %s42
      %p210 = scmp.eq.s32.totalorder %s209, 0
      %s212 = sadd.s32 %s211, 1
      %s213 = scalar_select %p210, %s211, %s212
      %p216 = pneg %p210
      %p217 = scmp.eq.s32.totalorder %s27, 3
      %p218 = por %p216, %p217
      %p219 = scmp.ne.s32.totalorder %s211, %s214
      %p220 = scmp.eq.s32.totalorder %s27, 0
      %p221 = por %p219, %p220
      %p222 = scmp.ne.s32.totalorder %s211, %s214
      %p223 = scmp.eq.s32.totalorder %s32, 3
      %p224 = por %p222, %p223
      %p225 = scmp.ne.s32.totalorder %s214, %s215
      %p226 = scmp.eq.s32.totalorder %s32, 0
      %p227 = por %p225, %p226
      %p228 = scmp.ne.s32.totalorder %s214, %s215
      %p229 = scmp.eq.s32.totalorder %s33, 3
      %p230 = por %p228, %p229
      %p232 = scmp.ne.s32.totalorder %s215, %s231
      %p233 = scmp.eq.s32.totalorder %s33, 0
      %p234 = por %p232, %p233
      %s235 = ssub.s32 %s35, %s42
      %p236 = scmp.eq.s32.totalorder %s235, 0
      %s238 = sadd.s32 %s237, 1
      %s239 = scalar_select %p236, %s237, %s238
      %p242 = pneg %p236
      %p243 = scmp.eq.s32.totalorder %s27, 3
      %p244 = por %p242, %p243
      %p245 = scmp.ne.s32.totalorder %s237, %s240
      %p246 = scmp.eq.s32.totalorder %s27, 0
      %p247 = por %p245, %p246
      %p248 = scmp.ne.s32.totalorder %s237, %s240
      %p249 = scmp.eq.s32.totalorder %s32, 3
      %p250 = por %p248, %p249
      %p251 = scmp.ne.s32.totalorder %s240, %s241
      %p252 = scmp.eq.s32.totalorder %s32, 0
      %p253 = por %p251, %p252
      %p254 = scmp.ne.s32.totalorder %s240, %s241
      %p255 = scmp.eq.s32.totalorder %s33, 3
      %p256 = por %p254, %p255
      %p258 = scmp.ne.s32.totalorder %s241, %s257
      %p259 = scmp.eq.s32.totalorder %s33, 0
      %p260 = por %p258, %p259
      %s261 = ssub.s32 %s35, %s42
      %p262 = scmp.eq.s32.totalorder %s261, 0
      %s264 = sadd.s32 %s263, 1
      %s265 = scalar_select %p262, %s263, %s264
      %p268 = pneg %p262
      %p269 = scmp.eq.s32.totalorder %s27, 3
      %p270 = por %p268, %p269
      %p271 = scmp.ne.s32.totalorder %s263, %s266
      %p272 = scmp.eq.s32.totalorder %s27, 0
      %p273 = por %p271, %p272
      %p274 = scmp.ne.s32.totalorder %s263, %s266
      %p275 = scmp.eq.s32.totalorder %s32, 3
      %p276 = por %p274, %p275
      %p277 = scmp.ne.s32.totalorder %s266, %s267
      %p278 = scmp.eq.s32.totalorder %s32, 0
      %p279 = por %p277, %p278
      %p280 = scmp.ne.s32.totalorder %s266, %s267
      %p281 = scmp.eq.s32.totalorder %s33, 3
      %p282 = por %p280, %p281
      %p284 = scmp.ne.s32.totalorder %s267, %s283
      %p285 = scmp.eq.s32.totalorder %s33, 0
      %p286 = por %p284, %p285
      %s287 = ssub.s32 %s35, %s42
      %p288 = scmp.eq.s32.totalorder %s287, 0
      %s290 = sadd.s32 %s289, 1
      %s291 = scalar_select %p288, %s289, %s290
      %p294 = pneg %p288
      %p295 = scmp.eq.s32.totalorder %s27, 3
      %p296 = por %p294, %p295
      %p297 = scmp.ne.s32.totalorder %s289, %s292
      %p298 = scmp.eq.s32.totalorder %s27, 0
      %p299 = por %p297, %p298
      %p300 = scmp.ne.s32.totalorder %s289, %s292
      %p301 = scmp.eq.s32.totalorder %s32, 3
      %p302 = por %p300, %p301
      %p303 = scmp.ne.s32.totalorder %s292, %s293
      %p304 = scmp.eq.s32.totalorder %s32, 0
      %p305 = por %p303, %p304
      %p306 = scmp.ne.s32.totalorder %s292, %s293
      %p307 = scmp.eq.s32.totalorder %s33, 3
      %p308 = por %p306, %p307
      %p310 = scmp.ne.s32.totalorder %s293, %s309
      %p311 = scmp.eq.s32.totalorder %s33, 0
      %p312 = por %p310, %p311
      %s313 = ssub.s32 %s34, %s46
      %p314 = scmp.eq.s32.totalorder %s313, 0
      %s316 = sadd.s32 %s315, 1
      %s317 = scalar_select %p314, %s315, %s316
      %p320 = pneg %p314
      %p321 = scmp.eq.s32.totalorder %s27, 3
      %p322 = por %p320, %p321
      %p323 = scmp.ne.s32.totalorder %s315, %s318
      %p324 = scmp.eq.s32.totalorder %s27, 0
      %p325 = por %p323, %p324
      %p326 = scmp.ne.s32.totalorder %s315, %s318
      %p327 = scmp.eq.s32.totalorder %s32, 3
      %p328 = por %p326, %p327
      %p329 = scmp.ne.s32.totalorder %s318, %s319
      %p330 = scmp.eq.s32.totalorder %s32, 0
      %p331 = por %p329, %p330
      %p332 = scmp.ne.s32.totalorder %s318, %s319
      %p333 = scmp.eq.s32.totalorder %s33, 3
      %p334 = por %p332, %p333
      %p336 = scmp.ne.s32.totalorder %s319, %s335
      %p337 = scmp.eq.s32.totalorder %s33, 0
      %p338 = por %p336, %p337
      %p339 = scmp.le.s32.totalorder 1, %s27
      %p340 = scmp.lt.s32.totalorder %s27, 5
      %p341 = pnand %p339, %p340
      %p342 = pneg %p341
      // Predicated region
      $region9: #{tpu_custom_call.1} parent=5 // pred_check
        _
      $region10: #{tpu_custom_call.1} parent=5 // pred_check_branch
        %344 = sbr.rel (%p341) target = $region12
      $region11: #{tpu_custom_call.1} parent=5 // pred_region
        %s345 = ssub.s32 %s27, 1
        // Predicated region
        $region13: #{tpu_custom_call.1} parent=11 // pred_check
          %p346 = pneg %p86
        $region14: #{tpu_custom_call.1} parent=11 // pred_check_branch
          %348 = sbr.rel (%p346) target = $region16
        $region15: #{tpu_custom_call.1} parent=11 // pred_region
          _
        $region16: #{tpu_custom_call.1} parent=11 // pred_fallthru
          _
        // Predicated region
        $region17: #{tpu_custom_call.1} parent=11 // pred_check
          %p349 = pneg %p107
        $region18: #{tpu_custom_call.1} parent=11 // pred_check_branch
          %351 = sbr.rel (%p349) target = $region20
        $region19: #{tpu_custom_call.1} parent=11 // pred_region
          _
        $region20: #{tpu_custom_call.1} parent=11 // pred_fallthru
          _
        // Predicated region
        $region21: #{tpu_custom_call.1} parent=11 // pred_check
          %p352 = pneg %p128
        $region22: #{tpu_custom_call.1} parent=11 // pred_check_branch
          %354 = sbr.rel (%p352) target = $region24
        $region23: #{tpu_custom_call.1} parent=11 // pred_region
          %s356 = ssub.s32 768, 768
          %357 = vsyncadd [#allocation4], %s356
          %s358 = sshll.u32 [#allocation3], 4
          %s359 = int_to_ptr.vmem [resolvable:$true] %s358
          %364 = dma.hbm_to_vmem [thread:$0]  %s3, 768, %s359, [#allocation4], 64, 64, 4
        $region24: #{tpu_custom_call.1} parent=11 // pred_fallthru
          _
        // Predicated region
        $region25: #{tpu_custom_call.1} parent=11 // pred_check
          %p365 = pneg %p149
        $region26: #{tpu_custom_call.1} parent=11 // pred_check_branch
          %367 = sbr.rel (%p365) target = $region28
        $region27: #{tpu_custom_call.1} parent=11 // pred_region
          _
        $region28: #{tpu_custom_call.1} parent=11 // pred_fallthru
          _
      $region12: #{tpu_custom_call.1} parent=5 // pred_fallthru
        _
      %p368 = scmp.lt.s32.totalorder %s27, 4
      // Predicated region
      $region29: #{tpu_custom_call.1} parent=5 // pred_check
        %p369 = pneg %p368
      $region30: #{tpu_custom_call.1} parent=5 // pred_check_branch
        %371 = sbr.rel (%p369) target = $region32
      $region31: #{tpu_custom_call.1} parent=5 // pred_region
        // Predicated region
        $region33: #{tpu_custom_call.1} parent=31 // pred_check
          %p372 = pneg %p59
        $region34: #{tpu_custom_call.1} parent=31 // pred_check_branch
          %374 = sbr.rel (%p372) target = $region36
        $region35: #{tpu_custom_call.1} parent=31 // pred_region
          %s375 = smul.u32 4, %s34
          %p376 = scmp.lt.s32.totalorder %s375, 7
          %s377 = scalar_select %p376, %s375, 7
          %s378 = smul.addr %s377, 3
          %s379 = smul.addr %s378, 8
          %s380 = scalar_lea.vmem %s0, %s379
          %s381 = smul.u32 4, %s34
        $region36: #{tpu_custom_call.1} parent=31 // pred_fallthru
          _
        // Predicated region
        $region37: #{tpu_custom_call.1} parent=31 // pred_check
          %p382 = pneg %p169
        $region38: #{tpu_custom_call.1} parent=31 // pred_check_branch
          %384 = sbr.rel (%p382) target = $region40
        $region39: #{tpu_custom_call.1} parent=31 // pred_region
          %s385 = sand.u32 %s27, 1
          %s386 = scalar_lea.sflag [#allocation7], %s385
          %s387 = sand.u32 %s159, 1
          %s388 = smul.addr %s387, 192
          %s389 = scalar_lea.vmem [#allocation6], %s388
          %s391 = ssub.s32 3072, 3072
          %392 = vsyncadd %s386, %s391
          %s393 = smul.addr %s35, 48
          %s394 = smul.addr %s393, 64
          %s395 = scalar_lea.hbm %s5, %s394
          %s396 = sshll.u32 %s389, 4
          %s397 = int_to_ptr.vmem [resolvable:$true] %s396
          %402 = dma.hbm_to_vmem [thread:$0]  %s395, 3072, %s397, %s386, 192, 192, 12
        $region40: #{tpu_custom_call.1} parent=31 // pred_fallthru
          _
        // Predicated region
        $region41: #{tpu_custom_call.1} parent=31 // pred_check
          %p403 = pneg %p195
        $region42: #{tpu_custom_call.1} parent=31 // pred_check_branch
          %405 = sbr.rel (%p403) target = $region44
        $region43: #{tpu_custom_call.1} parent=31 // pred_region
          %s406 = sand.u32 %s27, 1
          %s407 = scalar_lea.sflag [#allocation7], %s406
          %s408 = sand.u32 %s185, 1
          %s409 = smul.addr %s408, 64
          %s410 = scalar_lea.vmem [#allocation8], %s409
          %s412 = ssub.s32 1024, 1024
          %413 = vsyncadd %s407, %s412
          %s414 = smul.addr %s35, 16
          %s415 = smul.addr %s414, 64
          %s416 = scalar_lea.hbm %s6, %s415
          %s417 = sshll.u32 %s410, 4
          %s418 = int_to_ptr.vmem [resolvable:$true] %s417
          %423 = dma.hbm_to_vmem [thread:$0]  %s416, 1024, %s418, %s407, 64, 64, 4
        $region44: #{tpu_custom_call.1} parent=31 // pred_fallthru
          _
        // Predicated region
        $region45: #{tpu_custom_call.1} parent=31 // pred_check
          %p424 = pneg %p221
        $region46: #{tpu_custom_call.1} parent=31 // pred_check_branch
          %426 = sbr.rel (%p424) target = $region48
        $region47: #{tpu_custom_call.1} parent=31 // pred_region
          %p427 = scmp.lt.s32.totalorder %s35, 1
          %s428 = scalar_select %p427, %s35, 1
          %s429 = smul.addr %s428, 32
          %s430 = smul.addr %s429, 4
          %s431 = scalar_lea.vmem %s7, %s430
        $region48: #{tpu_custom_call.1} parent=31 // pred_fallthru
          _
        // Predicated region
        $region49: #{tpu_custom_call.1} parent=31 // pred_check
          %p432 = pneg %p247
        $region50: #{tpu_custom_call.1} parent=31 // pred_check_branch
          %434 = sbr.rel (%p432) target = $region52
        $region51: #{tpu_custom_call.1} parent=31 // pred_region
          %s435 = sand.u32 %s237, 1
          %s436 = scalar_lea.sflag [#allocation10], %s435
          %s437 = sand.u32 %s237, 1
          %s438 = smul.addr %s437, 128
          %s439 = scalar_lea.vmem [#allocation9], %s438
          %s441 = ssub.s32 2048, 2048
          %442 = vsyncadd %s436, %s441
          %s443 = smul.addr %s35, 32
          %s444 = smul.addr %s443, 64
          %s445 = scalar_lea.hbm %s8, %s444
          %s446 = sshll.u32 %s439, 4
          %s447 = int_to_ptr.vmem [resolvable:$true] %s446
          %452 = dma.hbm_to_vmem [thread:$0]  %s445, 2048, %s447, %s436, 64, 64, 4
        $region52: #{tpu_custom_call.1} parent=31 // pred_fallthru
          _
        // Predicated region
        $region53: #{tpu_custom_call.1} parent=31 // pred_check
          %p453 = pneg %p273
        $region54: #{tpu_custom_call.1} parent=31 // pred_check_branch
          %455 = sbr.rel (%p453) target = $region56
        $region55: #{tpu_custom_call.1} parent=31 // pred_region
          %p456 = scmp.lt.s32.totalorder %s35, 1
          %s457 = scalar_select %p456, %s35, 1
          %s458 = smul.addr %s457, 2
          %s459 = scalar_lea.vmem %s9, %s458
        $region56: #{tpu_custom_call.1} parent=31 // pred_fallthru
          _
        // Predicated region
        $region57: #{tpu_custom_call.1} parent=31 // pred_check
          %p460 = pneg %p299
        $region58: #{tpu_custom_call.1} parent=31 // pred_check_branch
          %462 = sbr.rel (%p460) target = $region60
        $region59: #{tpu_custom_call.1} parent=31 // pred_region
          %p463 = scmp.lt.s32.totalorder %s35, 1
          %s464 = scalar_select %p463, %s35, 1
          %s465 = smul.addr %s464, 2
          %s466 = smul.addr %s465, 8
          %s467 = scalar_lea.vmem %s10, %s466
        $region60: #{tpu_custom_call.1} parent=31 // pred_fallthru
          _
      $region32: #{tpu_custom_call.1} parent=5 // pred_fallthru
        _
      %p468 = scmp.le.s32.totalorder 1, %s27
      %p469 = scmp.lt.s32.totalorder %s27, 5
      %p470 = pnand %p468, %p469
      %p471 = pneg %p470
      // Predicated region
      $region61: #{tpu_custom_call.1} parent=5 // pred_check
        _
      $region62: #{tpu_custom_call.1} parent=5 // pred_check_branch
        %473 = sbr.rel (%p470) target = $region64
      $region63: #{tpu_custom_call.1} parent=5 // pred_region
        %s474 = ssub.s32 %s27, 1
        // Predicated region
        $region65: #{tpu_custom_call.1} parent=63 // pred_check
          %p475 = pneg %p128
        $region66: #{tpu_custom_call.1} parent=63 // pred_check_branch
          %477 = sbr.rel (%p475) target = $region68
        $region67: #{tpu_custom_call.1} parent=63 // pred_region
          %478 = dma.done [#allocation4], 768
        $region68: #{tpu_custom_call.1} parent=63 // pred_fallthru
          _
        %s479 = sand.u32 %s32, 1
        %s480 = scalar_lea.sflag [#allocation7], %s479
        %s481 = sand.u32 %s162, 1
        %s482 = smul.addr %s481, 192
        %s483 = scalar_lea.vmem [#allocation6], %s482
        // Predicated region
        $region69: #{tpu_custom_call.1} parent=63 // pred_check
          %p484 = pneg %p175
        $region70: #{tpu_custom_call.1} parent=63 // pred_check_branch
          %486 = sbr.rel (%p484) target = $region72
        $region71: #{tpu_custom_call.1} parent=63 // pred_region
          %487 = dma.done %s480, 3072
        $region72: #{tpu_custom_call.1} parent=63 // pred_fallthru
          _
        %s488 = sand.u32 %s32, 1
        %s489 = scalar_lea.sflag [#allocation7], %s488
        %s490 = sand.u32 %s188, 1
        %s491 = smul.addr %s490, 64
        %s492 = scalar_lea.vmem [#allocation8], %s491
        // Predicated region
        $region73: #{tpu_custom_call.1} parent=63 // pred_check
          %p493 = pneg %p201
        $region74: #{tpu_custom_call.1} parent=63 // pred_check_branch
          %495 = sbr.rel (%p493) target = $region76
        $region75: #{tpu_custom_call.1} parent=63 // pred_region
          %496 = dma.done %s489, 1024
        $region76: #{tpu_custom_call.1} parent=63 // pred_fallthru
          _
        %s497 = sand.u32 %s240, 1
        %s498 = scalar_lea.sflag [#allocation10], %s497
        %s499 = sand.u32 %s240, 1
        %s500 = smul.addr %s499, 128
        %s501 = scalar_lea.vmem [#allocation9], %s500
        // Predicated region
        $region77: #{tpu_custom_call.1} parent=63 // pred_check
          %p502 = pneg %p253
        $region78: #{tpu_custom_call.1} parent=63 // pred_check_branch
          %504 = sbr.rel (%p502) target = $region80
        $region79: #{tpu_custom_call.1} parent=63 // pred_region
          %505 = dma.done %s498, 2048
        $region80: #{tpu_custom_call.1} parent=63 // pred_fallthru
          _
        %s506 = smul.u32 4, %s36
        %p507 = scmp.lt.s32.totalorder %s506, 7
        %s508 = scalar_select %p507, %s506, 7
        %s509 = smul.addr %s508, 3
        %s510 = smul.addr %s509, 8
        %s511 = scalar_lea.vmem %s0, %s510
        %p512 = pneg %p65
        %p513 = pneg %p62
        %p514 = pneg %p86
        %p515 = pneg %p83
        %p516 = pneg %p107
        %p517 = pneg %p104
        %p518 = pneg %p128
        %p519 = pneg %p125
        %p520 = pneg %p149
        %p521 = pneg %p146
        %s522 = sand.u32 %s32, 1
        %s523 = scalar_lea.sflag [#allocation7], %s522
        %s524 = sand.u32 %s162, 1
        %s525 = smul.addr %s524, 192
        %s526 = scalar_lea.vmem [#allocation6], %s525
        %p527 = pneg %p175
        %p528 = pneg %p172
        %s529 = sand.u32 %s32, 1
        %s530 = scalar_lea.sflag [#allocation7], %s529
        %s531 = sand.u32 %s188, 1
        %s532 = smul.addr %s531, 64
        %s533 = scalar_lea.vmem [#allocation8], %s532
        %p534 = pneg %p201
        %p535 = pneg %p198
        %p536 = scmp.lt.s32.totalorder %s37, 1
        %s537 = scalar_select %p536, %s37, 1
        %s538 = smul.addr %s537, 32
        %s539 = smul.addr %s538, 4
        %s540 = scalar_lea.vmem %s7, %s539
        %p541 = pneg %p227
        %p542 = pneg %p224
        %s543 = sand.u32 %s240, 1
        %s544 = scalar_lea.sflag [#allocation10], %s543
        %s545 = sand.u32 %s240, 1
        %s546 = smul.addr %s545, 128
        %s547 = scalar_lea.vmem [#allocation9], %s546
        %p548 = pneg %p253
        %p549 = pneg %p250
        %p550 = scmp.lt.s32.totalorder %s37, 1
        %s551 = scalar_select %p550, %s37, 1
        %s552 = smul.addr %s551, 2
        %s553 = scalar_lea.vmem %s9, %s552
        %p554 = pneg %p279
        %p555 = pneg %p276
        %p556 = scmp.lt.s32.totalorder %s37, 1
        %s557 = scalar_select %p556, %s37, 1
        %s558 = smul.addr %s557, 2
        %s559 = smul.addr %s558, 8
        %s560 = scalar_lea.vmem %s10, %s559
        %p561 = pneg %p305
        %p562 = pneg %p302
        %p563 = pneg %p331
        %p564 = pneg %p328
        %s565 = sand.u32 %s318, 1
        %s566 = scalar_lea.sflag [#allocation5], %s565
        %s567 = sand.u32 %s318, 1
        %s568 = smul.addr %s567, 64
        %s569 = scalar_lea.vmem [#allocation11], %s568
        %s570 = smul.u32 4, %s36
        %p571 = scmp.lt.s32.totalorder %s570, 7
        %s572 = scalar_select %p571, %s570, 7
        %s573 = smul.addr %s572, 3
        %s574 = smul.addr %s573, 8
        %s575 = scalar_lea.vmem %s0, %s574
        %s576 = smul.u32 4, %s36
        %p577 = scmp.lt.s32.totalorder %s37, 1
        %s578 = scalar_select %p577, %s37, 1
        %s579 = smul.addr %s578, 32
        %s580 = smul.addr %s579, 4
        %s581 = scalar_lea.vmem %s7, %s580
        %p582 = scmp.lt.s32.totalorder %s37, 1
        %s583 = scalar_select %p582, %s37, 1
        %s584 = smul.addr %s583, 2
        %s585 = scalar_lea.vmem %s9, %s584
        %p586 = scmp.lt.s32.totalorder %s37, 1
        %s587 = scalar_select %p586, %s37, 1
        %s588 = smul.addr %s587, 2
        %s589 = smul.addr %s588, 8
        %s590 = scalar_lea.vmem %s10, %s589
        %s591 = smul.u32 8, %s36
        %p593 = scmp.eq.s32.totalorder %s37, 0
        // Predicated region
        $region81: #{tpu_custom_call.1} parent=63 // pred_check
          %p594 = pneg %p593
        $region82: #{tpu_custom_call.1} parent=63 // pred_check_branch
          %596 = sbr.rel (%p594) target = $region84
        $region83: #{tpu_custom_call.1} parent=63 // pred_region
          %v597 = vld [vmem:[%s575] sm:$0xff]
          %v598 = vld [vmem:[%s575 + $0x8] sm:$0xff]
          %v599 = vld [vmem:[%s575 + $0x10] sm:$0xf]
          %v600 = vld [vmem:[%s575 + $0x18] sm:$0xff]
          %v601 = vld [vmem:[%s575 + $0x20] sm:$0xff]
          %v602 = vld [vmem:[%s575 + $0x28] sm:$0xf]
          %v603 = vld [vmem:[%s575 + $0x30] sm:$0xff]
          %v604 = vld [vmem:[%s575 + $0x38] sm:$0xff]
          %v605 = vld [vmem:[%s575 + $0x40] sm:$0xf]
          %v606 = vld [vmem:[%s575 + $0x48] sm:$0xff]
          %v607 = vld [vmem:[%s575 + $0x50] sm:$0xff]
          %v608 = vld [vmem:[%s575 + $0x58] sm:$0xf]
          %v609 = vld [vmem:[%s2] sm:$0x1]
          %v622 = vcombine.high %v597, %v597
          %v624 = vunpack.c.l.s4 1983009808
          %v625 = vunpack.c.0.s8 %v624
          %v626 = vlaneseq
          %v627 = vshrl.u32 %v626, 7
          %v628 = vsub.s32 %v625, %v627
          %v629 = vrot.slane %v597, %v628
          %v631 = vunpack.c.l.s4 1983009808
          %v632 = vunpack.c.0.s8 %v631
          %v633 = vlaneseq
          %v634 = vshrl.u32 %v633, 7
          %v635 = vsub.s32 %v632, %v634
          %v636 = vrot.slane %v622, %v635
          %v637 = vcombine.high %v629, %v629
          %v638 = vcombine.high %v636, %v636
          %v639 = vcombine.high %v598, %v598
          %v641 = vunpack.c.l.s4 1983009808
          %v642 = vunpack.c.0.s8 %v641
          %v643 = vlaneseq
          %v644 = vshrl.u32 %v643, 7
          %v645 = vsub.s32 %v642, %v644
          %v646 = vrot.slane %v598, %v645
          %v648 = vunpack.c.l.s4 1983009808
          %v649 = vunpack.c.0.s8 %v648
          %v650 = vlaneseq
          %v651 = vshrl.u32 %v650, 7
          %v652 = vsub.s32 %v649, %v651
          %v653 = vrot.slane %v639, %v652
          %v654 = vcombine.high %v646, %v646
          %v655 = vcombine.high %v653, %v653
          %v657 = vunpack.c.l.s4 1983009808
          %v658 = vunpack.c.0.s8 %v657
          %v659 = vlaneseq
          %v660 = vshrl.u32 %v659, 7
          %v661 = vsub.s32 %v658, %v660
          %v662 = vrot.slane %v599, %v661
          %v663 = vcombine.high %v600, %v600
          %v665 = vunpack.c.l.s4 1983009808
          %v666 = vunpack.c.0.s8 %v665
          %v667 = vlaneseq
          %v668 = vshrl.u32 %v667, 7
          %v669 = vsub.s32 %v666, %v668
          %v670 = vrot.slane %v600, %v669
          %v672 = vunpack.c.l.s4 1983009808
          %v673 = vunpack.c.0.s8 %v672
          %v674 = vlaneseq
          %v675 = vshrl.u32 %v674, 7
          %v676 = vsub.s32 %v673, %v675
          %v677 = vrot.slane %v663, %v676
          %v678 = vcombine.high %v670, %v670
          %v679 = vcombine.high %v677, %v677
          %v680 = vcombine.high %v601, %v601
          %v682 = vunpack.c.l.s4 1983009808
          %v683 = vunpack.c.0.s8 %v682
          %v684 = vlaneseq
          %v685 = vshrl.u32 %v684, 7
          %v686 = vsub.s32 %v683, %v685
          %v687 = vrot.slane %v601, %v686
          %v689 = vunpack.c.l.s4 1983009808
          %v690 = vunpack.c.0.s8 %v689
          %v691 = vlaneseq
          %v692 = vshrl.u32 %v691, 7
          %v693 = vsub.s32 %v690, %v692
          %v694 = vrot.slane %v680, %v693
          %v695 = vcombine.high %v687, %v687
          %v696 = vcombine.high %v694, %v694
          %v698 = vunpack.c.l.s4 1983009808
          %v699 = vunpack.c.0.s8 %v698
          %v700 = vlaneseq
          %v701 = vshrl.u32 %v700, 7
          %v702 = vsub.s32 %v699, %v701
          %v703 = vrot.slane %v602, %v702
          %v704 = vcombine.high %v603, %v603
          %v706 = vunpack.c.l.s4 1983009808
          %v707 = vunpack.c.0.s8 %v706
          %v708 = vlaneseq
          %v709 = vshrl.u32 %v708, 7
          %v710 = vsub.s32 %v707, %v709
          %v711 = vrot.slane %v603, %v710
          %v713 = vunpack.c.l.s4 1983009808
          %v714 = vunpack.c.0.s8 %v713
          %v715 = vlaneseq
          %v716 = vshrl.u32 %v715, 7
          %v717 = vsub.s32 %v714, %v716
          %v718 = vrot.slane %v704, %v717
          %v719 = vcombine.high %v711, %v711
          %v720 = vcombine.high %v718, %v718
          %v721 = vcombine.high %v604, %v604
          %v723 = vunpack.c.l.s4 1983009808
          %v724 = vunpack.c.0.s8 %v723
          %v725 = vlaneseq
          %v726 = vshrl.u32 %v725, 7
          %v727 = vsub.s32 %v724, %v726
          %v728 = vrot.slane %v604, %v727
          %v730 = vunpack.c.l.s4 1983009808
          %v731 = vunpack.c.0.s8 %v730
          %v732 = vlaneseq
          %v733 = vshrl.u32 %v732, 7
          %v734 = vsub.s32 %v731, %v733
          %v735 = vrot.slane %v721, %v734
          %v736 = vcombine.high %v728, %v728
          %v737 = vcombine.high %v735, %v735
          %v739 = vunpack.c.l.s4 1983009808
          %v740 = vunpack.c.0.s8 %v739
          %v741 = vlaneseq
          %v742 = vshrl.u32 %v741, 7
          %v743 = vsub.s32 %v740, %v742
          %v744 = vrot.slane %v605, %v743
          %v745 = vcombine.high %v606, %v606
          %v747 = vunpack.c.l.s4 1983009808
          %v748 = vunpack.c.0.s8 %v747
          %v749 = vlaneseq
          %v750 = vshrl.u32 %v749, 7
          %v751 = vsub.s32 %v748, %v750
          %v752 = vrot.slane %v606, %v751
          %v754 = vunpack.c.l.s4 1983009808
          %v755 = vunpack.c.0.s8 %v754
          %v756 = vlaneseq
          %v757 = vshrl.u32 %v756, 7
          %v758 = vsub.s32 %v755, %v757
          %v759 = vrot.slane %v745, %v758
          %v760 = vcombine.high %v752, %v752
          %v761 = vcombine.high %v759, %v759
          %v762 = vcombine.high %v607, %v607
          %v764 = vunpack.c.l.s4 1983009808
          %v765 = vunpack.c.0.s8 %v764
          %v766 = vlaneseq
          %v767 = vshrl.u32 %v766, 7
          %v768 = vsub.s32 %v765, %v767
          %v769 = vrot.slane %v607, %v768
          %v771 = vunpack.c.l.s4 1983009808
          %v772 = vunpack.c.0.s8 %v771
          %v773 = vlaneseq
          %v774 = vshrl.u32 %v773, 7
          %v775 = vsub.s32 %v772, %v774
          %v776 = vrot.slane %v762, %v775
          %v777 = vcombine.high %v769, %v769
          %v778 = vcombine.high %v776, %v776
          %v780 = vunpack.c.l.s4 1983009808
          %v781 = vunpack.c.0.s8 %v780
          %v782 = vlaneseq
          %v783 = vshrl.u32 %v782, 7
          %v784 = vsub.s32 %v781, %v783
          %v785 = vrot.slane %v608, %v784
          %v786 = vcombine.low %v629, %v637
          %v787 = vcombine.low %v636, %v638
          %v789 = vunpack.c.l.s4 1983009808
          %v790 = vunpack.c.0.s8 %v789
          %v791 = vlaneseq
          %v792 = vshrl.u32 %v791, 7
          %v793 = vsub.s32 %v790, %v792
          %v794 = vrot.slane %v786, %v793
          %v796 = vunpack.c.l.s4 1983009808
          %v797 = vunpack.c.0.s8 %v796
          %v798 = vlaneseq
          %v799 = vshrl.u32 %v798, 7
          %v800 = vsub.s32 %v797, %v799
          %v801 = vrot.slane %v787, %v800
          %v802 = vcombine.low %v794, %v801
          %v803 = vcombine.low %v646, %v654
          %v804 = vcombine.low %v653, %v655
          %v806 = vunpack.c.l.s4 1983009808
          %v807 = vunpack.c.0.s8 %v806
          %v808 = vlaneseq
          %v809 = vshrl.u32 %v808, 7
          %v810 = vsub.s32 %v807, %v809
          %v811 = vrot.slane %v803, %v810
          %v813 = vunpack.c.l.s4 1983009808
          %v814 = vunpack.c.0.s8 %v813
          %v815 = vlaneseq
          %v816 = vshrl.u32 %v815, 7
          %v817 = vsub.s32 %v814, %v816
          %v818 = vrot.slane %v804, %v817
          %v819 = vcombine.low %v811, %v818
          %v820 = vcombine.low %v662, %v670
          %v821 = vcombine.low %v678, %v677
          %v823 = vunpack.c.l.s4 1983009808
          %v824 = vunpack.c.0.s8 %v823
          %v825 = vlaneseq
          %v826 = vshrl.u32 %v825, 7
          %v827 = vsub.s32 %v824, %v826
          %v828 = vrot.slane %v820, %v827
          %v830 = vunpack.c.l.s4 1983009808
          %v831 = vunpack.c.0.s8 %v830
          %v832 = vlaneseq
          %v833 = vshrl.u32 %v832, 7
          %v834 = vsub.s32 %v831, %v833
          %v835 = vrot.slane %v821, %v834
          %v836 = vcombine.low %v828, %v835
          %v837 = vcombine.low %v679, %v687
          %v838 = vcombine.low %v695, %v694
          %v840 = vunpack.c.l.s4 1983009808
          %v841 = vunpack.c.0.s8 %v840
          %v842 = vlaneseq
          %v843 = vshrl.u32 %v842, 7
          %v844 = vsub.s32 %v841, %v843
          %v845 = vrot.slane %v837, %v844
          %v847 = vunpack.c.l.s4 1983009808
          %v848 = vunpack.c.0.s8 %v847
          %v849 = vlaneseq
          %v850 = vshrl.u32 %v849, 7
          %v851 = vsub.s32 %v848, %v850
          %v852 = vrot.slane %v838, %v851
          %v853 = vcombine.low %v845, %v852
          %v854 = vcombine.low %v696, %v703
          %v855 = vcombine.low %v711, %v719
          %v857 = vunpack.c.l.s4 1983009808
          %v858 = vunpack.c.0.s8 %v857
          %v859 = vlaneseq
          %v860 = vshrl.u32 %v859, 7
          %v861 = vsub.s32 %v858, %v860
          %v862 = vrot.slane %v854, %v861
          %v864 = vunpack.c.l.s4 1983009808
          %v865 = vunpack.c.0.s8 %v864
          %v866 = vlaneseq
          %v867 = vshrl.u32 %v866, 7
          %v868 = vsub.s32 %v865, %v867
          %v869 = vrot.slane %v855, %v868
          %v870 = vcombine.low %v862, %v869
          %v871 = vcombine.low %v718, %v720
          %v872 = vcombine.low %v728, %v736
          %v874 = vunpack.c.l.s4 1983009808
          %v875 = vunpack.c.0.s8 %v874
          %v876 = vlaneseq
          %v877 = vshrl.u32 %v876, 7
          %v878 = vsub.s32 %v875, %v877
          %v879 = vrot.slane %v871, %v878
          %v881 = vunpack.c.l.s4 1983009808
          %v882 = vunpack.c.0.s8 %v881
          %v883 = vlaneseq
          %v884 = vshrl.u32 %v883, 7
          %v885 = vsub.s32 %v882, %v884
          %v886 = vrot.slane %v872, %v885
          %v887 = vcombine.low %v879, %v886
          %v888 = vcombine.low %v735, %v737
          %v889 = vcombine.low %v744, %v752
          %v891 = vunpack.c.l.s4 1983009808
          %v892 = vunpack.c.0.s8 %v891
          %v893 = vlaneseq
          %v894 = vshrl.u32 %v893, 7
          %v895 = vsub.s32 %v892, %v894
          %v896 = vrot.slane %v888, %v895
          %v898 = vunpack.c.l.s4 1983009808
          %v899 = vunpack.c.0.s8 %v898
          %v900 = vlaneseq
          %v901 = vshrl.u32 %v900, 7
          %v902 = vsub.s32 %v899, %v901
          %v903 = vrot.slane %v889, %v902
          %v904 = vcombine.low %v896, %v903
          %v905 = vcombine.low %v760, %v759
          %v906 = vcombine.low %v761, %v769
          %v908 = vunpack.c.l.s4 1983009808
          %v909 = vunpack.c.0.s8 %v908
          %v910 = vlaneseq
          %v911 = vshrl.u32 %v910, 7
          %v912 = vsub.s32 %v909, %v911
          %v913 = vrot.slane %v905, %v912
          %v915 = vunpack.c.l.s4 1983009808
          %v916 = vunpack.c.0.s8 %v915
          %v917 = vlaneseq
          %v918 = vshrl.u32 %v917, 7
          %v919 = vsub.s32 %v916, %v918
          %v920 = vrot.slane %v906, %v919
          %v921 = vcombine.low %v913, %v920
          %v922 = vcombine.low %v777, %v776
          %v923 = vcombine.low %v778, %v785
          %v925 = vunpack.c.l.s4 1983009808
          %v926 = vunpack.c.0.s8 %v925
          %v927 = vlaneseq
          %v928 = vshrl.u32 %v927, 7
          %v929 = vsub.s32 %v926, %v928
          %v930 = vrot.slane %v922, %v929
          %v932 = vunpack.c.l.s4 1983009808
          %v933 = vunpack.c.0.s8 %v932
          %v934 = vlaneseq
          %v935 = vshrl.u32 %v934, 7
          %v936 = vsub.s32 %v933, %v935
          %v937 = vrot.slane %v923, %v936
          %v938 = vcombine.low %v930, %v937
          %v948 = vpack.c.bf16 %v819, %v802
          %v949 = vpack.c.bf16 %v853, %v836
          %v950 = vpack.c.bf16 %v887, %v870
          %v951 = vpack.c.bf16 %v921, %v904
          %v952 = vpack.c.bf16 %v938, %v938
          %v953 = vld [vmem:[%s1] sm:$0x3]
          %v954 = vcombine.high %v662, %v662
          %v955 = vcombine.high %v703, %v703
          %v956 = vcombine.high %v744, %v744
          %v957 = vcombine.high %v785, %v785
          %vm958 = vcmask 1040384
          %vm959 = vcmask 1042434
          %vm960 = vmor %vm958, %vm959
          %vm961 = vcmask 1044484
          %vm962 = vmor %vm960, %vm961
          %vm963 = vcmask 1046534
          %vm964 = vmor %vm962, %vm963
          %v965 = vrot.slane %v629, 7
          %v966 = vrot.slane %v965, 2
          %v967 = vrot.slane %v637, 7
          %v968 = vsel %vm964, %v966, %v967
          %v969 = vrot.slane %v967, 2
          %v970 = vrot.slane %v636, 7
          %v971 = vsel %vm964, %v969, %v970
          %v972 = vrot.slane %v970, 2
          %v973 = vrot.slane %v638, 7
          %v974 = vsel %vm964, %v972, %v973
          %v975 = vrot.slane %v973, 2
          %v976 = vrot.slane %v646, 7
          %v977 = vsel %vm964, %v975, %v976
          %v978 = vrot.slane %v976, 2
          %v979 = vrot.slane %v654, 7
          %v980 = vsel %vm964, %v978, %v979
          %v981 = vrot.slane %v979, 2
          %v982 = vrot.slane %v653, 7
          %v983 = vsel %vm964, %v981, %v982
          %v984 = vrot.slane %v982, 2
          %v985 = vrot.slane %v655, 7
          %v986 = vsel %vm964, %v984, %v985
          %v987 = vrot.slane %v985, 2
          %v988 = vrot.slane %v662, 7
          %v989 = vsel %vm964, %v987, %v988
          %v990 = vrot.slane %v988, 2
          %v991 = vrot.slane %v954, 7
          %v992 = vsel %vm964, %v990, %v991
          %v993 = vrot.slane %v670, 7
          %v994 = vrot.slane %v993, 2
          %v995 = vrot.slane %v678, 7
          %v996 = vsel %vm964, %v994, %v995
          %v997 = vrot.slane %v995, 2
          %v998 = vrot.slane %v677, 7
          %v999 = vsel %vm964, %v997, %v998
          %v1000 = vrot.slane %v998, 2
          %v1001 = vrot.slane %v679, 7
          %v1002 = vsel %vm964, %v1000, %v1001
          %v1003 = vrot.slane %v1001, 2
          %v1004 = vrot.slane %v687, 7
          %v1005 = vsel %vm964, %v1003, %v1004
          %v1006 = vrot.slane %v1004, 2
          %v1007 = vrot.slane %v695, 7
          %v1008 = vsel %vm964, %v1006, %v1007
          %v1009 = vrot.slane %v1007, 2
          %v1010 = vrot.slane %v694, 7
          %v1011 = vsel %vm964, %v1009, %v1010
          %v1012 = vrot.slane %v1010, 2
          %v1013 = vrot.slane %v696, 7
          %v1014 = vsel %vm964, %v1012, %v1013
          %v1015 = vrot.slane %v1013, 2
          %v1016 = vrot.slane %v703, 7
          %v1017 = vsel %vm964, %v1015, %v1016
          %v1018 = vrot.slane %v1016, 2
          %v1019 = vrot.slane %v955, 7
          %v1020 = vsel %vm964, %v1018, %v1019
          %v1021 = vrot.slane %v711, 7
          %v1022 = vrot.slane %v1021, 2
          %v1023 = vrot.slane %v719, 7
          %v1024 = vsel %vm964, %v1022, %v1023
          %v1025 = vrot.slane %v1023, 2
          %v1026 = vrot.slane %v718, 7
          %v1027 = vsel %vm964, %v1025, %v1026
          %v1028 = vrot.slane %v1026, 2
          %v1029 = vrot.slane %v720, 7
          %v1030 = vsel %vm964, %v1028, %v1029
          %v1031 = vrot.slane %v1029, 2
          %v1032 = vrot.slane %v728, 7
          %v1033 = vsel %vm964, %v1031, %v1032
          %v1034 = vrot.slane %v1032, 2
          %v1035 = vrot.slane %v736, 7
          %v1036 = vsel %vm964, %v1034, %v1035
          %v1037 = vrot.slane %v1035, 2
          %v1038 = vrot.slane %v735, 7
          %v1039 = vsel %vm964, %v1037, %v1038
          %v1040 = vrot.slane %v1038, 2
          %v1041 = vrot.slane %v737, 7
          %v1042 = vsel %vm964, %v1040, %v1041
          %v1043 = vrot.slane %v1041, 2
          %v1044 = vrot.slane %v744, 7
          %v1045 = vsel %vm964, %v1043, %v1044
          %v1046 = vrot.slane %v1044, 2
          %v1047 = vrot.slane %v956, 7
          %v1048 = vsel %vm964, %v1046, %v1047
          %v1049 = vrot.slane %v752, 7
          %v1050 = vrot.slane %v1049, 2
          %v1051 = vrot.slane %v760, 7
          %v1052 = vsel %vm964, %v1050, %v1051
          %v1053 = vrot.slane %v1051, 2
          %v1054 = vrot.slane %v759, 7
          %v1055 = vsel %vm964, %v1053, %v1054
          %v1056 = vrot.slane %v1054, 2
          %v1057 = vrot.slane %v761, 7
          %v1058 = vsel %vm964, %v1056, %v1057
          %v1059 = vrot.slane %v1057, 2
          %v1060 = vrot.slane %v769, 7
          %v1061 = vsel %vm964, %v1059, %v1060
          %v1062 = vrot.slane %v1060, 2
          %v1063 = vrot.slane %v777, 7
          %v1064 = vsel %vm964, %v1062, %v1063
          %v1065 = vrot.slane %v1063, 2
          %v1066 = vrot.slane %v776, 7
          %v1067 = vsel %vm964, %v1065, %v1066
          %v1068 = vrot.slane %v1066, 2
          %v1069 = vrot.slane %v778, 7
          %v1070 = vsel %vm964, %v1068, %v1069
          %v1071 = vrot.slane %v1069, 2
          %v1072 = vrot.slane %v785, 7
          %v1073 = vsel %vm964, %v1071, %v1072
          %v1074 = vrot.slane %v1072, 2
          %v1075 = vrot.slane %v957, 7
          %v1076 = vsel %vm964, %v1074, %v1075
          %v1077 = vcombine.low %v968, %v971
          %v1078 = vcombine.low %v974, %v977
          %v1080 = vunpack.c.l.s4 1983009808
          %v1081 = vunpack.c.0.s8 %v1080
          %v1082 = vlaneseq
          %v1083 = vshrl.u32 %v1082, 7
          %v1084 = vsub.s32 %v1081, %v1083
          %v1085 = vrot.slane %v1077, %v1084
          %v1087 = vunpack.c.l.s4 1983009808
          %v1088 = vunpack.c.0.s8 %v1087
          %v1089 = vlaneseq
          %v1090 = vshrl.u32 %v1089, 7
          %v1091 = vsub.s32 %v1088, %v1090
          %v1092 = vrot.slane %v1078, %v1091
          %v1093 = vcombine.low %v1085, %v1092
          %v1094 = vcombine.low %v980, %v983
          %v1095 = vcombine.low %v986, %v989
          %v1097 = vunpack.c.l.s4 1983009808
          %v1098 = vunpack.c.0.s8 %v1097
          %v1099 = vlaneseq
          %v1100 = vshrl.u32 %v1099, 7
          %v1101 = vsub.s32 %v1098, %v1100
          %v1102 = vrot.slane %v1094, %v1101
          %v1104 = vunpack.c.l.s4 1983009808
          %v1105 = vunpack.c.0.s8 %v1104
          %v1106 = vlaneseq
          %v1107 = vshrl.u32 %v1106, 7
          %v1108 = vsub.s32 %v1105, %v1107
          %v1109 = vrot.slane %v1095, %v1108
          %v1110 = vcombine.low %v1102, %v1109
          %v1111 = vcombine.low %v992, %v996
          %v1112 = vcombine.low %v999, %v1002
          %v1114 = vunpack.c.l.s4 1983009808
          %v1115 = vunpack.c.0.s8 %v1114
          %v1116 = vlaneseq
          %v1117 = vshrl.u32 %v1116, 7
          %v1118 = vsub.s32 %v1115, %v1117
          %v1119 = vrot.slane %v1111, %v1118
          %v1121 = vunpack.c.l.s4 1983009808
          %v1122 = vunpack.c.0.s8 %v1121
          %v1123 = vlaneseq
          %v1124 = vshrl.u32 %v1123, 7
          %v1125 = vsub.s32 %v1122, %v1124
          %v1126 = vrot.slane %v1112, %v1125
          %v1127 = vcombine.low %v1119, %v1126
          %v1128 = vcombine.low %v1005, %v1008
          %v1129 = vcombine.low %v1011, %v1014
          %v1131 = vunpack.c.l.s4 1983009808
          %v1132 = vunpack.c.0.s8 %v1131
          %v1133 = vlaneseq
          %v1134 = vshrl.u32 %v1133, 7
          %v1135 = vsub.s32 %v1132, %v1134
          %v1136 = vrot.slane %v1128, %v1135
          %v1138 = vunpack.c.l.s4 1983009808
          %v1139 = vunpack.c.0.s8 %v1138
          %v1140 = vlaneseq
          %v1141 = vshrl.u32 %v1140, 7
          %v1142 = vsub.s32 %v1139, %v1141
          %v1143 = vrot.slane %v1129, %v1142
          %v1144 = vcombine.low %v1136, %v1143
          %v1145 = vcombine.low %v1017, %v1020
          %v1146 = vcombine.low %v1024, %v1027
          %v1148 = vunpack.c.l.s4 1983009808
          %v1149 = vunpack.c.0.s8 %v1148
          %v1150 = vlaneseq
          %v1151 = vshrl.u32 %v1150, 7
          %v1152 = vsub.s32 %v1149, %v1151
          %v1153 = vrot.slane %v1145, %v1152
          %v1155 = vunpack.c.l.s4 1983009808
          %v1156 = vunpack.c.0.s8 %v1155
          %v1157 = vlaneseq
          %v1158 = vshrl.u32 %v1157, 7
          %v1159 = vsub.s32 %v1156, %v1158
          %v1160 = vrot.slane %v1146, %v1159
          %v1161 = vcombine.low %v1153, %v1160
          %v1162 = vcombine.low %v1030, %v1033
          %v1163 = vcombine.low %v1036, %v1039
          %v1165 = vunpack.c.l.s4 1983009808
          %v1166 = vunpack.c.0.s8 %v1165
          %v1167 = vlaneseq
          %v1168 = vshrl.u32 %v1167, 7
          %v1169 = vsub.s32 %v1166, %v1168
          %v1170 = vrot.slane %v1162, %v1169
          %v1172 = vunpack.c.l.s4 1983009808
          %v1173 = vunpack.c.0.s8 %v1172
          %v1174 = vlaneseq
          %v1175 = vshrl.u32 %v1174, 7
          %v1176 = vsub.s32 %v1173, %v1175
          %v1177 = vrot.slane %v1163, %v1176
          %v1178 = vcombine.low %v1170, %v1177
          %v1179 = vcombine.low %v1042, %v1045
          %v1180 = vcombine.low %v1048, %v1052
          %v1182 = vunpack.c.l.s4 1983009808
          %v1183 = vunpack.c.0.s8 %v1182
          %v1184 = vlaneseq
          %v1185 = vshrl.u32 %v1184, 7
          %v1186 = vsub.s32 %v1183, %v1185
          %v1187 = vrot.slane %v1179, %v1186
          %v1189 = vunpack.c.l.s4 1983009808
          %v1190 = vunpack.c.0.s8 %v1189
          %v1191 = vlaneseq
          %v1192 = vshrl.u32 %v1191, 7
          %v1193 = vsub.s32 %v1190, %v1192
          %v1194 = vrot.slane %v1180, %v1193
          %v1195 = vcombine.low %v1187, %v1194
          %v1196 = vcombine.low %v1055, %v1058
          %v1197 = vcombine.low %v1061, %v1064
          %v1199 = vunpack.c.l.s4 1983009808
          %v1200 = vunpack.c.0.s8 %v1199
          %v1201 = vlaneseq
          %v1202 = vshrl.u32 %v1201, 7
          %v1203 = vsub.s32 %v1200, %v1202
          %v1204 = vrot.slane %v1196, %v1203
          %v1206 = vunpack.c.l.s4 1983009808
          %v1207 = vunpack.c.0.s8 %v1206
          %v1208 = vlaneseq
          %v1209 = vshrl.u32 %v1208, 7
          %v1210 = vsub.s32 %v1207, %v1209
          %v1211 = vrot.slane %v1197, %v1210
          %v1212 = vcombine.low %v1204, %v1211
          %v1213 = vcombine.low %v1067, %v1070
          %v1214 = vcombine.low %v1073, %v1076
          %v1216 = vunpack.c.l.s4 1983009808
          %v1217 = vunpack.c.0.s8 %v1216
          %v1218 = vlaneseq
          %v1219 = vshrl.u32 %v1218, 7
          %v1220 = vsub.s32 %v1217, %v1219
          %v1221 = vrot.slane %v1213, %v1220
          %v1223 = vunpack.c.l.s4 1983009808
          %v1224 = vunpack.c.0.s8 %v1223
          %v1225 = vlaneseq
          %v1226 = vshrl.u32 %v1225, 7
          %v1227 = vsub.s32 %v1224, %v1226
          %v1228 = vrot.slane %v1214, %v1227
          %v1229 = vcombine.low %v1221, %v1228
          %v1239 = vpack.c.bf16 %v1110, %v1093
          %v1240 = vpack.c.bf16 %v1144, %v1127
          %v1241 = vpack.c.bf16 %v1178, %v1161
          %v1242 = vpack.c.bf16 %v1212, %v1195
          %v1243 = vpack.c.bf16 %v1229, %v1229
          %s1244 = scalar_lea.vmem %s1, 2
          %v1245 = vld [vmem:[%s1244] sm:$0x3]
          %vm1246 = vcmask 31744
          %v1248 = vsel %vm1246, %v1239, 0
          %v1251 = vsel %vm1246, %v1240, 0
          %v1254 = vsel %vm1246, %v1241, 0
          %v1257 = vsel %vm1246, %v1242, 0
          %v1260 = vsel %vm1246, %v1243, 0
          %vm1262 = vcmask 1041408
          %v1264 = vsel %vm1262, %v1245, 0
          %1266 = vmatprep.subr.bf16.mxu0 0
          %1267 = vmatpush1.bf16.msra.mxu0 %v1264
          %1268 = vmatprep.subr.bf16.mxu0 0
          %1269 = vmatpush1.bf16.msra.mxu0 0
          %1270 = vmatprep.subr.bf16.mxu0 0
          %1271 = vmatpush1.bf16.msra.mxu0 0
          %1272 = vmatprep.subr.bf16.mxu0 0
          %1273 = vmatpush1.bf16.msra.mxu0 0
          %1274 = vmatprep.subr.bf16.mxu0 0
          %1275 = vmatpush1.bf16.msra.mxu0 0
          %1276 = vmatprep.subr.bf16.mxu0 0
          %1277 = vmatpush1.bf16.msra.mxu0 0
          %1278 = vmatprep.subr.bf16.mxu0 0
          %1279 = vmatpush1.bf16.msra.mxu0 0
          %1280 = vmatprep.subr.bf16.mxu0 0
          %1281 = vmatpush1.bf16.msra.mxu0 0
          %1282 = vmatprep.subr.bf16.mxu0 0
          %1283 = vmatpush1.bf16.msra.mxu0 0
          %1284 = vmatprep.subr.bf16.mxu0 0
          %1285 = vmatpush1.bf16.msra.mxu0 0
          %1286 = vmatprep.subr.bf16.mxu0 0
          %1287 = vmatpush1.bf16.msra.mxu0 0
          %1288 = vmatprep.subr.bf16.mxu0 0
          %1289 = vmatpush1.bf16.msra.mxu0 0
          %1290 = vmatprep.subr.bf16.mxu0 0
          %1291 = vmatpush1.bf16.msra.mxu0 0
          %1292 = vmatprep.subr.bf16.mxu0 0
          %1293 = vmatpush1.bf16.msra.mxu0 0
          %1294 = vmatprep.subr.bf16.mxu0 0
          %1295 = vmatpush1.bf16.msra.mxu0 0
          %1296 = vmatprep.subr.bf16.mxu0 0
          %1297 = vmatpush1.bf16.msra.mxu0 0
          %1298 = vmatprep.mubr.bf16.mxu0 0
          %1299 = vmatmul.mubr.bf16.gmra.mrb[0].mxu0 %v1248
          %v1300 = vpop.f32.mrb[0].mxu0
          %v1301 = vadd.f32 0.0, %v1300
          %v1302 = vpop.f32.mrb[0].mxu0
          %v1303 = vpop.f32.mrb[0].mxu0
          %v1304 = vadd.f32 0.0, %v1303
          %v1305 = vpop.f32.mrb[0].mxu0
          %1306 = vmatprep.mubr.bf16.mxu0 0
          %1307 = vmatmul.mubr.bf16.gmra.mrb[0].mxu0 %v1251
          %v1308 = vpop.f32.mrb[0].mxu0
          %v1309 = vadd.f32 0.0, %v1308
          %v1310 = vpop.f32.mrb[0].mxu0
          %v1311 = vpop.f32.mrb[0].mxu0
          %v1312 = vadd.f32 0.0, %v1311
          %v1313 = vpop.f32.mrb[0].mxu0
          %1314 = vmatprep.mubr.bf16.mxu0 0
          %1315 = vmatmul.mubr.bf16.gmra.mrb[0].mxu0 %v1254
          %v1316 = vpop.f32.mrb[0].mxu0
          %v1317 = vadd.f32 0.0, %v1316
          %v1318 = vpop.f32.mrb[0].mxu0
          %v1319 = vpop.f32.mrb[0].mxu0
          %v1320 = vadd.f32 0.0, %v1319
          %v1321 = vpop.f32.mrb[0].mxu0
          %1322 = vmatprep.mubr.bf16.mxu0 0
          %1323 = vmatmul.mubr.bf16.gmra.mrb[0].mxu0 %v1257
          %v1324 = vpop.f32.mrb[0].mxu0
          %v1325 = vadd.f32 0.0, %v1324
          %v1326 = vpop.f32.mrb[0].mxu0
          %v1327 = vpop.f32.mrb[0].mxu0
          %v1328 = vadd.f32 0.0, %v1327
          %v1329 = vpop.f32.mrb[0].mxu0
          %1330 = vmatprep.mubr.bf16.mxu0 0
          %1331 = vmatmul.mubr.bf16.gmra.mrb[0].mxu0 %v1260
          %v1332 = vpop.f32.mrb[0].mxu0
          %v1333 = vadd.f32 0.0, %v1332
          %v1334 = vpop.f32.mrb[0].mxu0
          %v1335 = vpop.f32.mrb[0].mxu0
          %v1336 = vpop.f32.mrb[0].mxu0
          %1337 = vdwg.mxu0
          %v1339 = vsel %vm1246, %v948, 0
          %v1342 = vsel %vm1246, %v949, 0
          %v1345 = vsel %vm1246, %v950, 0
          %v1348 = vsel %vm1246, %v951, 0
          %v1351 = vsel %vm1246, %v952, 0
          %v1354 = vsel %vm1262, %v953, 0
          %1356 = vmatprep.subr.bf16.mxu0 0
          %1357 = vmatpush1.bf16.msra.mxu0 %v1354
          %1358 = vmatprep.subr.bf16.mxu0 0
          %1359 = vmatpush1.bf16.msra.mxu0 0
          %1360 = vmatprep.subr.bf16.mxu0 0
          %1361 = vmatpush1.bf16.msra.mxu0 0
          %1362 = vmatprep.subr.bf16.mxu0 0
          %1363 = vmatpush1.bf16.msra.mxu0 0
          %1364 = vmatprep.subr.bf16.mxu0 0
          %1365 = vmatpush1.bf16.msra.mxu0 0
          %1366 = vmatprep.subr.bf16.mxu0 0
          %1367 = vmatpush1.bf16.msra.mxu0 0
          %1368 = vmatprep.subr.bf16.mxu0 0
          %1369 = vmatpush1.bf16.msra.mxu0 0
          %1370 = vmatprep.subr.bf16.mxu0 0
          %1371 = vmatpush1.bf16.msra.mxu0 0
          %1372 = vmatprep.subr.bf16.mxu0 0
          %1373 = vmatpush1.bf16.msra.mxu0 0
          %1374 = vmatprep.subr.bf16.mxu0 0
          %1375 = vmatpush1.bf16.msra.mxu0 0
          %1376 = vmatprep.subr.bf16.mxu0 0
          %1377 = vmatpush1.bf16.msra.mxu0 0
          %1378 = vmatprep.subr.bf16.mxu0 0
          %1379 = vmatpush1.bf16.msra.mxu0 0
          %1380 = vmatprep.subr.bf16.mxu0 0
          %1381 = vmatpush1.bf16.msra.mxu0 0
          %1382 = vmatprep.subr.bf16.mxu0 0
          %1383 = vmatpush1.bf16.msra.mxu0 0
          %1384 = vmatprep.subr.bf16.mxu0 0
          %1385 = vmatpush1.bf16.msra.mxu0 0
          %1386 = vmatprep.subr.bf16.mxu0 0
          %1387 = vmatpush1.bf16.msra.mxu0 0
          %1388 = vmatprep.mubr.bf16.mxu0 0
          %1389 = vmatmul.mubr.bf16.gmra.mrb[0].mxu0 %v1339
          %v1390 = vpop.f32.mrb[0].mxu0
          %v1391 = vadd.f32 %v1301, %v1390
          %v1392 = vpop.f32.mrb[0].mxu0
          %v1393 = vpop.f32.mrb[0].mxu0
          %v1394 = vadd.f32 %v1304, %v1393
          %v1395 = vpop.f32.mrb[0].mxu0
          %1396 = vmatprep.mubr.bf16.mxu0 0
          %1397 = vmatmul.mubr.bf16.gmra.mrb[0].mxu0 %v1342
          %v1398 = vpop.f32.mrb[0].mxu0
          %v1399 = vadd.f32 %v1309, %v1398
          %v1400 = vpop.f32.mrb[0].mxu0
          %v1401 = vpop.f32.mrb[0].mxu0
          %v1402 = vadd.f32 %v1312, %v1401
          %v1403 = vpop.f32.mrb[0].mxu0
          %1404 = vmatprep.mubr.bf16.mxu0 0
          %1405 = vmatmul.mubr.bf16.gmra.mrb[0].mxu0 %v1345
          %v1406 = vpop.f32.mrb[0].mxu0
          %v1407 = vadd.f32 %v1317, %v1406
          %v1408 = vpop.f32.mrb[0].mxu0
          %v1409 = vpop.f32.mrb[0].mxu0
          %v1410 = vadd.f32 %v1320, %v1409
          %v1411 = vpop.f32.mrb[0].mxu0
          %1412 = vmatprep.mubr.bf16.mxu0 0
          %1413 = vmatmul.mubr.bf16.gmra.mrb[0].mxu0 %v1348
          %v1414 = vpop.f32.mrb[0].mxu0
          %v1415 = vadd.f32 %v1325, %v1414
          %v1416 = vpop.f32.mrb[0].mxu0
          %v1417 = vpop.f32.mrb[0].mxu0
          %v1418 = vadd.f32 %v1328, %v1417
          %v1419 = vpop.f32.mrb[0].mxu0
          %1420 = vmatprep.mubr.bf16.mxu0 0
          %1421 = vmatmul.mubr.bf16.gmra.mrb[0].mxu0 %v1351
          %v1422 = vpop.f32.mrb[0].mxu0
          %v1423 = vadd.f32 %v1333, %v1422
          %v1424 = vpop.f32.mrb[0].mxu0
          %v1425 = vpop.f32.mrb[0].mxu0
          %v1426 = vpop.f32.mrb[0].mxu0
          %1427 = vdwg.mxu0
          %v1428 = vcombine.low %v637, %v636
          %v1429 = vcombine.low %v638, %v646
          %v1431 = vunpack.c.l.s4 1983009808
          %v1432 = vunpack.c.0.s8 %v1431
          %v1433 = vlaneseq
          %v1434 = vshrl.u32 %v1433, 7
          %v1435 = vsub.s32 %v1432, %v1434
          %v1436 = vrot.slane %v1428, %v1435
          %v1438 = vunpack.c.l.s4 1983009808
          %v1439 = vunpack.c.0.s8 %v1438
          %v1440 = vlaneseq
          %v1441 = vshrl.u32 %v1440, 7
          %v1442 = vsub.s32 %v1439, %v1441
          %v1443 = vrot.slane %v1429, %v1442
          %v1444 = vcombine.low %v1436, %v1443
          %v1445 = vcombine.low %v654, %v653
          %v1446 = vcombine.low %v655, %v662
          %v1448 = vunpack.c.l.s4 1983009808
          %v1449 = vunpack.c.0.s8 %v1448
          %v1450 = vlaneseq
          %v1451 = vshrl.u32 %v1450, 7
          %v1452 = vsub.s32 %v1449, %v1451
          %v1453 = vrot.slane %v1445, %v1452
          %v1455 = vunpack.c.l.s4 1983009808
          %v1456 = vunpack.c.0.s8 %v1455
          %v1457 = vlaneseq
          %v1458 = vshrl.u32 %v1457, 7
          %v1459 = vsub.s32 %v1456, %v1458
          %v1460 = vrot.slane %v1446, %v1459
          %v1461 = vcombine.low %v1453, %v1460
          %v1462 = vcombine.low %v954, %v678
          %v1463 = vcombine.low %v677, %v679
          %v1465 = vunpack.c.l.s4 1983009808
          %v1466 = vunpack.c.0.s8 %v1465
          %v1467 = vlaneseq
          %v1468 = vshrl.u32 %v1467, 7
          %v1469 = vsub.s32 %v1466, %v1468
          %v1470 = vrot.slane %v1462, %v1469
          %v1472 = vunpack.c.l.s4 1983009808
          %v1473 = vunpack.c.0.s8 %v1472
          %v1474 = vlaneseq
          %v1475 = vshrl.u32 %v1474, 7
          %v1476 = vsub.s32 %v1473, %v1475
          %v1477 = vrot.slane %v1463, %v1476
          %v1478 = vcombine.low %v1470, %v1477
          %v1479 = vcombine.low %v687, %v695
          %v1480 = vcombine.low %v694, %v696
          %v1482 = vunpack.c.l.s4 1983009808
          %v1483 = vunpack.c.0.s8 %v1482
          %v1484 = vlaneseq
          %v1485 = vshrl.u32 %v1484, 7
          %v1486 = vsub.s32 %v1483, %v1485
          %v1487 = vrot.slane %v1479, %v1486
          %v1489 = vunpack.c.l.s4 1983009808
          %v1490 = vunpack.c.0.s8 %v1489
          %v1491 = vlaneseq
          %v1492 = vshrl.u32 %v1491, 7
          %v1493 = vsub.s32 %v1490, %v1492
          %v1494 = vrot.slane %v1480, %v1493
          %v1495 = vcombine.low %v1487, %v1494
          %v1496 = vcombine.low %v703, %v955
          %v1497 = vcombine.low %v719, %v718
          %v1499 = vunpack.c.l.s4 1983009808
          %v1500 = vunpack.c.0.s8 %v1499
          %v1501 = vlaneseq
          %v1502 = vshrl.u32 %v1501, 7
          %v1503 = vsub.s32 %v1500, %v1502
          %v1504 = vrot.slane %v1496, %v1503
          %v1506 = vunpack.c.l.s4 1983009808
          %v1507 = vunpack.c.0.s8 %v1506
          %v1508 = vlaneseq
          %v1509 = vshrl.u32 %v1508, 7
          %v1510 = vsub.s32 %v1507, %v1509
          %v1511 = vrot.slane %v1497, %v1510
          %v1512 = vcombine.low %v1504, %v1511
          %v1513 = vcombine.low %v720, %v728
          %v1514 = vcombine.low %v736, %v735
          %v1516 = vunpack.c.l.s4 1983009808
          %v1517 = vunpack.c.0.s8 %v1516
          %v1518 = vlaneseq
          %v1519 = vshrl.u32 %v1518, 7
          %v1520 = vsub.s32 %v1517, %v1519
          %v1521 = vrot.slane %v1513, %v1520
          %v1523 = vunpack.c.l.s4 1983009808
          %v1524 = vunpack.c.0.s8 %v1523
          %v1525 = vlaneseq
          %v1526 = vshrl.u32 %v1525, 7
          %v1527 = vsub.s32 %v1524, %v1526
          %v1528 = vrot.slane %v1514, %v1527
          %v1529 = vcombine.low %v1521, %v1528
          %v1530 = vcombine.low %v737, %v744
          %v1531 = vcombine.low %v956, %v760
          %v1533 = vunpack.c.l.s4 1983009808
          %v1534 = vunpack.c.0.s8 %v1533
          %v1535 = vlaneseq
          %v1536 = vshrl.u32 %v1535, 7
          %v1537 = vsub.s32 %v1534, %v1536
          %v1538 = vrot.slane %v1530, %v1537
          %v1540 = vunpack.c.l.s4 1983009808
          %v1541 = vunpack.c.0.s8 %v1540
          %v1542 = vlaneseq
          %v1543 = vshrl.u32 %v1542, 7
          %v1544 = vsub.s32 %v1541, %v1543
          %v1545 = vrot.slane %v1531, %v1544
          %v1546 = vcombine.low %v1538, %v1545
          %v1547 = vcombine.low %v759, %v761
          %v1548 = vcombine.low %v769, %v777
          %v1550 = vunpack.c.l.s4 1983009808
          %v1551 = vunpack.c.0.s8 %v1550
          %v1552 = vlaneseq
          %v1553 = vshrl.u32 %v1552, 7
          %v1554 = vsub.s32 %v1551, %v1553
          %v1555 = vrot.slane %v1547, %v1554
          %v1557 = vunpack.c.l.s4 1983009808
          %v1558 = vunpack.c.0.s8 %v1557
          %v1559 = vlaneseq
          %v1560 = vshrl.u32 %v1559, 7
          %v1561 = vsub.s32 %v1558, %v1560
          %v1562 = vrot.slane %v1548, %v1561
          %v1563 = vcombine.low %v1555, %v1562
          %v1564 = vcombine.low %v776, %v778
          %v1565 = vcombine.low %v785, %v957
          %v1567 = vunpack.c.l.s4 1983009808
          %v1568 = vunpack.c.0.s8 %v1567
          %v1569 = vlaneseq
          %v1570 = vshrl.u32 %v1569, 7
          %v1571 = vsub.s32 %v1568, %v1570
          %v1572 = vrot.slane %v1564, %v1571
          %v1574 = vunpack.c.l.s4 1983009808
          %v1575 = vunpack.c.0.s8 %v1574
          %v1576 = vlaneseq
          %v1577 = vshrl.u32 %v1576, 7
          %v1578 = vsub.s32 %v1575, %v1577
          %v1579 = vrot.slane %v1565, %v1578
          %v1580 = vcombine.low %v1572, %v1579
          %v1590 = vpack.c.bf16 %v1461, %v1444
          %v1591 = vpack.c.bf16 %v1495, %v1478
          %v1592 = vpack.c.bf16 %v1529, %v1512
          %v1593 = vpack.c.bf16 %v1563, %v1546
          %v1594 = vpack.c.bf16 %v1580, %v1580
          %s1595 = scalar_lea.vmem %s1, 4
          %v1596 = vld [vmem:[%s1595] sm:$0x3]
          %v1598 = vsel %vm1246, %v1590, 0
          %v1601 = vsel %vm1246, %v1591, 0
          %v1604 = vsel %vm1246, %v1592, 0
          %v1607 = vsel %vm1246, %v1593, 0
          %v1610 = vsel %vm1246, %v1594, 0
          %v1613 = vsel %vm1262, %v1596, 0
          %1615 = vmatprep.subr.bf16.mxu0 0
          %1616 = vmatpush1.bf16.msra.mxu0 %v1613
          %1617 = vmatprep.subr.bf16.mxu0 0
          %1618 = vmatpush1.bf16.msra.mxu0 0
          %1619 = vmatprep.subr.bf16.mxu0 0
          %1620 = vmatpush1.bf16.msra.mxu0 0
          %1621 = vmatprep.subr.bf16.mxu0 0
          %1622 = vmatpush1.bf16.msra.mxu0 0
          %1623 = vmatprep.subr.bf16.mxu0 0
          %1624 = vmatpush1.bf16.msra.mxu0 0
          %1625 = vmatprep.subr.bf16.mxu0 0
          %1626 = vmatpush1.bf16.msra.mxu0 0
          %1627 = vmatprep.subr.bf16.mxu0 0
          %1628 = vmatpush1.bf16.msra.mxu0 0
          %1629 = vmatprep.subr.bf16.mxu0 0
          %1630 = vmatpush1.bf16.msra.mxu0 0
          %1631 = vmatprep.subr.bf16.mxu0 0
          %1632 = vmatpush1.bf16.msra.mxu0 0
          %1633 = vmatprep.subr.bf16.mxu0 0
          %1634 = vmatpush1.bf16.msra.mxu0 0
          %1635 = vmatprep.subr.bf16.mxu0 0
          %1636 = vmatpush1.bf16.msra.mxu0 0
          %1637 = vmatprep.subr.bf16.mxu0 0
          %1638 = vmatpush1.bf16.msra.mxu0 0
          %1639 = vmatprep.subr.bf16.mxu0 0
          %1640 = vmatpush1.bf16.msra.mxu0 0
          %1641 = vmatprep.subr.bf16.mxu0 0
          %1642 = vmatpush1.bf16.msra.mxu0 0
          %1643 = vmatprep.subr.bf16.mxu0 0
          %1644 = vmatpush1.bf16.msra.mxu0 0
          %1645 = vmatprep.subr.bf16.mxu0 0
          %1646 = vmatpush1.bf16.msra.mxu0 0
          %1647 = vmatprep.mubr.bf16.mxu0 0
          %1648 = vmatmul.mubr.bf16.gmra.mrb[0].mxu0 %v1598
          %v1649 = vpop.f32.mrb[0].mxu0
          %v1650 = vadd.f32 0.0, %v1649
          %v1651 = vpop.f32.mrb[0].mxu0
          %v1652 = vpop.f32.mrb[0].mxu0
          %v1653 = vadd.f32 0.0, %v1652
          %v1654 = vpop.f32.mrb[0].mxu0
          %1655 = vmatprep.mubr.bf16.mxu0 0
          %1656 = vmatmul.mubr.bf16.gmra.mrb[0].mxu0 %v1601
          %v1657 = vpop.f32.mrb[0].mxu0
          %v1658 = vadd.f32 0.0, %v1657
          %v1659 = vpop.f32.mrb[0].mxu0
          %v1660 = vpop.f32.mrb[0].mxu0
          %v1661 = vadd.f32 0.0, %v1660
          %v1662 = vpop.f32.mrb[0].mxu0
          %1663 = vmatprep.mubr.bf16.mxu0 0
          %1664 = vmatmul.mubr.bf16.gmra.mrb[0].mxu0 %v1604
          %v1665 = vpop.f32.mrb[0].mxu0
          %v1666 = vadd.f32 0.0, %v1665
          %v1667 = vpop.f32.mrb[0].mxu0
          %v1668 = vpop.f32.mrb[0].mxu0
          %v1669 = vadd.f32 0.0, %v1668
          %v1670 = vpop.f32.mrb[0].mxu0
          %1671 = vmatprep.mubr.bf16.mxu0 0
          %1672 = vmatmul.mubr.bf16.gmra.mrb[0].mxu0 %v1607
          %v1673 = vpop.f32.mrb[0].mxu0
          %v1674 = vadd.f32 0.0, %v1673
          %v1675 = vpop.f32.mrb[0].mxu0
          %v1676 = vpop.f32.mrb[0].mxu0
          %v1677 = vadd.f32 0.0, %v1676
          %v1678 = vpop.f32.mrb[0].mxu0
          %1679 = vmatprep.mubr.bf16.mxu0 0
          %1680 = vmatmul.mubr.bf16.gmra.mrb[0].mxu0 %v1610
          %v1681 = vpop.f32.mrb[0].mxu0
          %v1682 = vadd.f32 0.0, %v1681
          %v1683 = vpop.f32.mrb[0].mxu0
          %v1684 = vpop.f32.mrb[0].mxu0
          %v1685 = vpop.f32.mrb[0].mxu0
          %1686 = vdwg.mxu0
          %v1687 = vadd.f32 %v1391, %v1650
          %v1688 = vadd.f32 %v1394, %v1653
          %v1689 = vadd.f32 %v1399, %v1658
          %v1690 = vadd.f32 %v1402, %v1661
          %v1691 = vadd.f32 %v1407, %v1666
          %v1692 = vadd.f32 %v1410, %v1669
          %v1693 = vadd.f32 %v1415, %v1674
          %v1694 = vadd.f32 %v1418, %v1677
          %v1695 = vadd.f32 %v1423, %v1682
          %v1697 = vlaneseq
          %v1698 = vshrl.u32 %v1697, 7
          %v1699 = vsub.s32 0, %v1698
          %v1700 = vrot.slane %v609, %v1699
          %v1702 = vadd.f32 %v1687, %v1700
          %v1703 = vadd.f32 %v1688, %v1700
          %v1704 = vadd.f32 %v1689, %v1700
          %v1705 = vadd.f32 %v1690, %v1700
          %v1706 = vadd.f32 %v1691, %v1700
          %v1707 = vadd.f32 %v1692, %v1700
          %v1708 = vadd.f32 %v1693, %v1700
          %v1709 = vadd.f32 %v1694, %v1700
          %v1710 = vadd.f32 %v1695, %v1700
          %v1711 = vmax.f32 %v1702, 0.0
          %v1712 = vmax.f32 %v1703, 0.0
          %v1713 = vmax.f32 %v1704, 0.0
          %v1714 = vmax.f32 %v1705, 0.0
          %v1715 = vmax.f32 %v1706, 0.0
          %v1716 = vmax.f32 %v1707, 0.0
          %v1717 = vmax.f32 %v1708, 0.0
          %v1718 = vmax.f32 %v1709, 0.0
          %v1719 = vmax.f32 %v1710, 0.0
          %v1729 = vcombine.high %v1711, %v1711
          %v1731 = vunpack.c.l.s4 1983009808
          %v1732 = vunpack.c.0.s8 %v1731
          %v1733 = vlaneseq
          %v1734 = vshrl.u32 %v1733, 7
          %v1735 = vsub.s32 %v1732, %v1734
          %v1736 = vrot.slane %v1711, %v1735
          %v1738 = vunpack.c.l.s4 1983009808
          %v1739 = vunpack.c.0.s8 %v1738
          %v1740 = vlaneseq
          %v1741 = vshrl.u32 %v1740, 7
          %v1742 = vsub.s32 %v1739, %v1741
          %v1743 = vrot.slane %v1729, %v1742
          %v1744 = vcombine.high %v1736, %v1736
          %v1745 = vcombine.high %v1743, %v1743
          %v1746 = vcombine.high %v1712, %v1712
          %v1748 = vunpack.c.l.s4 1983009808
          %v1749 = vunpack.c.0.s8 %v1748
          %v1750 = vlaneseq
          %v1751 = vshrl.u32 %v1750, 7
          %v1752 = vsub.s32 %v1749, %v1751
          %v1753 = vrot.slane %v1712, %v1752
          %v1755 = vunpack.c.l.s4 1983009808
          %v1756 = vunpack.c.0.s8 %v1755
          %v1757 = vlaneseq
          %v1758 = vshrl.u32 %v1757, 7
          %v1759 = vsub.s32 %v1756, %v1758
          %v1760 = vrot.slane %v1746, %v1759
          %v1761 = vcombine.high %v1753, %v1753
          %v1762 = vcombine.high %v1760, %v1760
          %v1763 = vcombine.high %v1713, %v1713
          %v1765 = vunpack.c.l.s4 1983009808
          %v1766 = vunpack.c.0.s8 %v1765
          %v1767 = vlaneseq
          %v1768 = vshrl.u32 %v1767, 7
          %v1769 = vsub.s32 %v1766, %v1768
          %v1770 = vrot.slane %v1713, %v1769
          %v1772 = vunpack.c.l.s4 1983009808
          %v1773 = vunpack.c.0.s8 %v1772
          %v1774 = vlaneseq
          %v1775 = vshrl.u32 %v1774, 7
          %v1776 = vsub.s32 %v1773, %v1775
          %v1777 = vrot.slane %v1763, %v1776
          %v1778 = vcombine.high %v1770, %v1770
          %v1779 = vcombine.high %v1777, %v1777
          %v1780 = vcombine.high %v1714, %v1714
          %v1782 = vunpack.c.l.s4 1983009808
          %v1783 = vunpack.c.0.s8 %v1782
          %v1784 = vlaneseq
          %v1785 = vshrl.u32 %v1784, 7
          %v1786 = vsub.s32 %v1783, %v1785
          %v1787 = vrot.slane %v1714, %v1786
          %v1789 = vunpack.c.l.s4 1983009808
          %v1790 = vunpack.c.0.s8 %v1789
          %v1791 = vlaneseq
          %v1792 = vshrl.u32 %v1791, 7
          %v1793 = vsub.s32 %v1790, %v1792
          %v1794 = vrot.slane %v1780, %v1793
          %v1795 = vcombine.high %v1787, %v1787
          %v1796 = vcombine.high %v1794, %v1794
          %v1797 = vcombine.high %v1715, %v1715
          %v1799 = vunpack.c.l.s4 1983009808
          %v1800 = vunpack.c.0.s8 %v1799
          %v1801 = vlaneseq
          %v1802 = vshrl.u32 %v1801, 7
          %v1803 = vsub.s32 %v1800, %v1802
          %v1804 = vrot.slane %v1715, %v1803
          %v1806 = vunpack.c.l.s4 1983009808
          %v1807 = vunpack.c.0.s8 %v1806
          %v1808 = vlaneseq
          %v1809 = vshrl.u32 %v1808, 7
          %v1810 = vsub.s32 %v1807, %v1809
          %v1811 = vrot.slane %v1797, %v1810
          %v1812 = vcombine.high %v1804, %v1804
          %v1813 = vcombine.high %v1811, %v1811
          %v1814 = vcombine.high %v1716, %v1716
          %v1816 = vunpack.c.l.s4 1983009808
          %v1817 = vunpack.c.0.s8 %v1816
          %v1818 = vlaneseq
          %v1819 = vshrl.u32 %v1818, 7
          %v1820 = vsub.s32 %v1817, %v1819
          %v1821 = vrot.slane %v1716, %v1820
          %v1823 = vunpack.c.l.s4 1983009808
          %v1824 = vunpack.c.0.s8 %v1823
          %v1825 = vlaneseq
          %v1826 = vshrl.u32 %v1825, 7
          %v1827 = vsub.s32 %v1824, %v1826
          %v1828 = vrot.slane %v1814, %v1827
          %v1829 = vcombine.high %v1821, %v1821
          %v1830 = vcombine.high %v1828, %v1828
          %v1831 = vcombine.high %v1717, %v1717
          %v1833 = vunpack.c.l.s4 1983009808
          %v1834 = vunpack.c.0.s8 %v1833
          %v1835 = vlaneseq
          %v1836 = vshrl.u32 %v1835, 7
          %v1837 = vsub.s32 %v1834, %v1836
          %v1838 = vrot.slane %v1717, %v1837
          %v1840 = vunpack.c.l.s4 1983009808
          %v1841 = vunpack.c.0.s8 %v1840
          %v1842 = vlaneseq
          %v1843 = vshrl.u32 %v1842, 7
          %v1844 = vsub.s32 %v1841, %v1843
          %v1845 = vrot.slane %v1831, %v1844
          %v1846 = vcombine.high %v1838, %v1838
          %v1847 = vcombine.high %v1845, %v1845
          %v1848 = vcombine.high %v1718, %v1718
          %v1850 = vunpack.c.l.s4 1983009808
          %v1851 = vunpack.c.0.s8 %v1850
          %v1852 = vlaneseq
          %v1853 = vshrl.u32 %v1852, 7
          %v1854 = vsub.s32 %v1851, %v1853
          %v1855 = vrot.slane %v1718, %v1854
          %v1857 = vunpack.c.l.s4 1983009808
          %v1858 = vunpack.c.0.s8 %v1857
          %v1859 = vlaneseq
          %v1860 = vshrl.u32 %v1859, 7
          %v1861 = vsub.s32 %v1858, %v1860
          %v1862 = vrot.slane %v1848, %v1861
          %v1863 = vcombine.high %v1855, %v1855
          %v1864 = vcombine.high %v1862, %v1862
          %v1865 = vcombine.high %v1719, %v1719
          %v1867 = vunpack.c.l.s4 1983009808
          %v1868 = vunpack.c.0.s8 %v1867
          %v1869 = vlaneseq
          %v1870 = vshrl.u32 %v1869, 7
          %v1871 = vsub.s32 %v1868, %v1870
          %v1872 = vrot.slane %v1719, %v1871
          %v1874 = vunpack.c.l.s4 1983009808
          %v1875 = vunpack.c.0.s8 %v1874
          %v1876 = vlaneseq
          %v1877 = vshrl.u32 %v1876, 7
          %v1878 = vsub.s32 %v1875, %v1877
          %v1879 = vrot.slane %v1865, %v1878
          %v1880 = vcombine.high %v1872, %v1872
          %v1881 = vcombine.high %v1879, %v1879
          %v1882 = vld [vmem:[%s4] sm:$0x1]
          %v1883 = vcombine.low %v1736, %v1744
          %v1884 = vcombine.low %v1743, %v1745
          %v1886 = vunpack.c.l.s4 1983009808
          %v1887 = vunpack.c.0.s8 %v1886
          %v1888 = vlaneseq
          %v1889 = vshrl.u32 %v1888, 7
          %v1890 = vsub.s32 %v1887, %v1889
          %v1891 = vrot.slane %v1883, %v1890
          %v1893 = vunpack.c.l.s4 1983009808
          %v1894 = vunpack.c.0.s8 %v1893
          %v1895 = vlaneseq
          %v1896 = vshrl.u32 %v1895, 7
          %v1897 = vsub.s32 %v1894, %v1896
          %v1898 = vrot.slane %v1884, %v1897
          %v1899 = vcombine.low %v1891, %v1898
          %v1900 = vcombine.low %v1753, %v1761
          %v1901 = vcombine.low %v1760, %v1762
          %v1903 = vunpack.c.l.s4 1983009808
          %v1904 = vunpack.c.0.s8 %v1903
          %v1905 = vlaneseq
          %v1906 = vshrl.u32 %v1905, 7
          %v1907 = vsub.s32 %v1904, %v1906
          %v1908 = vrot.slane %v1900, %v1907
          %v1910 = vunpack.c.l.s4 1983009808
          %v1911 = vunpack.c.0.s8 %v1910
          %v1912 = vlaneseq
          %v1913 = vshrl.u32 %v1912, 7
          %v1914 = vsub.s32 %v1911, %v1913
          %v1915 = vrot.slane %v1901, %v1914
          %v1916 = vcombine.low %v1908, %v1915
          %v1917 = vcombine.low %v1778, %v1777
          %v1918 = vcombine.low %v1779, %v1787
          %v1920 = vunpack.c.l.s4 1983009808
          %v1921 = vunpack.c.0.s8 %v1920
          %v1922 = vlaneseq
          %v1923 = vshrl.u32 %v1922, 7
          %v1924 = vsub.s32 %v1921, %v1923
          %v1925 = vrot.slane %v1917, %v1924
          %v1927 = vunpack.c.l.s4 1983009808
          %v1928 = vunpack.c.0.s8 %v1927
          %v1929 = vlaneseq
          %v1930 = vshrl.u32 %v1929, 7
          %v1931 = vsub.s32 %v1928, %v1930
          %v1932 = vrot.slane %v1918, %v1931
          %v1933 = vcombine.low %v1925, %v1932
          %v1934 = vcombine.low %v1795, %v1794
          %v1935 = vcombine.low %v1796, %v1804
          %v1937 = vunpack.c.l.s4 1983009808
          %v1938 = vunpack.c.0.s8 %v1937
          %v1939 = vlaneseq
          %v1940 = vshrl.u32 %v1939, 7
          %v1941 = vsub.s32 %v1938, %v1940
          %v1942 = vrot.slane %v1934, %v1941
          %v1944 = vunpack.c.l.s4 1983009808
          %v1945 = vunpack.c.0.s8 %v1944
          %v1946 = vlaneseq
          %v1947 = vshrl.u32 %v1946, 7
          %v1948 = vsub.s32 %v1945, %v1947
          %v1949 = vrot.slane %v1935, %v1948
          %v1950 = vcombine.low %v1942, %v1949
          %v1951 = vcombine.low %v1811, %v1813
          %v1952 = vcombine.low %v1821, %v1829
          %v1954 = vunpack.c.l.s4 1983009808
          %v1955 = vunpack.c.0.s8 %v1954
          %v1956 = vlaneseq
          %v1957 = vshrl.u32 %v1956, 7
          %v1958 = vsub.s32 %v1955, %v1957
          %v1959 = vrot.slane %v1951, %v1958
          %v1961 = vunpack.c.l.s4 1983009808
          %v1962 = vunpack.c.0.s8 %v1961
          %v1963 = vlaneseq
          %v1964 = vshrl.u32 %v1963, 7
          %v1965 = vsub.s32 %v1962, %v1964
          %v1966 = vrot.slane %v1952, %v1965
          %v1967 = vcombine.low %v1959, %v1966
          %v1968 = vcombine.low %v1828, %v1830
          %v1969 = vcombine.low %v1838, %v1846
          %v1971 = vunpack.c.l.s4 1983009808
          %v1972 = vunpack.c.0.s8 %v1971
          %v1973 = vlaneseq
          %v1974 = vshrl.u32 %v1973, 7
          %v1975 = vsub.s32 %v1972, %v1974
          %v1976 = vrot.slane %v1968, %v1975
          %v1978 = vunpack.c.l.s4 1983009808
          %v1979 = vunpack.c.0.s8 %v1978
          %v1980 = vlaneseq
          %v1981 = vshrl.u32 %v1980, 7
          %v1982 = vsub.s32 %v1979, %v1981
          %v1983 = vrot.slane %v1969, %v1982
          %v1984 = vcombine.low %v1976, %v1983
          %v1985 = vcombine.low %v1847, %v1855
          %v1986 = vcombine.low %v1863, %v1862
          %v1988 = vunpack.c.l.s4 1983009808
          %v1989 = vunpack.c.0.s8 %v1988
          %v1990 = vlaneseq
          %v1991 = vshrl.u32 %v1990, 7
          %v1992 = vsub.s32 %v1989, %v1991
          %v1993 = vrot.slane %v1985, %v1992
          %v1995 = vunpack.c.l.s4 1983009808
          %v1996 = vunpack.c.0.s8 %v1995
          %v1997 = vlaneseq
          %v1998 = vshrl.u32 %v1997, 7
          %v1999 = vsub.s32 %v1996, %v1998
          %v2000 = vrot.slane %v1986, %v1999
          %v2001 = vcombine.low %v1993, %v2000
          %v2002 = vcombine.low %v1864, %v1872
          %v2003 = vcombine.low %v1880, %v1879
          %v2005 = vunpack.c.l.s4 1983009808
          %v2006 = vunpack.c.0.s8 %v2005
          %v2007 = vlaneseq
          %v2008 = vshrl.u32 %v2007, 7
          %v2009 = vsub.s32 %v2006, %v2008
          %v2010 = vrot.slane %v2002, %v2009
          %v2012 = vunpack.c.l.s4 1983009808
          %v2013 = vunpack.c.0.s8 %v2012
          %v2014 = vlaneseq
          %v2015 = vshrl.u32 %v2014, 7
          %v2016 = vsub.s32 %v2013, %v2015
          %v2017 = vrot.slane %v2003, %v2016
          %v2018 = vcombine.low %v2010, %v2017
          %v2027 = vpack.c.bf16 %v1916, %v1899
          %v2028 = vpack.c.bf16 %v1950, %v1933
          %v2029 = vpack.c.bf16 %v1984, %v1967
          %v2030 = vpack.c.bf16 %v2018, %v2001
          %v2031 = vld [vmem:[#allocation3] sm:$0xf]
          %v2032 = vld [vmem:[#allocation3 + $0x4] sm:$0xf]
          %v2033 = vld [vmem:[#allocation3 + $0x8] sm:$0xf]
          %v2034 = vld [vmem:[#allocation3 + $0xc] sm:$0xf]
          %v2035 = vrot.slane %v1736, 7
          %v2036 = vrot.slane %v2035, 2
          %v2037 = vrot.slane %v1744, 7
          %v2038 = vsel %vm964, %v2036, %v2037
          %v2039 = vrot.slane %v2037, 2
          %v2040 = vrot.slane %v1743, 7
          %v2041 = vsel %vm964, %v2039, %v2040
          %v2042 = vrot.slane %v2040, 2
          %v2043 = vrot.slane %v1745, 7
          %v2044 = vsel %vm964, %v2042, %v2043
          %v2045 = vrot.slane %v2043, 2
          %v2046 = vrot.slane %v1753, 7
          %v2047 = vsel %vm964, %v2045, %v2046
          %v2048 = vrot.slane %v2046, 2
          %v2049 = vrot.slane %v1761, 7
          %v2050 = vsel %vm964, %v2048, %v2049
          %v2051 = vrot.slane %v2049, 2
          %v2052 = vrot.slane %v1760, 7
          %v2053 = vsel %vm964, %v2051, %v2052
          %v2054 = vrot.slane %v2052, 2
          %v2055 = vrot.slane %v1762, 7
          %v2056 = vsel %vm964, %v2054, %v2055
          %v2057 = vrot.slane %v2055, 2
          %v2058 = vrot.slane %v1770, 7
          %v2059 = vsel %vm964, %v2057, %v2058
          %v2060 = vrot.slane %v1778, 7
          %v2061 = vrot.slane %v2060, 2
          %v2062 = vrot.slane %v1777, 7
          %v2063 = vsel %vm964, %v2061, %v2062
          %v2064 = vrot.slane %v2062, 2
          %v2065 = vrot.slane %v1779, 7
          %v2066 = vsel %vm964, %v2064, %v2065
          %v2067 = vrot.slane %v2065, 2
          %v2068 = vrot.slane %v1787, 7
          %v2069 = vsel %vm964, %v2067, %v2068
          %v2070 = vrot.slane %v2068, 2
          %v2071 = vrot.slane %v1795, 7
          %v2072 = vsel %vm964, %v2070, %v2071
          %v2073 = vrot.slane %v2071, 2
          %v2074 = vrot.slane %v1794, 7
          %v2075 = vsel %vm964, %v2073, %v2074
          %v2076 = vrot.slane %v2074, 2
          %v2077 = vrot.slane %v1796, 7
          %v2078 = vsel %vm964, %v2076, %v2077
          %v2079 = vrot.slane %v2077, 2
          %v2080 = vrot.slane %v1804, 7
          %v2081 = vsel %vm964, %v2079, %v2080
          %v2082 = vrot.slane %v2080, 2
          %v2083 = vrot.slane %v1812, 7
          %v2084 = vsel %vm964, %v2082, %v2083
          %v2085 = vrot.slane %v1811, 7
          %v2086 = vrot.slane %v2085, 2
          %v2087 = vrot.slane %v1813, 7
          %v2088 = vsel %vm964, %v2086, %v2087
          %v2089 = vrot.slane %v2087, 2
          %v2090 = vrot.slane %v1821, 7
          %v2091 = vsel %vm964, %v2089, %v2090
          %v2092 = vrot.slane %v2090, 2
          %v2093 = vrot.slane %v1829, 7
          %v2094 = vsel %vm964, %v2092, %v2093
          %v2095 = vrot.slane %v2093, 2
          %v2096 = vrot.slane %v1828, 7
          %v2097 = vsel %vm964, %v2095, %v2096
          %v2098 = vrot.slane %v2096, 2
          %v2099 = vrot.slane %v1830, 7
          %v2100 = vsel %vm964, %v2098, %v2099
          %v2101 = vrot.slane %v2099, 2
          %v2102 = vrot.slane %v1838, 7
          %v2103 = vsel %vm964, %v2101, %v2102
          %v2104 = vrot.slane %v2102, 2
          %v2105 = vrot.slane %v1846, 7
          %v2106 = vsel %vm964, %v2104, %v2105
          %v2107 = vrot.slane %v2105, 2
          %v2108 = vrot.slane %v1845, 7
          %v2109 = vsel %vm964, %v2107, %v2108
          %v2110 = vrot.slane %v1847, 7
          %v2111 = vrot.slane %v2110, 2
          %v2112 = vrot.slane %v1855, 7
          %v2113 = vsel %vm964, %v2111, %v2112
          %v2114 = vrot.slane %v2112, 2
          %v2115 = vrot.slane %v1863, 7
          %v2116 = vsel %vm964, %v2114, %v2115
          %v2117 = vrot.slane %v2115, 2
          %v2118 = vrot.slane %v1862, 7
          %v2119 = vsel %vm964, %v2117, %v2118
          %v2120 = vrot.slane %v2118, 2
          %v2121 = vrot.slane %v1864, 7
          %v2122 = vsel %vm964, %v2120, %v2121
          %v2123 = vrot.slane %v2121, 2
          %v2124 = vrot.slane %v1872, 7
          %v2125 = vsel %vm964, %v2123, %v2124
          %v2126 = vrot.slane %v2124, 2
          %v2127 = vrot.slane %v1880, 7
          %v2128 = vsel %vm964, %v2126, %v2127
          %v2129 = vrot.slane %v2127, 2
          %v2130 = vrot.slane %v1879, 7
          %v2131 = vsel %vm964, %v2129, %v2130
          %v2132 = vrot.slane %v2130, 2
          %v2133 = vrot.slane %v1881, 7
          %v2134 = vsel %vm964, %v2132, %v2133
          %v2135 = vcombine.low %v2038, %v2041
          %v2136 = vcombine.low %v2044, %v2047
          %v2138 = vunpack.c.l.s4 1983009808
          %v2139 = vunpack.c.0.s8 %v2138
          %v2140 = vlaneseq
          %v2141 = vshrl.u32 %v2140, 7
          %v2142 = vsub.s32 %v2139, %v2141
          %v2143 = vrot.slane %v2135, %v2142
          %v2145 = vunpack.c.l.s4 1983009808
          %v2146 = vunpack.c.0.s8 %v2145
          %v2147 = vlaneseq
          %v2148 = vshrl.u32 %v2147, 7
          %v2149 = vsub.s32 %v2146, %v2148
          %v2150 = vrot.slane %v2136, %v2149
          %v2151 = vcombine.low %v2143, %v2150
          %v2152 = vcombine.low %v2050, %v2053
          %v2153 = vcombine.low %v2056, %v2059
          %v2155 = vunpack.c.l.s4 1983009808
          %v2156 = vunpack.c.0.s8 %v2155
          %v2157 = vlaneseq
          %v2158 = vshrl.u32 %v2157, 7
          %v2159 = vsub.s32 %v2156, %v2158
          %v2160 = vrot.slane %v2152, %v2159
          %v2162 = vunpack.c.l.s4 1983009808
          %v2163 = vunpack.c.0.s8 %v2162
          %v2164 = vlaneseq
          %v2165 = vshrl.u32 %v2164, 7
          %v2166 = vsub.s32 %v2163, %v2165
          %v2167 = vrot.slane %v2153, %v2166
          %v2168 = vcombine.low %v2160, %v2167
          %v2169 = vcombine.low %v2063, %v2066
          %v2170 = vcombine.low %v2069, %v2072
          %v2172 = vunpack.c.l.s4 1983009808
          %v2173 = vunpack.c.0.s8 %v2172
          %v2174 = vlaneseq
          %v2175 = vshrl.u32 %v2174, 7
          %v2176 = vsub.s32 %v2173, %v2175
          %v2177 = vrot.slane %v2169, %v2176
          %v2179 = vunpack.c.l.s4 1983009808
          %v2180 = vunpack.c.0.s8 %v2179
          %v2181 = vlaneseq
          %v2182 = vshrl.u32 %v2181, 7
          %v2183 = vsub.s32 %v2180, %v2182
          %v2184 = vrot.slane %v2170, %v2183
          %v2185 = vcombine.low %v2177, %v2184
          %v2186 = vcombine.low %v2075, %v2078
          %v2187 = vcombine.low %v2081, %v2084
          %v2189 = vunpack.c.l.s4 1983009808
          %v2190 = vunpack.c.0.s8 %v2189
          %v2191 = vlaneseq
          %v2192 = vshrl.u32 %v2191, 7
          %v2193 = vsub.s32 %v2190, %v2192
          %v2194 = vrot.slane %v2186, %v2193
          %v2196 = vunpack.c.l.s4 1983009808
          %v2197 = vunpack.c.0.s8 %v2196
          %v2198 = vlaneseq
          %v2199 = vshrl.u32 %v2198, 7
          %v2200 = vsub.s32 %v2197, %v2199
          %v2201 = vrot.slane %v2187, %v2200
          %v2202 = vcombine.low %v2194, %v2201
          %v2203 = vcombine.low %v2088, %v2091
          %v2204 = vcombine.low %v2094, %v2097
          %v2206 = vunpack.c.l.s4 1983009808
          %v2207 = vunpack.c.0.s8 %v2206
          %v2208 = vlaneseq
          %v2209 = vshrl.u32 %v2208, 7
          %v2210 = vsub.s32 %v2207, %v2209
          %v2211 = vrot.slane %v2203, %v2210
          %v2213 = vunpack.c.l.s4 1983009808
          %v2214 = vunpack.c.0.s8 %v2213
          %v2215 = vlaneseq
          %v2216 = vshrl.u32 %v2215, 7
          %v2217 = vsub.s32 %v2214, %v2216
          %v2218 = vrot.slane %v2204, %v2217
          %v2219 = vcombine.low %v2211, %v2218
          %v2220 = vcombine.low %v2100, %v2103
          %v2221 = vcombine.low %v2106, %v2109
          %v2223 = vunpack.c.l.s4 1983009808
          %v2224 = vunpack.c.0.s8 %v2223
          %v2225 = vlaneseq
          %v2226 = vshrl.u32 %v2225, 7
          %v2227 = vsub.s32 %v2224, %v2226
          %v2228 = vrot.slane %v2220, %v2227
          %v2230 = vunpack.c.l.s4 1983009808
          %v2231 = vunpack.c.0.s8 %v2230
          %v2232 = vlaneseq
          %v2233 = vshrl.u32 %v2232, 7
          %v2234 = vsub.s32 %v2231, %v2233
          %v2235 = vrot.slane %v2221, %v2234
          %v2236 = vcombine.low %v2228, %v2235
          %v2237 = vcombine.low %v2113, %v2116
          %v2238 = vcombine.low %v2119, %v2122
          %v2240 = vunpack.c.l.s4 1983009808
          %v2241 = vunpack.c.0.s8 %v2240
          %v2242 = vlaneseq
          %v2243 = vshrl.u32 %v2242, 7
          %v2244 = vsub.s32 %v2241, %v2243
          %v2245 = vrot.slane %v2237, %v2244
          %v2247 = vunpack.c.l.s4 1983009808
          %v2248 = vunpack.c.0.s8 %v2247
          %v2249 = vlaneseq
          %v2250 = vshrl.u32 %v2249, 7
          %v2251 = vsub.s32 %v2248, %v2250
          %v2252 = vrot.slane %v2238, %v2251
          %v2253 = vcombine.low %v2245, %v2252
          %v2254 = vcombine.low %v2125, %v2128
          %v2255 = vcombine.low %v2131, %v2134
          %v2257 = vunpack.c.l.s4 1983009808
          %v2258 = vunpack.c.0.s8 %v2257
          %v2259 = vlaneseq
          %v2260 = vshrl.u32 %v2259, 7
          %v2261 = vsub.s32 %v2258, %v2260
          %v2262 = vrot.slane %v2254, %v2261
          %v2264 = vunpack.c.l.s4 1983009808
          %v2265 = vunpack.c.0.s8 %v2264
          %v2266 = vlaneseq
          %v2267 = vshrl.u32 %v2266, 7
          %v2268 = vsub.s32 %v2265, %v2267
          %v2269 = vrot.slane %v2255, %v2268
          %v2270 = vcombine.low %v2262, %v2269
          %v2279 = vpack.c.bf16 %v2168, %v2151
          %v2280 = vpack.c.bf16 %v2202, %v2185
          %v2281 = vpack.c.bf16 %v2236, %v2219
          %v2282 = vpack.c.bf16 %v2270, %v2253
          %s2283 = scalar_lea.vmem [#allocation3], 16
          %v2284 = vld [vmem:[%s2283] sm:$0xf]
          %v2285 = vld [vmem:[%s2283 + $0x4] sm:$0xf]
          %v2286 = vld [vmem:[%s2283 + $0x8] sm:$0xf]
          %v2287 = vld [vmem:[%s2283 + $0xc] sm:$0xf]
          %v2292 = vunpack.c.l.b16 %v2284
          %v2293 = vunpack.c.l.b16 %v2285
          %v2294 = vunpack.c.l.b16 %v2286
          %v2295 = vunpack.c.l.b16 %v2287
          %v2296 = vpack.c.b16 %v2293, %v2292
          %v2297 = vpack.c.b16 %v2295, %v2294
          %vm2300 = vcmask 261120
          %v2302 = vsel %vm2300, %v2279, 0
          %v2305 = vsel %vm2300, %v2280, 0
          %v2308 = vsel %vm2300, %v2281, 0
          %v2311 = vsel %vm2300, %v2282, 0
          %2313 = vmatprep.subr.bf16.mxu0 0
          %2314 = vmatpush1.bf16.msra.mxu0 %v2296
          %2315 = vmatprep.subr.bf16.mxu0 0
          %2316 = vmatpush1.bf16.msra.mxu0 %v2297
          %2317 = vmatprep.subr.bf16.mxu0 0
          %2318 = vmatpush1.bf16.msra.mxu0 0
          %2319 = vmatprep.subr.bf16.mxu0 0
          %2320 = vmatpush1.bf16.msra.mxu0 0
          %2321 = vmatprep.subr.bf16.mxu0 0
          %2322 = vmatpush1.bf16.msra.mxu0 0
          %2323 = vmatprep.subr.bf16.mxu0 0
          %2324 = vmatpush1.bf16.msra.mxu0 0
          %2325 = vmatprep.subr.bf16.mxu0 0
          %2326 = vmatpush1.bf16.msra.mxu0 0
          %2327 = vmatprep.subr.bf16.mxu0 0
          %2328 = vmatpush1.bf16.msra.mxu0 0
          %2329 = vmatprep.subr.bf16.mxu0 0
          %2330 = vmatpush1.bf16.msra.mxu0 0
          %2331 = vmatprep.subr.bf16.mxu0 0
          %2332 = vmatpush1.bf16.msra.mxu0 0
          %2333 = vmatprep.subr.bf16.mxu0 0
          %2334 = vmatpush1.bf16.msra.mxu0 0
          %2335 = vmatprep.subr.bf16.mxu0 0
          %2336 = vmatpush1.bf16.msra.mxu0 0
          %2337 = vmatprep.subr.bf16.mxu0 0
          %2338 = vmatpush1.bf16.msra.mxu0 0
          %2339 = vmatprep.subr.bf16.mxu0 0
          %2340 = vmatpush1.bf16.msra.mxu0 0
          %2341 = vmatprep.subr.bf16.mxu0 0
          %2342 = vmatpush1.bf16.msra.mxu0 0
          %2343 = vmatprep.subr.bf16.mxu0 0
          %2344 = vmatpush1.bf16.msra.mxu0 0
          %2345 = vmatprep.mubr.bf16.mxu0 0
          %2346 = vmatmul.mubr.bf16.gmra.mrb[0].mxu0 %v2302
          %v2347 = vpop.f32.mrb[0].mxu0
          %v2348 = vadd.f32 0.0, %v2347
          %v2349 = vpop.f32.mrb[0].mxu0
          %v2350 = vpop.f32.mrb[0].mxu0
          %v2351 = vadd.f32 0.0, %v2350
          %v2352 = vpop.f32.mrb[0].mxu0
          %2353 = vmatprep.mubr.bf16.mxu0 0
          %2354 = vmatmul.mubr.bf16.gmra.mrb[0].mxu0 %v2305
          %v2355 = vpop.f32.mrb[0].mxu0
          %v2356 = vadd.f32 0.0, %v2355
          %v2357 = vpop.f32.mrb[0].mxu0
          %v2358 = vpop.f32.mrb[0].mxu0
          %v2359 = vadd.f32 0.0, %v2358
          %v2360 = vpop.f32.mrb[0].mxu0
          %2361 = vmatprep.mubr.bf16.mxu0 0
          %2362 = vmatmul.mubr.bf16.gmra.mrb[0].mxu0 %v2308
          %v2363 = vpop.f32.mrb[0].mxu0
          %v2364 = vadd.f32 0.0, %v2363
          %v2365 = vpop.f32.mrb[0].mxu0
          %v2366 = vpop.f32.mrb[0].mxu0
          %v2367 = vadd.f32 0.0, %v2366
          %v2368 = vpop.f32.mrb[0].mxu0
          %2369 = vmatprep.mubr.bf16.mxu0 0
          %2370 = vmatmul.mubr.bf16.gmra.mrb[0].mxu0 %v2311
          %v2371 = vpop.f32.mrb[0].mxu0
          %v2372 = vadd.f32 0.0, %v2371
          %v2373 = vpop.f32.mrb[0].mxu0
          %v2374 = vpop.f32.mrb[0].mxu0
          %v2375 = vadd.f32 0.0, %v2374
          %v2376 = vpop.f32.mrb[0].mxu0
          %2377 = vdwg.mxu0
          %v2382 = vunpack.c.l.b16 %v2031
          %v2383 = vunpack.c.l.b16 %v2032
          %v2384 = vunpack.c.l.b16 %v2033
          %v2385 = vunpack.c.l.b16 %v2034
          %v2386 = vpack.c.b16 %v2383, %v2382
          %v2387 = vpack.c.b16 %v2385, %v2384
          %v2391 = vsel %vm2300, %v2027, 0
          %v2394 = vsel %vm2300, %v2028, 0
          %v2397 = vsel %vm2300, %v2029, 0
          %v2400 = vsel %vm2300, %v2030, 0
          %2402 = vmatprep.subr.bf16.mxu0 0
          %2403 = vmatpush1.bf16.msra.mxu0 %v2386
          %2404 = vmatprep.subr.bf16.mxu0 0
          %2405 = vmatpush1.bf16.msra.mxu0 %v2387
          %2406 = vmatprep.subr.bf16.mxu0 0
          %2407 = vmatpush1.bf16.msra.mxu0 0
          %2408 = vmatprep.subr.bf16.mxu0 0
          %2409 = vmatpush1.bf16.msra.mxu0 0
          %2410 = vmatprep.subr.bf16.mxu0 0
          %2411 = vmatpush1.bf16.msra.mxu0 0
          %2412 = vmatprep.subr.bf16.mxu0 0
          %2413 = vmatpush1.bf16.msra.mxu0 0
          %2414 = vmatprep.subr.bf16.mxu0 0
          %2415 = vmatpush1.bf16.msra.mxu0 0
          %2416 = vmatprep.subr.bf16.mxu0 0
          %2417 = vmatpush1.bf16.msra.mxu0 0
          %2418 = vmatprep.subr.bf16.mxu0 0
          %2419 = vmatpush1.bf16.msra.mxu0 0
          %2420 = vmatprep.subr.bf16.mxu0 0
          %2421 = vmatpush1.bf16.msra.mxu0 0
          %2422 = vmatprep.subr.bf16.mxu0 0
          %2423 = vmatpush1.bf16.msra.mxu0 0
          %2424 = vmatprep.subr.bf16.mxu0 0
          %2425 = vmatpush1.bf16.msra.mxu0 0
          %2426 = vmatprep.subr.bf16.mxu0 0
          %2427 = vmatpush1.bf16.msra.mxu0 0
          %2428 = vmatprep.subr.bf16.mxu0 0
          %2429 = vmatpush1.bf16.msra.mxu0 0
          %2430 = vmatprep.subr.bf16.mxu0 0
          %2431 = vmatpush1.bf16.msra.mxu0 0
          %2432 = vmatprep.subr.bf16.mxu0 0
          %2433 = vmatpush1.bf16.msra.mxu0 0
          %2434 = vmatprep.mubr.bf16.mxu0 0
          %2435 = vmatmul.mubr.bf16.gmra.mrb[0].mxu0 %v2391
          %v2436 = vpop.f32.mrb[0].mxu0
          %v2437 = vadd.f32 %v2348, %v2436
          %v2438 = vpop.f32.mrb[0].mxu0
          %v2439 = vpop.f32.mrb[0].mxu0
          %v2440 = vadd.f32 %v2351, %v2439
          %v2441 = vpop.f32.mrb[0].mxu0
          %2442 = vmatprep.mubr.bf16.mxu0 0
          %2443 = vmatmul.mubr.bf16.gmra.mrb[0].mxu0 %v2394
          %v2444 = vpop.f32.mrb[0].mxu0
          %v2445 = vadd.f32 %v2356, %v2444
          %v2446 = vpop.f32.mrb[0].mxu0
          %v2447 = vpop.f32.mrb[0].mxu0
          %v2448 = vadd.f32 %v2359, %v2447
          %v2449 = vpop.f32.mrb[0].mxu0
          %2450 = vmatprep.mubr.bf16.mxu0 0
          %2451 = vmatmul.mubr.bf16.gmra.mrb[0].mxu0 %v2397
          %v2452 = vpop.f32.mrb[0].mxu0
          %v2453 = vadd.f32 %v2364, %v2452
          %v2454 = vpop.f32.mrb[0].mxu0
          %v2455 = vpop.f32.mrb[0].mxu0
          %v2456 = vadd.f32 %v2367, %v2455
          %v2457 = vpop.f32.mrb[0].mxu0
          %2458 = vmatprep.mubr.bf16.mxu0 0
          %2459 = vmatmul.mubr.bf16.gmra.mrb[0].mxu0 %v2400
          %v2460 = vpop.f32.mrb[0].mxu0
          %v2461 = vadd.f32 %v2372, %v2460
          %v2462 = vpop.f32.mrb[0].mxu0
          %v2463 = vpop.f32.mrb[0].mxu0
          %v2464 = vadd.f32 %v2375, %v2463
          %v2465 = vpop.f32.mrb[0].mxu0
          %2466 = vdwg.mxu0
          %v2467 = vcombine.low %v1744, %v1743
          %v2468 = vcombine.low %v1745, %v1753
          %v2470 = vunpack.c.l.s4 1983009808
          %v2471 = vunpack.c.0.s8 %v2470
          %v2472 = vlaneseq
          %v2473 = vshrl.u32 %v2472, 7
          %v2474 = vsub.s32 %v2471, %v2473
          %v2475 = vrot.slane %v2467, %v2474
          %v2477 = vunpack.c.l.s4 1983009808
          %v2478 = vunpack.c.0.s8 %v2477
          %v2479 = vlaneseq
          %v2480 = vshrl.u32 %v2479, 7
          %v2481 = vsub.s32 %v2478, %v2480
          %v2482 = vrot.slane %v2468, %v2481
          %v2483 = vcombine.low %v2475, %v2482
          %v2484 = vcombine.low %v1761, %v1760
          %v2485 = vcombine.low %v1762, %v1770
          %v2487 = vunpack.c.l.s4 1983009808
          %v2488 = vunpack.c.0.s8 %v2487
          %v2489 = vlaneseq
          %v2490 = vshrl.u32 %v2489, 7
          %v2491 = vsub.s32 %v2488, %v2490
          %v2492 = vrot.slane %v2484, %v2491
          %v2494 = vunpack.c.l.s4 1983009808
          %v2495 = vunpack.c.0.s8 %v2494
          %v2496 = vlaneseq
          %v2497 = vshrl.u32 %v2496, 7
          %v2498 = vsub.s32 %v2495, %v2497
          %v2499 = vrot.slane %v2485, %v2498
          %v2500 = vcombine.low %v2492, %v2499
          %v2501 = vcombine.low %v1777, %v1779
          %v2502 = vcombine.low %v1787, %v1795
          %v2504 = vunpack.c.l.s4 1983009808
          %v2505 = vunpack.c.0.s8 %v2504
          %v2506 = vlaneseq
          %v2507 = vshrl.u32 %v2506, 7
          %v2508 = vsub.s32 %v2505, %v2507
          %v2509 = vrot.slane %v2501, %v2508
          %v2511 = vunpack.c.l.s4 1983009808
          %v2512 = vunpack.c.0.s8 %v2511
          %v2513 = vlaneseq
          %v2514 = vshrl.u32 %v2513, 7
          %v2515 = vsub.s32 %v2512, %v2514
          %v2516 = vrot.slane %v2502, %v2515
          %v2517 = vcombine.low %v2509, %v2516
          %v2518 = vcombine.low %v1794, %v1796
          %v2519 = vcombine.low %v1804, %v1812
          %v2521 = vunpack.c.l.s4 1983009808
          %v2522 = vunpack.c.0.s8 %v2521
          %v2523 = vlaneseq
          %v2524 = vshrl.u32 %v2523, 7
          %v2525 = vsub.s32 %v2522, %v2524
          %v2526 = vrot.slane %v2518, %v2525
          %v2528 = vunpack.c.l.s4 1983009808
          %v2529 = vunpack.c.0.s8 %v2528
          %v2530 = vlaneseq
          %v2531 = vshrl.u32 %v2530, 7
          %v2532 = vsub.s32 %v2529, %v2531
          %v2533 = vrot.slane %v2519, %v2532
          %v2534 = vcombine.low %v2526, %v2533
          %v2535 = vcombine.low %v1813, %v1821
          %v2536 = vcombine.low %v1829, %v1828
          %v2538 = vunpack.c.l.s4 1983009808
          %v2539 = vunpack.c.0.s8 %v2538
          %v2540 = vlaneseq
          %v2541 = vshrl.u32 %v2540, 7
          %v2542 = vsub.s32 %v2539, %v2541
          %v2543 = vrot.slane %v2535, %v2542
          %v2545 = vunpack.c.l.s4 1983009808
          %v2546 = vunpack.c.0.s8 %v2545
          %v2547 = vlaneseq
          %v2548 = vshrl.u32 %v2547, 7
          %v2549 = vsub.s32 %v2546, %v2548
          %v2550 = vrot.slane %v2536, %v2549
          %v2551 = vcombine.low %v2543, %v2550
          %v2552 = vcombine.low %v1830, %v1838
          %v2553 = vcombine.low %v1846, %v1845
          %v2555 = vunpack.c.l.s4 1983009808
          %v2556 = vunpack.c.0.s8 %v2555
          %v2557 = vlaneseq
          %v2558 = vshrl.u32 %v2557, 7
          %v2559 = vsub.s32 %v2556, %v2558
          %v2560 = vrot.slane %v2552, %v2559
          %v2562 = vunpack.c.l.s4 1983009808
          %v2563 = vunpack.c.0.s8 %v2562
          %v2564 = vlaneseq
          %v2565 = vshrl.u32 %v2564, 7
          %v2566 = vsub.s32 %v2563, %v2565
          %v2567 = vrot.slane %v2553, %v2566
          %v2568 = vcombine.low %v2560, %v2567
          %v2569 = vcombine.low %v1855, %v1863
          %v2570 = vcombine.low %v1862, %v1864
          %v2572 = vunpack.c.l.s4 1983009808
          %v2573 = vunpack.c.0.s8 %v2572
          %v2574 = vlaneseq
          %v2575 = vshrl.u32 %v2574, 7
          %v2576 = vsub.s32 %v2573, %v2575
          %v2577 = vrot.slane %v2569, %v2576
          %v2579 = vunpack.c.l.s4 1983009808
          %v2580 = vunpack.c.0.s8 %v2579
          %v2581 = vlaneseq
          %v2582 = vshrl.u32 %v2581, 7
          %v2583 = vsub.s32 %v2580, %v2582
          %v2584 = vrot.slane %v2570, %v2583
          %v2585 = vcombine.low %v2577, %v2584
          %v2586 = vcombine.low %v1872, %v1880
          %v2587 = vcombine.low %v1879, %v1881
          %v2589 = vunpack.c.l.s4 1983009808
          %v2590 = vunpack.c.0.s8 %v2589
          %v2591 = vlaneseq
          %v2592 = vshrl.u32 %v2591, 7
          %v2593 = vsub.s32 %v2590, %v2592
          %v2594 = vrot.slane %v2586, %v2593
          %v2596 = vunpack.c.l.s4 1983009808
          %v2597 = vunpack.c.0.s8 %v2596
          %v2598 = vlaneseq
          %v2599 = vshrl.u32 %v2598, 7
          %v2600 = vsub.s32 %v2597, %v2599
          %v2601 = vrot.slane %v2587, %v2600
          %v2602 = vcombine.low %v2594, %v2601
          %v2611 = vpack.c.bf16 %v2500, %v2483
          %v2612 = vpack.c.bf16 %v2534, %v2517
          %v2613 = vpack.c.bf16 %v2568, %v2551
          %v2614 = vpack.c.bf16 %v2602, %v2585
          %s2615 = scalar_lea.vmem [#allocation3], 32
          %v2616 = vld [vmem:[%s2615] sm:$0xf]
          %v2617 = vld [vmem:[%s2615 + $0x4] sm:$0xf]
          %v2618 = vld [vmem:[%s2615 + $0x8] sm:$0xf]
          %v2619 = vld [vmem:[%s2615 + $0xc] sm:$0xf]
          %v2624 = vunpack.c.l.b16 %v2616
          %v2625 = vunpack.c.l.b16 %v2617
          %v2626 = vunpack.c.l.b16 %v2618
          %v2627 = vunpack.c.l.b16 %v2619
          %v2628 = vpack.c.b16 %v2625, %v2624
          %v2629 = vpack.c.b16 %v2627, %v2626
          %v2633 = vsel %vm2300, %v2611, 0
          %v2636 = vsel %vm2300, %v2612, 0
          %v2639 = vsel %vm2300, %v2613, 0
          %v2642 = vsel %vm2300, %v2614, 0
          %2644 = vmatprep.subr.bf16.mxu0 0
          %2645 = vmatpush1.bf16.msra.mxu0 %v2628
          %2646 = vmatprep.subr.bf16.mxu0 0
          %2647 = vmatpush1.bf16.msra.mxu0 %v2629
          %2648 = vmatprep.subr.bf16.mxu0 0
          %2649 = vmatpush1.bf16.msra.mxu0 0
          %2650 = vmatprep.subr.bf16.mxu0 0
          %2651 = vmatpush1.bf16.msra.mxu0 0
          %2652 = vmatprep.subr.bf16.mxu0 0
          %2653 = vmatpush1.bf16.msra.mxu0 0
          %2654 = vmatprep.subr.bf16.mxu0 0
          %2655 = vmatpush1.bf16.msra.mxu0 0
          %2656 = vmatprep.subr.bf16.mxu0 0
          %2657 = vmatpush1.bf16.msra.mxu0 0
          %2658 = vmatprep.subr.bf16.mxu0 0
          %2659 = vmatpush1.bf16.msra.mxu0 0
          %2660 = vmatprep.subr.bf16.mxu0 0
          %2661 = vmatpush1.bf16.msra.mxu0 0
          %2662 = vmatprep.subr.bf16.mxu0 0
          %2663 = vmatpush1.bf16.msra.mxu0 0
          %2664 = vmatprep.subr.bf16.mxu0 0
          %2665 = vmatpush1.bf16.msra.mxu0 0
          %2666 = vmatprep.subr.bf16.mxu0 0
          %2667 = vmatpush1.bf16.msra.mxu0 0
          %2668 = vmatprep.subr.bf16.mxu0 0
          %2669 = vmatpush1.bf16.msra.mxu0 0
          %2670 = vmatprep.subr.bf16.mxu0 0
          %2671 = vmatpush1.bf16.msra.mxu0 0
          %2672 = vmatprep.subr.bf16.mxu0 0
          %2673 = vmatpush1.bf16.msra.mxu0 0
          %2674 = vmatprep.subr.bf16.mxu0 0
          %2675 = vmatpush1.bf16.msra.mxu0 0
          %2676 = vmatprep.mubr.bf16.mxu0 0
          %2677 = vmatmul.mubr.bf16.gmra.mrb[0].mxu0 %v2633
          %v2678 = vpop.f32.mrb[0].mxu0
          %v2679 = vadd.f32 0.0, %v2678
          %v2680 = vpop.f32.mrb[0].mxu0
          %v2681 = vpop.f32.mrb[0].mxu0
          %v2682 = vadd.f32 0.0, %v2681
          %v2683 = vpop.f32.mrb[0].mxu0
          %2684 = vmatprep.mubr.bf16.mxu0 0
          %2685 = vmatmul.mubr.bf16.gmra.mrb[0].mxu0 %v2636
          %v2686 = vpop.f32.mrb[0].mxu0
          %v2687 = vadd.f32 0.0, %v2686
          %v2688 = vpop.f32.mrb[0].mxu0
          %v2689 = vpop.f32.mrb[0].mxu0
          %v2690 = vadd.f32 0.0, %v2689
          %v2691 = vpop.f32.mrb[0].mxu0
          %2692 = vmatprep.mubr.bf16.mxu0 0
          %2693 = vmatmul.mubr.bf16.gmra.mrb[0].mxu0 %v2639
          %v2694 = vpop.f32.mrb[0].mxu0
          %v2695 = vadd.f32 0.0, %v2694
          %v2696 = vpop.f32.mrb[0].mxu0
          %v2697 = vpop.f32.mrb[0].mxu0
          %v2698 = vadd.f32 0.0, %v2697
          %v2699 = vpop.f32.mrb[0].mxu0
          %2700 = vmatprep.mubr.bf16.mxu0 0
          %2701 = vmatmul.mubr.bf16.gmra.mrb[0].mxu0 %v2642
          %v2702 = vpop.f32.mrb[0].mxu0
          %v2703 = vadd.f32 0.0, %v2702
          %v2704 = vpop.f32.mrb[0].mxu0
          %v2705 = vpop.f32.mrb[0].mxu0
          %v2706 = vadd.f32 0.0, %v2705
          %v2707 = vpop.f32.mrb[0].mxu0
          %2708 = vdwg.mxu0
          %v2709 = vadd.f32 %v2437, %v2679
          %v2710 = vadd.f32 %v2440, %v2682
          %v2711 = vadd.f32 %v2445, %v2687
          %v2712 = vadd.f32 %v2448, %v2690
          %v2713 = vadd.f32 %v2453, %v2695
          %v2714 = vadd.f32 %v2456, %v2698
          %v2715 = vadd.f32 %v2461, %v2703
          %v2716 = vadd.f32 %v2464, %v2706
          %v2718 = vlaneseq
          %v2719 = vshrl.u32 %v2718, 7
          %v2720 = vsub.s32 0, %v2719
          %v2721 = vrot.slane %v1882, %v2720
          %v2723 = vadd.f32 %v2709, %v2721
          %v2724 = vadd.f32 %v2710, %v2721
          %v2725 = vadd.f32 %v2711, %v2721
          %v2726 = vadd.f32 %v2712, %v2721
          %v2727 = vadd.f32 %v2713, %v2721
          %v2728 = vadd.f32 %v2714, %v2721
          %v2729 = vadd.f32 %v2715, %v2721
          %v2730 = vadd.f32 %v2716, %v2721
          %v2731 = vmax.f32 %v2723, 0.0
          %v2732 = vmax.f32 %v2724, 0.0
          %v2733 = vmax.f32 %v2725, 0.0
          %v2734 = vmax.f32 %v2726, 0.0
          %v2735 = vmax.f32 %v2727, 0.0
          %v2736 = vmax.f32 %v2728, 0.0
          %v2737 = vmax.f32 %v2729, 0.0
          %v2738 = vmax.f32 %v2730, 0.0
          %2739 = vst [vmem:[#allocation2] sm:$0xff] %v2731
          %2740 = vst [vmem:[#allocation2 + $0x8] sm:$0xff] %v2732
          %2741 = vst [vmem:[#allocation2 + $0x10] sm:$0xff] %v2733
          %2742 = vst [vmem:[#allocation2 + $0x18] sm:$0xff] %v2734
          %2743 = vst [vmem:[#allocation2 + $0x20] sm:$0xff] %v2735
          %2744 = vst [vmem:[#allocation2 + $0x28] sm:$0xff] %v2736
          %2745 = vst [vmem:[#allocation2 + $0x30] sm:$0xff] %v2737
          %2746 = vst [vmem:[#allocation2 + $0x38] sm:$0xff] %v2738
        $region84: #{tpu_custom_call.1} parent=63 // pred_fallthru
          _
        %v2747 = vld [vmem:[%s483] sm:$0xff]
        %v2748 = vld [vmem:[%s483 + $0x8] sm:$0xf]
        %v2749 = vld [vmem:[%s483 + $0xc] sm:$0xff]
        %v2750 = vld [vmem:[%s483 + $0x14] sm:$0xf]
        %v2751 = vld [vmem:[%s483 + $0x18] sm:$0xff]
        %v2752 = vld [vmem:[%s483 + $0x20] sm:$0xf]
        %v2753 = vld [vmem:[%s483 + $0x24] sm:$0xff]
        %v2754 = vld [vmem:[%s483 + $0x2c] sm:$0xf]
        %v2755 = vld [vmem:[%s483 + $0x30] sm:$0xff]
        %v2756 = vld [vmem:[%s483 + $0x38] sm:$0xf]
        %v2757 = vld [vmem:[%s483 + $0x3c] sm:$0xff]
        %v2758 = vld [vmem:[%s483 + $0x44] sm:$0xf]
        %v2759 = vld [vmem:[%s483 + $0x48] sm:$0xff]
        %v2760 = vld [vmem:[%s483 + $0x50] sm:$0xf]
        %v2761 = vld [vmem:[%s483 + $0x54] sm:$0xff]
        %v2762 = vld [vmem:[%s483 + $0x5c] sm:$0xf]
        %v2763 = vld [vmem:[%s483 + $0x60] sm:$0xff]
        %v2764 = vld [vmem:[%s483 + $0x68] sm:$0xf]
        %v2765 = vld [vmem:[%s483 + $0x6c] sm:$0xff]
        %v2766 = vld [vmem:[%s483 + $0x74] sm:$0xf]
        %v2767 = vld [vmem:[%s483 + $0x78] sm:$0xff]
        %v2768 = vld [vmem:[%s483 + $0x80] sm:$0xf]
        %v2769 = vld [vmem:[%s483 + $0x84] sm:$0xff]
        %v2770 = vld [vmem:[%s483 + $0x8c] sm:$0xf]
        %v2771 = vld [vmem:[%s483 + $0x90] sm:$0xff]
        %v2772 = vld [vmem:[%s483 + $0x98] sm:$0xf]
        %v2773 = vld [vmem:[%s483 + $0x9c] sm:$0xff]
        %v2774 = vld [vmem:[%s483 + $0xa4] sm:$0xf]
        %v2775 = vld [vmem:[%s483 + $0xa8] sm:$0xff]
        %v2776 = vld [vmem:[%s483 + $0xb0] sm:$0xf]
        %v2777 = vld [vmem:[%s483 + $0xb4] sm:$0xff]
        %v2778 = vld [vmem:[%s483 + $0xbc] sm:$0xf]
        %v2779 = vld [vmem:[%s492] sm:$0xf]
        %v2780 = vld [vmem:[%s492 + $0x4] sm:$0xf]
        %v2781 = vld [vmem:[%s492 + $0x8] sm:$0xf]
        %v2782 = vld [vmem:[%s492 + $0xc] sm:$0xf]
        %v2783 = vld [vmem:[%s492 + $0x10] sm:$0xf]
        %v2784 = vld [vmem:[%s492 + $0x14] sm:$0xf]
        %v2785 = vld [vmem:[%s492 + $0x18] sm:$0xf]
        %v2786 = vld [vmem:[%s492 + $0x1c] sm:$0xf]
        %v2787 = vld [vmem:[%s492 + $0x20] sm:$0xf]
        %v2788 = vld [vmem:[%s492 + $0x24] sm:$0xf]
        %v2789 = vld [vmem:[%s492 + $0x28] sm:$0xf]
        %v2790 = vld [vmem:[%s492 + $0x2c] sm:$0xf]
        %v2791 = vld [vmem:[%s492 + $0x30] sm:$0xf]
        %v2792 = vld [vmem:[%s492 + $0x34] sm:$0xf]
        %v2793 = vld [vmem:[%s492 + $0x38] sm:$0xf]
        %v2794 = vld [vmem:[%s492 + $0x3c] sm:$0xf]
        %v2795 = vld [vmem:[%s581] sm:$0xff]
        %v2796 = vld [vmem:[%s581 + $0x8] sm:$0xff]
        %v2797 = vld [vmem:[%s581 + $0x10] sm:$0xff]
        %v2798 = vld [vmem:[%s581 + $0x18] sm:$0xff]
        %v2799 = vld [vmem:[%s581 + $0x20] sm:$0xff]
        %v2800 = vld [vmem:[%s581 + $0x28] sm:$0xff]
        %v2801 = vld [vmem:[%s581 + $0x30] sm:$0xff]
        %v2802 = vld [vmem:[%s581 + $0x38] sm:$0xff]
        %v2803 = vld [vmem:[%s581 + $0x40] sm:$0xff]
        %v2804 = vld [vmem:[%s581 + $0x48] sm:$0xff]
        %v2805 = vld [vmem:[%s581 + $0x50] sm:$0xff]
        %v2806 = vld [vmem:[%s581 + $0x58] sm:$0xff]
        %v2807 = vld [vmem:[%s581 + $0x60] sm:$0xff]
        %v2808 = vld [vmem:[%s581 + $0x68] sm:$0xff]
        %v2809 = vld [vmem:[%s581 + $0x70] sm:$0xff]
        %v2810 = vld [vmem:[%s581 + $0x78] sm:$0xff]
        %v2811 = vld [vmem:[%s501] sm:$0xf]
        %v2812 = vld [vmem:[%s501 + $0x4] sm:$0xf]
        %v2813 = vld [vmem:[%s501 + $0x8] sm:$0xf]
        %v2814 = vld [vmem:[%s501 + $0xc] sm:$0xf]
        %v2815 = vld [vmem:[%s501 + $0x10] sm:$0xf]
        %v2816 = vld [vmem:[%s501 + $0x14] sm:$0xf]
        %v2817 = vld [vmem:[%s501 + $0x18] sm:$0xf]
        %v2818 = vld [vmem:[%s501 + $0x1c] sm:$0xf]
        %v2819 = vld [vmem:[%s501 + $0x20] sm:$0xf]
        %v2820 = vld [vmem:[%s501 + $0x24] sm:$0xf]
        %v2821 = vld [vmem:[%s501 + $0x28] sm:$0xf]
        %v2822 = vld [vmem:[%s501 + $0x2c] sm:$0xf]
        %v2823 = vld [vmem:[%s501 + $0x30] sm:$0xf]
        %v2824 = vld [vmem:[%s501 + $0x34] sm:$0xf]
        %v2825 = vld [vmem:[%s501 + $0x38] sm:$0xf]
        %v2826 = vld [vmem:[%s501 + $0x3c] sm:$0xf]
        %v2827 = vld [vmem:[%s501 + $0x40] sm:$0xf]
        %v2828 = vld [vmem:[%s501 + $0x44] sm:$0xf]
        %v2829 = vld [vmem:[%s501 + $0x48] sm:$0xf]
        %v2830 = vld [vmem:[%s501 + $0x4c] sm:$0xf]
        %v2831 = vld [vmem:[%s501 + $0x50] sm:$0xf]
        %v2832 = vld [vmem:[%s501 + $0x54] sm:$0xf]
        %v2833 = vld [vmem:[%s501 + $0x58] sm:$0xf]
        %v2834 = vld [vmem:[%s501 + $0x5c] sm:$0xf]
        %v2835 = vld [vmem:[%s501 + $0x60] sm:$0xf]
        %v2836 = vld [vmem:[%s501 + $0x64] sm:$0xf]
        %v2837 = vld [vmem:[%s501 + $0x68] sm:$0xf]
        %v2838 = vld [vmem:[%s501 + $0x6c] sm:$0xf]
        %v2839 = vld [vmem:[%s501 + $0x70] sm:$0xf]
        %v2840 = vld [vmem:[%s501 + $0x74] sm:$0xf]
        %v2841 = vld [vmem:[%s501 + $0x78] sm:$0xf]
        %v2842 = vld [vmem:[%s501 + $0x7c] sm:$0xf]
        %v2843 = vld [vmem:[%s585] sm:$0x3]
        %v2844 = vld [vmem:[%s590] sm:$0xff]
        %v2845 = vld [vmem:[%s590 + $0x8] sm:$0x1]
        %v2846 = vld [vmem:[#allocation2] sm:$0xff]
        %v2847 = vld [vmem:[#allocation2 + $0x8] sm:$0xff]
        %v2848 = vld [vmem:[#allocation2 + $0x10] sm:$0xff]
        %v2849 = vld [vmem:[#allocation2 + $0x18] sm:$0xff]
        %v2850 = vld [vmem:[#allocation2 + $0x20] sm:$0xff]
        %v2851 = vld [vmem:[#allocation2 + $0x28] sm:$0xff]
        %v2852 = vld [vmem:[#allocation2 + $0x30] sm:$0xff]
        %v2853 = vld [vmem:[#allocation2 + $0x38] sm:$0xff]
        %v2854 = vpack.c.bf16 %v2847, %v2846
        %v2855 = vpack.c.bf16 %v2849, %v2848
        %v2856 = vpack.c.bf16 %v2851, %v2850
        %v2857 = vpack.c.bf16 %v2853, %v2852
        %v2890 = vunpack.c.l.b16 %v2747
        %v2891 = vunpack.c.h.b16 %v2747
        %v2892 = vunpack.c.l.b16 %v2748
        %v2893 = vunpack.c.l.b16 %v2749
        %v2894 = vunpack.c.h.b16 %v2749
        %v2895 = vunpack.c.l.b16 %v2750
        %v2896 = vunpack.c.l.b16 %v2751
        %v2897 = vunpack.c.h.b16 %v2751
        %v2898 = vunpack.c.l.b16 %v2752
        %v2899 = vunpack.c.l.b16 %v2753
        %v2900 = vunpack.c.h.b16 %v2753
        %v2901 = vunpack.c.l.b16 %v2754
        %v2902 = vunpack.c.l.b16 %v2755
        %v2903 = vunpack.c.h.b16 %v2755
        %v2904 = vunpack.c.l.b16 %v2756
        %v2905 = vunpack.c.l.b16 %v2757
        %v2906 = vunpack.c.h.b16 %v2757
        %v2907 = vunpack.c.l.b16 %v2758
        %v2908 = vunpack.c.l.b16 %v2759
        %v2909 = vunpack.c.h.b16 %v2759
        %v2910 = vunpack.c.l.b16 %v2760
        %v2911 = vunpack.c.l.b16 %v2761
        %v2912 = vunpack.c.h.b16 %v2761
        %v2913 = vunpack.c.l.b16 %v2762
        %v2914 = vunpack.c.l.b16 %v2763
        %v2915 = vunpack.c.h.b16 %v2763
        %v2916 = vunpack.c.l.b16 %v2764
        %v2917 = vunpack.c.l.b16 %v2765
        %v2918 = vunpack.c.h.b16 %v2765
        %v2919 = vunpack.c.l.b16 %v2766
        %v2920 = vunpack.c.l.b16 %v2767
        %v2921 = vunpack.c.h.b16 %v2767
        %v2922 = vunpack.c.l.b16 %v2768
        %v2923 = vunpack.c.l.b16 %v2769
        %v2924 = vunpack.c.h.b16 %v2769
        %v2925 = vunpack.c.l.b16 %v2770
        %v2926 = vunpack.c.l.b16 %v2771
        %v2927 = vunpack.c.h.b16 %v2771
        %v2928 = vunpack.c.l.b16 %v2772
        %v2929 = vunpack.c.l.b16 %v2773
        %v2930 = vunpack.c.h.b16 %v2773
        %v2931 = vunpack.c.l.b16 %v2774
        %v2932 = vunpack.c.l.b16 %v2775
        %v2933 = vunpack.c.h.b16 %v2775
        %v2934 = vunpack.c.l.b16 %v2776
        %v2935 = vunpack.c.l.b16 %v2777
        %v2936 = vunpack.c.h.b16 %v2777
        %v2937 = vunpack.c.l.b16 %v2778
        %v2938 = vpack.c.b16 %v2893, %v2890
        %v2939 = vpack.c.b16 %v2894, %v2891
        %v2940 = vpack.c.b16 %v2895, %v2892
        %v2941 = vpack.c.b16 %v2899, %v2896
        %v2942 = vpack.c.b16 %v2900, %v2897
        %v2943 = vpack.c.b16 %v2901, %v2898
        %v2944 = vpack.c.b16 %v2905, %v2902
        %v2945 = vpack.c.b16 %v2906, %v2903
        %v2946 = vpack.c.b16 %v2907, %v2904
        %v2947 = vpack.c.b16 %v2911, %v2908
        %v2948 = vpack.c.b16 %v2912, %v2909
        %v2949 = vpack.c.b16 %v2913, %v2910
        %v2950 = vpack.c.b16 %v2917, %v2914
        %v2951 = vpack.c.b16 %v2918, %v2915
        %v2952 = vpack.c.b16 %v2919, %v2916
        %v2953 = vpack.c.b16 %v2923, %v2920
        %v2954 = vpack.c.b16 %v2924, %v2921
        %v2955 = vpack.c.b16 %v2925, %v2922
        %v2956 = vpack.c.b16 %v2929, %v2926
        %v2957 = vpack.c.b16 %v2930, %v2927
        %v2958 = vpack.c.b16 %v2931, %v2928
        %v2959 = vpack.c.b16 %v2935, %v2932
        %v2960 = vpack.c.b16 %v2936, %v2933
        %v2961 = vpack.c.b16 %v2937, %v2934
        %2986 = vmatprep.subr.bf16.mxu0 %v2939
        %2987 = vmatpush1.bf16.msra.mxu0 %v2938
        %2988 = vmatprep.subr.bf16.mxu0 %v2942
        %2989 = vmatpush1.bf16.msra.mxu0 %v2941
        %2990 = vmatprep.subr.bf16.mxu0 %v2945
        %2991 = vmatpush1.bf16.msra.mxu0 %v2944
        %2992 = vmatprep.subr.bf16.mxu0 %v2948
        %2993 = vmatpush1.bf16.msra.mxu0 %v2947
        %2994 = vmatprep.subr.bf16.mxu0 %v2951
        %2995 = vmatpush1.bf16.msra.mxu0 %v2950
        %2996 = vmatprep.subr.bf16.mxu0 %v2954
        %2997 = vmatpush1.bf16.msra.mxu0 %v2953
        %2998 = vmatprep.subr.bf16.mxu0 %v2957
        %2999 = vmatpush1.bf16.msra.mxu0 %v2956
        %3000 = vmatprep.subr.bf16.mxu0 %v2960
        %3001 = vmatpush1.bf16.msra.mxu0 %v2959
        %3002 = vmatprep.subr.bf16.mxu0 0
        %3003 = vmatpush1.bf16.msra.mxu0 0
        %3004 = vmatprep.subr.bf16.mxu0 0
        %3005 = vmatpush1.bf16.msra.mxu0 0
        %3006 = vmatprep.subr.bf16.mxu0 0
        %3007 = vmatpush1.bf16.msra.mxu0 0
        %3008 = vmatprep.subr.bf16.mxu0 0
        %3009 = vmatpush1.bf16.msra.mxu0 0
        %3010 = vmatprep.subr.bf16.mxu0 0
        %3011 = vmatpush1.bf16.msra.mxu0 0
        %3012 = vmatprep.subr.bf16.mxu0 0
        %3013 = vmatpush1.bf16.msra.mxu0 0
        %3014 = vmatprep.subr.bf16.mxu0 0
        %3015 = vmatpush1.bf16.msra.mxu0 0
        %3016 = vmatprep.subr.bf16.mxu0 0
        %3017 = vmatpush1.bf16.msra.mxu0 0
        %3018 = vmatprep.mubr.bf16.mxu0 0
        %3019 = vmatmul.mubr.bf16.gmra.mrb[0].mxu0 %v2854
        %v3020 = vpop.f32.mrb[0].mxu0
        %v3021 = vadd.f32 0.0, %v3020
        %v3022 = vpop.f32.mrb[0].mxu0
        %v3023 = vadd.f32 0.0, %v3022
        %v3024 = vpop.f32.mrb[0].mxu0
        %v3025 = vadd.f32 0.0, %v3024
        %v3026 = vpop.f32.mrb[0].mxu0
        %v3027 = vadd.f32 0.0, %v3026
        %3028 = vmatprep.mubr.bf16.mxu0 0
        %3029 = vmatmul.mubr.bf16.gmra.mrb[0].mxu0 %v2855
        %v3030 = vpop.f32.mrb[0].mxu0
        %v3031 = vadd.f32 0.0, %v3030
        %v3032 = vpop.f32.mrb[0].mxu0
        %v3033 = vadd.f32 0.0, %v3032
        %v3034 = vpop.f32.mrb[0].mxu0
        %v3035 = vadd.f32 0.0, %v3034
        %v3036 = vpop.f32.mrb[0].mxu0
        %v3037 = vadd.f32 0.0, %v3036
        %3038 = vmatprep.mubr.bf16.mxu0 0
        %3039 = vmatmul.mubr.bf16.gmra.mrb[0].mxu0 %v2856
        %v3040 = vpop.f32.mrb[0].mxu0
        %v3041 = vadd.f32 0.0, %v3040
        %v3042 = vpop.f32.mrb[0].mxu0
        %v3043 = vadd.f32 0.0, %v3042
        %v3044 = vpop.f32.mrb[0].mxu0
        %v3045 = vadd.f32 0.0, %v3044
        %v3046 = vpop.f32.mrb[0].mxu0
        %v3047 = vadd.f32 0.0, %v3046
        %3048 = vmatprep.mubr.bf16.mxu0 0
        %3049 = vmatmul.mubr.bf16.gmra.mrb[0].mxu0 %v2857
        %v3050 = vpop.f32.mrb[0].mxu0
        %v3051 = vadd.f32 0.0, %v3050
        %v3052 = vpop.f32.mrb[0].mxu0
        %v3053 = vadd.f32 0.0, %v3052
        %v3054 = vpop.f32.mrb[0].mxu0
        %v3055 = vadd.f32 0.0, %v3054
        %v3056 = vpop.f32.mrb[0].mxu0
        %v3057 = vadd.f32 0.0, %v3056
        %3058 = vdwg.mxu0
        %3059 = vmatprep.subr.bf16.mxu0 0
        %3060 = vmatpush1.bf16.msra.mxu0 %v2940
        %3061 = vmatprep.subr.bf16.mxu0 0
        %3062 = vmatpush1.bf16.msra.mxu0 %v2943
        %3063 = vmatprep.subr.bf16.mxu0 0
        %3064 = vmatpush1.bf16.msra.mxu0 %v2946
        %3065 = vmatprep.subr.bf16.mxu0 0
        %3066 = vmatpush1.bf16.msra.mxu0 %v2949
        %3067 = vmatprep.subr.bf16.mxu0 0
        %3068 = vmatpush1.bf16.msra.mxu0 %v2952
        %3069 = vmatprep.subr.bf16.mxu0 0
        %3070 = vmatpush1.bf16.msra.mxu0 %v2955
        %3071 = vmatprep.subr.bf16.mxu0 0
        %3072 = vmatpush1.bf16.msra.mxu0 %v2958
        %3073 = vmatprep.subr.bf16.mxu0 0
        %3074 = vmatpush1.bf16.msra.mxu0 %v2961
        %3075 = vmatprep.subr.bf16.mxu0 0
        %3076 = vmatpush1.bf16.msra.mxu0 0
        %3077 = vmatprep.subr.bf16.mxu0 0
        %3078 = vmatpush1.bf16.msra.mxu0 0
        %3079 = vmatprep.subr.bf16.mxu0 0
        %3080 = vmatpush1.bf16.msra.mxu0 0
        %3081 = vmatprep.subr.bf16.mxu0 0
        %3082 = vmatpush1.bf16.msra.mxu0 0
        %3083 = vmatprep.subr.bf16.mxu0 0
        %3084 = vmatpush1.bf16.msra.mxu0 0
        %3085 = vmatprep.subr.bf16.mxu0 0
        %3086 = vmatpush1.bf16.msra.mxu0 0
        %3087 = vmatprep.subr.bf16.mxu0 0
        %3088 = vmatpush1.bf16.msra.mxu0 0
        %3089 = vmatprep.subr.bf16.mxu0 0
        %3090 = vmatpush1.bf16.msra.mxu0 0
        %3091 = vmatprep.mubr.bf16.mxu0 0
        %3092 = vmatmul.mubr.bf16.gmra.mrb[0].mxu0 %v2854
        %v3093 = vpop.f32.mrb[0].mxu0
        %v3094 = vadd.f32 0.0, %v3093
        %v3095 = vpop.f32.mrb[0].mxu0
        %v3096 = vpop.f32.mrb[0].mxu0
        %v3097 = vadd.f32 0.0, %v3096
        %v3098 = vpop.f32.mrb[0].mxu0
        %3099 = vmatprep.mubr.bf16.mxu0 0
        %3100 = vmatmul.mubr.bf16.gmra.mrb[0].mxu0 %v2855
        %v3101 = vpop.f32.mrb[0].mxu0
        %v3102 = vadd.f32 0.0, %v3101
        %v3103 = vpop.f32.mrb[0].mxu0
        %v3104 = vpop.f32.mrb[0].mxu0
        %v3105 = vadd.f32 0.0, %v3104
        %v3106 = vpop.f32.mrb[0].mxu0
        %3107 = vmatprep.mubr.bf16.mxu0 0
        %3108 = vmatmul.mubr.bf16.gmra.mrb[0].mxu0 %v2856
        %v3109 = vpop.f32.mrb[0].mxu0
        %v3110 = vadd.f32 0.0, %v3109
        %v3111 = vpop.f32.mrb[0].mxu0
        %v3112 = vpop.f32.mrb[0].mxu0
        %v3113 = vadd.f32 0.0, %v3112
        %v3114 = vpop.f32.mrb[0].mxu0
        %3115 = vmatprep.mubr.bf16.mxu0 0
        %3116 = vmatmul.mubr.bf16.gmra.mrb[0].mxu0 %v2857
        %v3117 = vpop.f32.mrb[0].mxu0
        %v3118 = vadd.f32 0.0, %v3117
        %v3119 = vpop.f32.mrb[0].mxu0
        %v3120 = vpop.f32.mrb[0].mxu0
        %v3121 = vadd.f32 0.0, %v3120
        %v3122 = vpop.f32.mrb[0].mxu0
        %3123 = vdwg.mxu0
        %v3124 = vlaneseq
        %v3125 = vshrl.u32 %v3124, 7
        %v3126 = vsub.s32 0, %v3125
        %v3127 = vrot.slane %v2844, %v3126
        %v3128 = vadd.f32 %v3021, %v3127
        %v3129 = vadd.f32 %v3025, %v3127
        %v3130 = vadd.f32 %v3031, %v3127
        %v3131 = vadd.f32 %v3035, %v3127
        %v3132 = vadd.f32 %v3041, %v3127
        %v3133 = vadd.f32 %v3045, %v3127
        %v3134 = vadd.f32 %v3051, %v3127
        %v3135 = vadd.f32 %v3055, %v3127
        %v3136 = vpack.c.bf16 %v3129, %v3128
        %v3137 = vpack.c.bf16 %v3131, %v3130
        %v3138 = vpack.c.bf16 %v3133, %v3132
        %v3139 = vpack.c.bf16 %v3135, %v3134
        %v3140 = vlaneseq
        %v3141 = vshrl.u32 %v3140, 7
        %v3142 = vsub.s32 1, %v3141
        %v3143 = vrot.slane %v2844, %v3142
        %v3144 = vadd.f32 %v3023, %v3143
        %v3145 = vadd.f32 %v3027, %v3143
        %v3146 = vadd.f32 %v3033, %v3143
        %v3147 = vadd.f32 %v3037, %v3143
        %v3148 = vadd.f32 %v3043, %v3143
        %v3149 = vadd.f32 %v3047, %v3143
        %v3150 = vadd.f32 %v3053, %v3143
        %v3151 = vadd.f32 %v3057, %v3143
        %v3152 = vpack.c.bf16 %v3145, %v3144
        %v3153 = vpack.c.bf16 %v3147, %v3146
        %v3154 = vpack.c.bf16 %v3149, %v3148
        %v3155 = vpack.c.bf16 %v3151, %v3150
        %v3156 = vlaneseq
        %v3157 = vshrl.u32 %v3156, 7
        %v3158 = vsub.s32 2, %v3157
        %v3159 = vrot.slane %v2844, %v3158
        %v3160 = vadd.f32 %v3094, %v3159
        %v3161 = vadd.f32 %v3097, %v3159
        %v3162 = vadd.f32 %v3102, %v3159
        %v3163 = vadd.f32 %v3105, %v3159
        %v3164 = vadd.f32 %v3110, %v3159
        %v3165 = vadd.f32 %v3113, %v3159
        %v3166 = vadd.f32 %v3118, %v3159
        %v3167 = vadd.f32 %v3121, %v3159
        %v3168 = vpack.c.bf16 %v3161, %v3160
        %v3169 = vpack.c.bf16 %v3163, %v3162
        %v3170 = vpack.c.bf16 %v3165, %v3164
        %v3171 = vpack.c.bf16 %v3167, %v3166
        %vm3172 = vcmask 261120
        %v3174 = vsel %vm3172, %v3136, 0
        %v3177 = vsel %vm3172, %v3152, 0
        %3179 = vmatprep.subr.bf16.mxu0 0
        %3180 = vmatpush1.bf16.xpose.msra.mxu0 %v3177
        %3181 = vmatprep.subr.bf16.mxu0 0
        %3182 = vmatpush1.bf16.xpose.msra.mxu0 0
        %3183 = vmatprep.subr.bf16.mxu0 0
        %3184 = vmatpush1.bf16.xpose.msra.mxu0 0
        %3185 = vmatprep.subr.bf16.mxu0 0
        %3186 = vmatpush1.bf16.xpose.msra.mxu0 0
        %3187 = vmatprep.subr.bf16.mxu0 0
        %3188 = vmatpush1.bf16.xpose.msra.mxu0 0
        %3189 = vmatprep.subr.bf16.mxu0 0
        %3190 = vmatpush1.bf16.xpose.msra.mxu0 0
        %3191 = vmatprep.subr.bf16.mxu0 0
        %3192 = vmatpush1.bf16.xpose.msra.mxu0 0
        %3193 = vmatprep.subr.bf16.mxu0 0
        %3194 = vmatpush1.bf16.xpose.msra.mxu0 0
        %3195 = vmatprep.subr.bf16.mxu0 0
        %3196 = vmatpush1.bf16.xpose.msra.mxu0 0
        %3197 = vmatprep.subr.bf16.mxu0 0
        %3198 = vmatpush1.bf16.xpose.msra.mxu0 0
        %3199 = vmatprep.subr.bf16.mxu0 0
        %3200 = vmatpush1.bf16.xpose.msra.mxu0 0
        %3201 = vmatprep.subr.bf16.mxu0 0
        %3202 = vmatpush1.bf16.xpose.msra.mxu0 0
        %3203 = vmatprep.subr.bf16.mxu0 0
        %3204 = vmatpush1.bf16.xpose.msra.mxu0 0
        %3205 = vmatprep.subr.bf16.mxu0 0
        %3206 = vmatpush1.bf16.xpose.msra.mxu0 0
        %3207 = vmatprep.subr.bf16.mxu0 0
        %3208 = vmatpush1.bf16.xpose.msra.mxu0 0
        %3209 = vmatprep.subr.bf16.mxu0 0
        %3210 = vmatpush1.bf16.xpose.msra.mxu0 0
        %3211 = vmatprep.mubr.bf16.mxu0 0
        %3212 = vmatmul.mubr.bf16.gmra.mrb[0].mxu0 %v3174
        %v3213 = vpop.f32.mrb[0].mxu0
        %v3214 = vadd.f32 0.0, %v3213
        %v3215 = vpop.f32.mrb[0].mxu0
        %v3216 = vpop.f32.mrb[0].mxu0
        %v3217 = vadd.f32 0.0, %v3216
        %v3218 = vpop.f32.mrb[0].mxu0
        %3219 = vdwg.mxu0
        %v3221 = vsel %vm3172, %v3137, 0
        %v3224 = vsel %vm3172, %v3153, 0
        %3226 = vmatprep.subr.bf16.mxu0 0
        %3227 = vmatpush1.bf16.xpose.msra.mxu0 %v3224
        %3228 = vmatprep.subr.bf16.mxu0 0
        %3229 = vmatpush1.bf16.xpose.msra.mxu0 0
        %3230 = vmatprep.subr.bf16.mxu0 0
        %3231 = vmatpush1.bf16.xpose.msra.mxu0 0
        %3232 = vmatprep.subr.bf16.mxu0 0
        %3233 = vmatpush1.bf16.xpose.msra.mxu0 0
        %3234 = vmatprep.subr.bf16.mxu0 0
        %3235 = vmatpush1.bf16.xpose.msra.mxu0 0
        %3236 = vmatprep.subr.bf16.mxu0 0
        %3237 = vmatpush1.bf16.xpose.msra.mxu0 0
        %3238 = vmatprep.subr.bf16.mxu0 0
        %3239 = vmatpush1.bf16.xpose.msra.mxu0 0
        %3240 = vmatprep.subr.bf16.mxu0 0
        %3241 = vmatpush1.bf16.xpose.msra.mxu0 0
        %3242 = vmatprep.subr.bf16.mxu0 0
        %3243 = vmatpush1.bf16.xpose.msra.mxu0 0
        %3244 = vmatprep.subr.bf16.mxu0 0
        %3245 = vmatpush1.bf16.xpose.msra.mxu0 0
        %3246 = vmatprep.subr.bf16.mxu0 0
        %3247 = vmatpush1.bf16.xpose.msra.mxu0 0
        %3248 = vmatprep.subr.bf16.mxu0 0
        %3249 = vmatpush1.bf16.xpose.msra.mxu0 0
        %3250 = vmatprep.subr.bf16.mxu0 0
        %3251 = vmatpush1.bf16.xpose.msra.mxu0 0
        %3252 = vmatprep.subr.bf16.mxu0 0
        %3253 = vmatpush1.bf16.xpose.msra.mxu0 0
        %3254 = vmatprep.subr.bf16.mxu0 0
        %3255 = vmatpush1.bf16.xpose.msra.mxu0 0
        %3256 = vmatprep.subr.bf16.mxu0 0
        %3257 = vmatpush1.bf16.xpose.msra.mxu0 0
        %3258 = vmatprep.mubr.bf16.mxu0 0
        %3259 = vmatmul.mubr.bf16.gmra.mrb[0].mxu0 %v3221
        %v3260 = vpop.f32.mrb[0].mxu0
        %v3261 = vadd.f32 0.0, %v3260
        %v3262 = vpop.f32.mrb[0].mxu0
        %v3263 = vpop.f32.mrb[0].mxu0
        %v3264 = vadd.f32 0.0, %v3263
        %v3265 = vpop.f32.mrb[0].mxu0
        %3266 = vdwg.mxu0
        %v3268 = vsel %vm3172, %v3138, 0
        %v3271 = vsel %vm3172, %v3154, 0
        %3273 = vmatprep.subr.bf16.mxu0 0
        %3274 = vmatpush1.bf16.xpose.msra.mxu0 %v3271
        %3275 = vmatprep.subr.bf16.mxu0 0
        %3276 = vmatpush1.bf16.xpose.msra.mxu0 0
        %3277 = vmatprep.subr.bf16.mxu0 0
        %3278 = vmatpush1.bf16.xpose.msra.mxu0 0
        %3279 = vmatprep.subr.bf16.mxu0 0
        %3280 = vmatpush1.bf16.xpose.msra.mxu0 0
        %3281 = vmatprep.subr.bf16.mxu0 0
        %3282 = vmatpush1.bf16.xpose.msra.mxu0 0
        %3283 = vmatprep.subr.bf16.mxu0 0
        %3284 = vmatpush1.bf16.xpose.msra.mxu0 0
        %3285 = vmatprep.subr.bf16.mxu0 0
        %3286 = vmatpush1.bf16.xpose.msra.mxu0 0
        %3287 = vmatprep.subr.bf16.mxu0 0
        %3288 = vmatpush1.bf16.xpose.msra.mxu0 0
        %3289 = vmatprep.subr.bf16.mxu0 0
        %3290 = vmatpush1.bf16.xpose.msra.mxu0 0
        %3291 = vmatprep.subr.bf16.mxu0 0
        %3292 = vmatpush1.bf16.xpose.msra.mxu0 0
        %3293 = vmatprep.subr.bf16.mxu0 0
        %3294 = vmatpush1.bf16.xpose.msra.mxu0 0
        %3295 = vmatprep.subr.bf16.mxu0 0
        %3296 = vmatpush1.bf16.xpose.msra.mxu0 0
        %3297 = vmatprep.subr.bf16.mxu0 0
        %3298 = vmatpush1.bf16.xpose.msra.mxu0 0
        %3299 = vmatprep.subr.bf16.mxu0 0
        %3300 = vmatpush1.bf16.xpose.msra.mxu0 0
        %3301 = vmatprep.subr.bf16.mxu0 0
        %3302 = vmatpush1.bf16.xpose.msra.mxu0 0
        %3303 = vmatprep.subr.bf16.mxu0 0
        %3304 = vmatpush1.bf16.xpose.msra.mxu0 0
        %3305 = vmatprep.mubr.bf16.mxu0 0
        %3306 = vmatmul.mubr.bf16.gmra.mrb[0].mxu0 %v3268
        %v3307 = vpop.f32.mrb[0].mxu0
        %v3308 = vadd.f32 0.0, %v3307
        %v3309 = vpop.f32.mrb[0].mxu0
        %v3310 = vpop.f32.mrb[0].mxu0
        %v3311 = vadd.f32 0.0, %v3310
        %v3312 = vpop.f32.mrb[0].mxu0
        %3313 = vdwg.mxu0
        %v3315 = vsel %vm3172, %v3139, 0
        %v3318 = vsel %vm3172, %v3155, 0
        %3320 = vmatprep.subr.bf16.mxu0 0
        %3321 = vmatpush1.bf16.xpose.msra.mxu0 %v3318
        %3322 = vmatprep.subr.bf16.mxu0 0
        %3323 = vmatpush1.bf16.xpose.msra.mxu0 0
        %3324 = vmatprep.subr.bf16.mxu0 0
        %3325 = vmatpush1.bf16.xpose.msra.mxu0 0
        %3326 = vmatprep.subr.bf16.mxu0 0
        %3327 = vmatpush1.bf16.xpose.msra.mxu0 0
        %3328 = vmatprep.subr.bf16.mxu0 0
        %3329 = vmatpush1.bf16.xpose.msra.mxu0 0
        %3330 = vmatprep.subr.bf16.mxu0 0
        %3331 = vmatpush1.bf16.xpose.msra.mxu0 0
        %3332 = vmatprep.subr.bf16.mxu0 0
        %3333 = vmatpush1.bf16.xpose.msra.mxu0 0
        %3334 = vmatprep.subr.bf16.mxu0 0
        %3335 = vmatpush1.bf16.xpose.msra.mxu0 0
        %3336 = vmatprep.subr.bf16.mxu0 0
        %3337 = vmatpush1.bf16.xpose.msra.mxu0 0
        %3338 = vmatprep.subr.bf16.mxu0 0
        %3339 = vmatpush1.bf16.xpose.msra.mxu0 0
        %3340 = vmatprep.subr.bf16.mxu0 0
        %3341 = vmatpush1.bf16.xpose.msra.mxu0 0
        %3342 = vmatprep.subr.bf16.mxu0 0
        %3343 = vmatpush1.bf16.xpose.msra.mxu0 0
        %3344 = vmatprep.subr.bf16.mxu0 0
        %3345 = vmatpush1.bf16.xpose.msra.mxu0 0
        %3346 = vmatprep.subr.bf16.mxu0 0
        %3347 = vmatpush1.bf16.xpose.msra.mxu0 0
        %3348 = vmatprep.subr.bf16.mxu0 0
        %3349 = vmatpush1.bf16.xpose.msra.mxu0 0
        %3350 = vmatprep.subr.bf16.mxu0 0
        %3351 = vmatpush1.bf16.xpose.msra.mxu0 0
        %3352 = vmatprep.mubr.bf16.mxu0 0
        %3353 = vmatmul.mubr.bf16.gmra.mrb[0].mxu0 %v3315
        %v3354 = vpop.f32.mrb[0].mxu0
        %v3355 = vadd.f32 0.0, %v3354
        %v3356 = vpop.f32.mrb[0].mxu0
        %v3357 = vpop.f32.mrb[0].mxu0
        %v3358 = vadd.f32 0.0, %v3357
        %v3359 = vpop.f32.mrb[0].mxu0
        %3360 = vdwg.mxu0
        %v3361 = vmul.f32 %v3214, 0.17677669
        %v3362 = vmul.f32 %v3217, 0.17677669
        %v3363 = vmul.f32 %v3261, 0.17677669
        %v3364 = vmul.f32 %v3264, 0.17677669
        %v3365 = vmul.f32 %v3308, 0.17677669
        %v3366 = vmul.f32 %v3311, 0.17677669
        %v3367 = vmul.f32 %v3355, 0.17677669
        %v3368 = vmul.f32 %v3358, 0.17677669
        %vm3369 = vcmask 130048
        %v3370 = vsel %vm3369, %v3361, -inf
        %3371 = vmax.xlane.f32.xlu0 %v3370
        %v3372 = vpop.xlane.xlu0 %3371
        %v3373 = vsel %vm3369, %v3362, -inf
        %3374 = vmax.xlane.f32.xlu0 %v3373
        %v3375 = vpop.xlane.xlu0 %3374
        %v3376 = vsel %vm3369, %v3363, -inf
        %3377 = vmax.xlane.f32.xlu0 %v3376
        %v3378 = vpop.xlane.xlu0 %3377
        %v3379 = vsel %vm3369, %v3364, -inf
        %3380 = vmax.xlane.f32.xlu0 %v3379
        %v3381 = vpop.xlane.xlu0 %3380
        %v3382 = vsel %vm3369, %v3365, -inf
        %3383 = vmax.xlane.f32.xlu0 %v3382
        %v3384 = vpop.xlane.xlu0 %3383
        %v3385 = vsel %vm3369, %v3366, -inf
        %3386 = vmax.xlane.f32.xlu0 %v3385
        %v3387 = vpop.xlane.xlu0 %3386
        %v3388 = vsel %vm3369, %v3367, -inf
        %3389 = vmax.xlane.f32.xlu0 %v3388
        %v3390 = vpop.xlane.xlu0 %3389
        %v3391 = vsel %vm3369, %v3368, -inf
        %3392 = vmax.xlane.f32.xlu0 %v3391
        %v3393 = vpop.xlane.xlu0 %3392
        %v3394 = vsub.f32 %v3361, %v3372
        %v3395 = vsub.f32 %v3362, %v3375
        %v3396 = vsub.f32 %v3363, %v3378
        %v3397 = vsub.f32 %v3364, %v3381
        %v3398 = vsub.f32 %v3365, %v3384
        %v3399 = vsub.f32 %v3366, %v3387
        %v3400 = vsub.f32 %v3367, %v3390
        %v3401 = vsub.f32 %v3368, %v3393
        %v3402 = vmul.f32 %v3394, 1.442695
        %v3403 = vpow.pop %v3402
        %v3404 = vmul.f32 %v3395, 1.442695
        %v3405 = vpow.pop %v3404
        %v3406 = vmul.f32 %v3396, 1.442695
        %v3407 = vpow.pop %v3406
        %v3408 = vmul.f32 %v3397, 1.442695
        %v3409 = vpow.pop %v3408
        %v3410 = vmul.f32 %v3398, 1.442695
        %v3411 = vpow.pop %v3410
        %v3412 = vmul.f32 %v3399, 1.442695
        %v3413 = vpow.pop %v3412
        %v3414 = vmul.f32 %v3400, 1.442695
        %v3415 = vpow.pop %v3414
        %v3416 = vmul.f32 %v3401, 1.442695
        %v3417 = vpow.pop %v3416
        %v3418 = vsel %vm3369, %v3403, 0.0
        %3419 = vadd.xlane.f32.xlu0 %v3418
        %v3420 = vpop.xlane.xlu0 %3419
        %v3421 = vsel %vm3369, %v3405, 0.0
        %3422 = vadd.xlane.f32.xlu0 %v3421
        %v3423 = vpop.xlane.xlu0 %3422
        %v3424 = vsel %vm3369, %v3407, 0.0
        %3425 = vadd.xlane.f32.xlu0 %v3424
        %v3426 = vpop.xlane.xlu0 %3425
        %v3427 = vsel %vm3369, %v3409, 0.0
        %3428 = vadd.xlane.f32.xlu0 %v3427
        %v3429 = vpop.xlane.xlu0 %3428
        %v3430 = vsel %vm3369, %v3411, 0.0
        %3431 = vadd.xlane.f32.xlu0 %v3430
        %v3432 = vpop.xlane.xlu0 %3431
        %v3433 = vsel %vm3369, %v3413, 0.0
        %3434 = vadd.xlane.f32.xlu0 %v3433
        %v3435 = vpop.xlane.xlu0 %3434
        %v3436 = vsel %vm3369, %v3415, 0.0
        %3437 = vadd.xlane.f32.xlu0 %v3436
        %v3438 = vpop.xlane.xlu0 %3437
        %v3439 = vsel %vm3369, %v3417, 0.0
        %3440 = vadd.xlane.f32.xlu0 %v3439
        %v3441 = vpop.xlane.xlu0 %3440
        %v3442 = vrcp.pop %v3420
        %v3443 = vrcp.pop %v3423
        %v3444 = vrcp.pop %v3426
        %v3445 = vrcp.pop %v3429
        %v3446 = vrcp.pop %v3432
        %v3447 = vrcp.pop %v3435
        %v3448 = vrcp.pop %v3438
        %v3449 = vrcp.pop %v3441
        %v3450 = vmul.f32 %v3403, %v3442
        %v3451 = vmul.f32 %v3405, %v3443
        %v3452 = vmul.f32 %v3407, %v3444
        %v3453 = vmul.f32 %v3409, %v3445
        %v3454 = vmul.f32 %v3411, %v3446
        %v3455 = vmul.f32 %v3413, %v3447
        %v3456 = vmul.f32 %v3415, %v3448
        %v3457 = vmul.f32 %v3417, %v3449
        %v3458 = vpack.c.bf16 %v3451, %v3450
        %v3459 = vpack.c.bf16 %v3453, %v3452
        %v3460 = vpack.c.bf16 %v3455, %v3454
        %v3461 = vpack.c.bf16 %v3457, %v3456
        %v3463 = vsel %vm3369, %v3458, 0
        %3465 = vmatprep.subr.bf16.mxu0 0
        %3466 = vmatpush1.bf16.msra.mxu0 %v3168
        %3467 = vmatprep.subr.bf16.mxu0 0
        %3468 = vmatpush1.bf16.msra.mxu0 0
        %3469 = vmatprep.subr.bf16.mxu0 0
        %3470 = vmatpush1.bf16.msra.mxu0 0
        %3471 = vmatprep.subr.bf16.mxu0 0
        %3472 = vmatpush1.bf16.msra.mxu0 0
        %3473 = vmatprep.subr.bf16.mxu0 0
        %3474 = vmatpush1.bf16.msra.mxu0 0
        %3475 = vmatprep.subr.bf16.mxu0 0
        %3476 = vmatpush1.bf16.msra.mxu0 0
        %3477 = vmatprep.subr.bf16.mxu0 0
        %3478 = vmatpush1.bf16.msra.mxu0 0
        %3479 = vmatprep.subr.bf16.mxu0 0
        %3480 = vmatpush1.bf16.msra.mxu0 0
        %3481 = vmatprep.subr.bf16.mxu0 0
        %3482 = vmatpush1.bf16.msra.mxu0 0
        %3483 = vmatprep.subr.bf16.mxu0 0
        %3484 = vmatpush1.bf16.msra.mxu0 0
        %3485 = vmatprep.subr.bf16.mxu0 0
        %3486 = vmatpush1.bf16.msra.mxu0 0
        %3487 = vmatprep.subr.bf16.mxu0 0
        %3488 = vmatpush1.bf16.msra.mxu0 0
        %3489 = vmatprep.subr.bf16.mxu0 0
        %3490 = vmatpush1.bf16.msra.mxu0 0
        %3491 = vmatprep.subr.bf16.mxu0 0
        %3492 = vmatpush1.bf16.msra.mxu0 0
        %3493 = vmatprep.subr.bf16.mxu0 0
        %3494 = vmatpush1.bf16.msra.mxu0 0
        %3495 = vmatprep.subr.bf16.mxu0 0
        %3496 = vmatpush1.bf16.msra.mxu0 0
        %3497 = vmatprep.mubr.bf16.mxu0 0
        %3498 = vmatmul.mubr.bf16.gmra.mrb[0].mxu0 %v3463
        %v3499 = vpop.f32.mrb[0].mxu0
        %v3500 = vadd.f32 0.0, %v3499
        %v3501 = vpop.f32.mrb[0].mxu0
        %v3502 = vpop.f32.mrb[0].mxu0
        %v3503 = vadd.f32 0.0, %v3502
        %v3504 = vpop.f32.mrb[0].mxu0
        %3505 = vdwg.mxu0
        %v3507 = vsel %vm3369, %v3459, 0
        %3509 = vmatprep.subr.bf16.mxu0 0
        %3510 = vmatpush1.bf16.msra.mxu0 %v3169
        %3511 = vmatprep.subr.bf16.mxu0 0
        %3512 = vmatpush1.bf16.msra.mxu0 0
        %3513 = vmatprep.subr.bf16.mxu0 0
        %3514 = vmatpush1.bf16.msra.mxu0 0
        %3515 = vmatprep.subr.bf16.mxu0 0
        %3516 = vmatpush1.bf16.msra.mxu0 0
        %3517 = vmatprep.subr.bf16.mxu0 0
        %3518 = vmatpush1.bf16.msra.mxu0 0
        %3519 = vmatprep.subr.bf16.mxu0 0
        %3520 = vmatpush1.bf16.msra.mxu0 0
        %3521 = vmatprep.subr.bf16.mxu0 0
        %3522 = vmatpush1.bf16.msra.mxu0 0
        %3523 = vmatprep.subr.bf16.mxu0 0
        %3524 = vmatpush1.bf16.msra.mxu0 0
        %3525 = vmatprep.subr.bf16.mxu0 0
        %3526 = vmatpush1.bf16.msra.mxu0 0
        %3527 = vmatprep.subr.bf16.mxu0 0
        %3528 = vmatpush1.bf16.msra.mxu0 0
        %3529 = vmatprep.subr.bf16.mxu0 0
        %3530 = vmatpush1.bf16.msra.mxu0 0
        %3531 = vmatprep.subr.bf16.mxu0 0
        %3532 = vmatpush1.bf16.msra.mxu0 0
        %3533 = vmatprep.subr.bf16.mxu0 0
        %3534 = vmatpush1.bf16.msra.mxu0 0
        %3535 = vmatprep.subr.bf16.mxu0 0
        %3536 = vmatpush1.bf16.msra.mxu0 0
        %3537 = vmatprep.subr.bf16.mxu0 0
        %3538 = vmatpush1.bf16.msra.mxu0 0
        %3539 = vmatprep.subr.bf16.mxu0 0
        %3540 = vmatpush1.bf16.msra.mxu0 0
        %3541 = vmatprep.mubr.bf16.mxu0 0
        %3542 = vmatmul.mubr.bf16.gmra.mrb[0].mxu0 %v3507
        %v3543 = vpop.f32.mrb[0].mxu0
        %v3544 = vadd.f32 0.0, %v3543
        %v3545 = vpop.f32.mrb[0].mxu0
        %v3546 = vpop.f32.mrb[0].mxu0
        %v3547 = vadd.f32 0.0, %v3546
        %v3548 = vpop.f32.mrb[0].mxu0
        %3549 = vdwg.mxu0
        %v3551 = vsel %vm3369, %v3460, 0
        %3553 = vmatprep.subr.bf16.mxu0 0
        %3554 = vmatpush1.bf16.msra.mxu0 %v3170
        %3555 = vmatprep.subr.bf16.mxu0 0
        %3556 = vmatpush1.bf16.msra.mxu0 0
        %3557 = vmatprep.subr.bf16.mxu0 0
        %3558 = vmatpush1.bf16.msra.mxu0 0
        %3559 = vmatprep.subr.bf16.mxu0 0
        %3560 = vmatpush1.bf16.msra.mxu0 0
        %3561 = vmatprep.subr.bf16.mxu0 0
        %3562 = vmatpush1.bf16.msra.mxu0 0
        %3563 = vmatprep.subr.bf16.mxu0 0
        %3564 = vmatpush1.bf16.msra.mxu0 0
        %3565 = vmatprep.subr.bf16.mxu0 0
        %3566 = vmatpush1.bf16.msra.mxu0 0
        %3567 = vmatprep.subr.bf16.mxu0 0
        %3568 = vmatpush1.bf16.msra.mxu0 0
        %3569 = vmatprep.subr.bf16.mxu0 0
        %3570 = vmatpush1.bf16.msra.mxu0 0
        %3571 = vmatprep.subr.bf16.mxu0 0
        %3572 = vmatpush1.bf16.msra.mxu0 0
        %3573 = vmatprep.subr.bf16.mxu0 0
        %3574 = vmatpush1.bf16.msra.mxu0 0
        %3575 = vmatprep.subr.bf16.mxu0 0
        %3576 = vmatpush1.bf16.msra.mxu0 0
        %3577 = vmatprep.subr.bf16.mxu0 0
        %3578 = vmatpush1.bf16.msra.mxu0 0
        %3579 = vmatprep.subr.bf16.mxu0 0
        %3580 = vmatpush1.bf16.msra.mxu0 0
        %3581 = vmatprep.subr.bf16.mxu0 0
        %3582 = vmatpush1.bf16.msra.mxu0 0
        %3583 = vmatprep.subr.bf16.mxu0 0
        %3584 = vmatpush1.bf16.msra.mxu0 0
        %3585 = vmatprep.mubr.bf16.mxu0 0
        %3586 = vmatmul.mubr.bf16.gmra.mrb[0].mxu0 %v3551
        %v3587 = vpop.f32.mrb[0].mxu0
        %v3588 = vadd.f32 0.0, %v3587
        %v3589 = vpop.f32.mrb[0].mxu0
        %v3590 = vpop.f32.mrb[0].mxu0
        %v3591 = vadd.f32 0.0, %v3590
        %v3592 = vpop.f32.mrb[0].mxu0
        %3593 = vdwg.mxu0
        %v3595 = vsel %vm3369, %v3461, 0
        %3597 = vmatprep.subr.bf16.mxu0 0
        %3598 = vmatpush1.bf16.msra.mxu0 %v3171
        %3599 = vmatprep.subr.bf16.mxu0 0
        %3600 = vmatpush1.bf16.msra.mxu0 0
        %3601 = vmatprep.subr.bf16.mxu0 0
        %3602 = vmatpush1.bf16.msra.mxu0 0
        %3603 = vmatprep.subr.bf16.mxu0 0
        %3604 = vmatpush1.bf16.msra.mxu0 0
        %3605 = vmatprep.subr.bf16.mxu0 0
        %3606 = vmatpush1.bf16.msra.mxu0 0
        %3607 = vmatprep.subr.bf16.mxu0 0
        %3608 = vmatpush1.bf16.msra.mxu0 0
        %3609 = vmatprep.subr.bf16.mxu0 0
        %3610 = vmatpush1.bf16.msra.mxu0 0
        %3611 = vmatprep.subr.bf16.mxu0 0
        %3612 = vmatpush1.bf16.msra.mxu0 0
        %3613 = vmatprep.subr.bf16.mxu0 0
        %3614 = vmatpush1.bf16.msra.mxu0 0
        %3615 = vmatprep.subr.bf16.mxu0 0
        %3616 = vmatpush1.bf16.msra.mxu0 0
        %3617 = vmatprep.subr.bf16.mxu0 0
        %3618 = vmatpush1.bf16.msra.mxu0 0
        %3619 = vmatprep.subr.bf16.mxu0 0
        %3620 = vmatpush1.bf16.msra.mxu0 0
        %3621 = vmatprep.subr.bf16.mxu0 0
        %3622 = vmatpush1.bf16.msra.mxu0 0
        %3623 = vmatprep.subr.bf16.mxu0 0
        %3624 = vmatpush1.bf16.msra.mxu0 0
        %3625 = vmatprep.subr.bf16.mxu0 0
        %3626 = vmatpush1.bf16.msra.mxu0 0
        %3627 = vmatprep.subr.bf16.mxu0 0
        %3628 = vmatpush1.bf16.msra.mxu0 0
        %3629 = vmatprep.mubr.bf16.mxu0 0
        %3630 = vmatmul.mubr.bf16.gmra.mrb[0].mxu0 %v3595
        %v3631 = vpop.f32.mrb[0].mxu0
        %v3632 = vadd.f32 0.0, %v3631
        %v3633 = vpop.f32.mrb[0].mxu0
        %v3634 = vpop.f32.mrb[0].mxu0
        %v3635 = vadd.f32 0.0, %v3634
        %v3636 = vpop.f32.mrb[0].mxu0
        %3637 = vdwg.mxu0
        %3639 = vrot.lane.b32.xlu0 %v3136, 96
        %v3640 = vpop.permute.xlu0 %3639
        %3642 = vrot.lane.b32.xlu0 %v3152, 96
        %v3643 = vpop.permute.xlu0 %3642
        %v3645 = vsel %vm3172, %v3640, 0
        %v3648 = vsel %vm3172, %v3643, 0
        %3650 = vmatprep.subr.bf16.mxu0 0
        %3651 = vmatpush1.bf16.xpose.msra.mxu0 %v3648
        %3652 = vmatprep.subr.bf16.mxu0 0
        %3653 = vmatpush1.bf16.xpose.msra.mxu0 0
        %3654 = vmatprep.subr.bf16.mxu0 0
        %3655 = vmatpush1.bf16.xpose.msra.mxu0 0
        %3656 = vmatprep.subr.bf16.mxu0 0
        %3657 = vmatpush1.bf16.xpose.msra.mxu0 0
        %3658 = vmatprep.subr.bf16.mxu0 0
        %3659 = vmatpush1.bf16.xpose.msra.mxu0 0
        %3660 = vmatprep.subr.bf16.mxu0 0
        %3661 = vmatpush1.bf16.xpose.msra.mxu0 0
        %3662 = vmatprep.subr.bf16.mxu0 0
        %3663 = vmatpush1.bf16.xpose.msra.mxu0 0
        %3664 = vmatprep.subr.bf16.mxu0 0
        %3665 = vmatpush1.bf16.xpose.msra.mxu0 0
        %3666 = vmatprep.subr.bf16.mxu0 0
        %3667 = vmatpush1.bf16.xpose.msra.mxu0 0
        %3668 = vmatprep.subr.bf16.mxu0 0
        %3669 = vmatpush1.bf16.xpose.msra.mxu0 0
        %3670 = vmatprep.subr.bf16.mxu0 0
        %3671 = vmatpush1.bf16.xpose.msra.mxu0 0
        %3672 = vmatprep.subr.bf16.mxu0 0
        %3673 = vmatpush1.bf16.xpose.msra.mxu0 0
        %3674 = vmatprep.subr.bf16.mxu0 0
        %3675 = vmatpush1.bf16.xpose.msra.mxu0 0
        %3676 = vmatprep.subr.bf16.mxu0 0
        %3677 = vmatpush1.bf16.xpose.msra.mxu0 0
        %3678 = vmatprep.subr.bf16.mxu0 0
        %3679 = vmatpush1.bf16.xpose.msra.mxu0 0
        %3680 = vmatprep.subr.bf16.mxu0 0
        %3681 = vmatpush1.bf16.xpose.msra.mxu0 0
        %3682 = vmatprep.mubr.bf16.mxu0 0
        %3683 = vmatmul.mubr.bf16.gmra.mrb[0].mxu0 %v3645
        %v3684 = vpop.f32.mrb[0].mxu0
        %v3685 = vadd.f32 0.0, %v3684
        %v3686 = vpop.f32.mrb[0].mxu0
        %v3687 = vpop.f32.mrb[0].mxu0
        %v3688 = vadd.f32 0.0, %v3687
        %v3689 = vpop.f32.mrb[0].mxu0
        %3690 = vdwg.mxu0
        %3692 = vrot.lane.b32.xlu0 %v3137, 96
        %v3693 = vpop.permute.xlu0 %3692
        %3695 = vrot.lane.b32.xlu0 %v3153, 96
        %v3696 = vpop.permute.xlu0 %3695
        %v3698 = vsel %vm3172, %v3693, 0
        %v3701 = vsel %vm3172, %v3696, 0
        %3703 = vmatprep.subr.bf16.mxu0 0
        %3704 = vmatpush1.bf16.xpose.msra.mxu0 %v3701
        %3705 = vmatprep.subr.bf16.mxu0 0
        %3706 = vmatpush1.bf16.xpose.msra.mxu0 0
        %3707 = vmatprep.subr.bf16.mxu0 0
        %3708 = vmatpush1.bf16.xpose.msra.mxu0 0
        %3709 = vmatprep.subr.bf16.mxu0 0
        %3710 = vmatpush1.bf16.xpose.msra.mxu0 0
        %3711 = vmatprep.subr.bf16.mxu0 0
        %3712 = vmatpush1.bf16.xpose.msra.mxu0 0
        %3713 = vmatprep.subr.bf16.mxu0 0
        %3714 = vmatpush1.bf16.xpose.msra.mxu0 0
        %3715 = vmatprep.subr.bf16.mxu0 0
        %3716 = vmatpush1.bf16.xpose.msra.mxu0 0
        %3717 = vmatprep.subr.bf16.mxu0 0
        %3718 = vmatpush1.bf16.xpose.msra.mxu0 0
        %3719 = vmatprep.subr.bf16.mxu0 0
        %3720 = vmatpush1.bf16.xpose.msra.mxu0 0
        %3721 = vmatprep.subr.bf16.mxu0 0
        %3722 = vmatpush1.bf16.xpose.msra.mxu0 0
        %3723 = vmatprep.subr.bf16.mxu0 0
        %3724 = vmatpush1.bf16.xpose.msra.mxu0 0
        %3725 = vmatprep.subr.bf16.mxu0 0
        %3726 = vmatpush1.bf16.xpose.msra.mxu0 0
        %3727 = vmatprep.subr.bf16.mxu0 0
        %3728 = vmatpush1.bf16.xpose.msra.mxu0 0
        %3729 = vmatprep.subr.bf16.mxu0 0
        %3730 = vmatpush1.bf16.xpose.msra.mxu0 0
        %3731 = vmatprep.subr.bf16.mxu0 0
        %3732 = vmatpush1.bf16.xpose.msra.mxu0 0
        %3733 = vmatprep.subr.bf16.mxu0 0
        %3734 = vmatpush1.bf16.xpose.msra.mxu0 0
        %3735 = vmatprep.mubr.bf16.mxu0 0
        %3736 = vmatmul.mubr.bf16.gmra.mrb[0].mxu0 %v3698
        %v3737 = vpop.f32.mrb[0].mxu0
        %v3738 = vadd.f32 0.0, %v3737
        %v3739 = vpop.f32.mrb[0].mxu0
        %v3740 = vpop.f32.mrb[0].mxu0
        %v3741 = vadd.f32 0.0, %v3740
        %v3742 = vpop.f32.mrb[0].mxu0
        %3743 = vdwg.mxu0
        %3745 = vrot.lane.b32.xlu0 %v3138, 96
        %v3746 = vpop.permute.xlu0 %3745
        %3748 = vrot.lane.b32.xlu0 %v3154, 96
        %v3749 = vpop.permute.xlu0 %3748
        %v3751 = vsel %vm3172, %v3746, 0
        %v3754 = vsel %vm3172, %v3749, 0
        %3756 = vmatprep.subr.bf16.mxu0 0
        %3757 = vmatpush1.bf16.xpose.msra.mxu0 %v3754
        %3758 = vmatprep.subr.bf16.mxu0 0
        %3759 = vmatpush1.bf16.xpose.msra.mxu0 0
        %3760 = vmatprep.subr.bf16.mxu0 0
        %3761 = vmatpush1.bf16.xpose.msra.mxu0 0
        %3762 = vmatprep.subr.bf16.mxu0 0
        %3763 = vmatpush1.bf16.xpose.msra.mxu0 0
        %3764 = vmatprep.subr.bf16.mxu0 0
        %3765 = vmatpush1.bf16.xpose.msra.mxu0 0
        %3766 = vmatprep.subr.bf16.mxu0 0
        %3767 = vmatpush1.bf16.xpose.msra.mxu0 0
        %3768 = vmatprep.subr.bf16.mxu0 0
        %3769 = vmatpush1.bf16.xpose.msra.mxu0 0
        %3770 = vmatprep.subr.bf16.mxu0 0
        %3771 = vmatpush1.bf16.xpose.msra.mxu0 0
        %3772 = vmatprep.subr.bf16.mxu0 0
        %3773 = vmatpush1.bf16.xpose.msra.mxu0 0
        %3774 = vmatprep.subr.bf16.mxu0 0
        %3775 = vmatpush1.bf16.xpose.msra.mxu0 0
        %3776 = vmatprep.subr.bf16.mxu0 0
        %3777 = vmatpush1.bf16.xpose.msra.mxu0 0
        %3778 = vmatprep.subr.bf16.mxu0 0
        %3779 = vmatpush1.bf16.xpose.msra.mxu0 0
        %3780 = vmatprep.subr.bf16.mxu0 0
        %3781 = vmatpush1.bf16.xpose.msra.mxu0 0
        %3782 = vmatprep.subr.bf16.mxu0 0
        %3783 = vmatpush1.bf16.xpose.msra.mxu0 0
        %3784 = vmatprep.subr.bf16.mxu0 0
        %3785 = vmatpush1.bf16.xpose.msra.mxu0 0
        %3786 = vmatprep.subr.bf16.mxu0 0
        %3787 = vmatpush1.bf16.xpose.msra.mxu0 0
        %3788 = vmatprep.mubr.bf16.mxu0 0
        %3789 = vmatmul.mubr.bf16.gmra.mrb[0].mxu0 %v3751
        %v3790 = vpop.f32.mrb[0].mxu0
        %v3791 = vadd.f32 0.0, %v3790
        %v3792 = vpop.f32.mrb[0].mxu0
        %v3793 = vpop.f32.mrb[0].mxu0
        %v3794 = vadd.f32 0.0, %v3793
        %v3795 = vpop.f32.mrb[0].mxu0
        %3796 = vdwg.mxu0
        %3798 = vrot.lane.b32.xlu0 %v3139, 96
        %v3799 = vpop.permute.xlu0 %3798
        %3801 = vrot.lane.b32.xlu0 %v3155, 96
        %v3802 = vpop.permute.xlu0 %3801
        %v3804 = vsel %vm3172, %v3799, 0
        %v3807 = vsel %vm3172, %v3802, 0
        %3809 = vmatprep.subr.bf16.mxu0 0
        %3810 = vmatpush1.bf16.xpose.msra.mxu0 %v3807
        %3811 = vmatprep.subr.bf16.mxu0 0
        %3812 = vmatpush1.bf16.xpose.msra.mxu0 0
        %3813 = vmatprep.subr.bf16.mxu0 0
        %3814 = vmatpush1.bf16.xpose.msra.mxu0 0
        %3815 = vmatprep.subr.bf16.mxu0 0
        %3816 = vmatpush1.bf16.xpose.msra.mxu0 0
        %3817 = vmatprep.subr.bf16.mxu0 0
        %3818 = vmatpush1.bf16.xpose.msra.mxu0 0
        %3819 = vmatprep.subr.bf16.mxu0 0
        %3820 = vmatpush1.bf16.xpose.msra.mxu0 0
        %3821 = vmatprep.subr.bf16.mxu0 0
        %3822 = vmatpush1.bf16.xpose.msra.mxu0 0
        %3823 = vmatprep.subr.bf16.mxu0 0
        %3824 = vmatpush1.bf16.xpose.msra.mxu0 0
        %3825 = vmatprep.subr.bf16.mxu0 0
        %3826 = vmatpush1.bf16.xpose.msra.mxu0 0
        %3827 = vmatprep.subr.bf16.mxu0 0
        %3828 = vmatpush1.bf16.xpose.msra.mxu0 0
        %3829 = vmatprep.subr.bf16.mxu0 0
        %3830 = vmatpush1.bf16.xpose.msra.mxu0 0
        %3831 = vmatprep.subr.bf16.mxu0 0
        %3832 = vmatpush1.bf16.xpose.msra.mxu0 0
        %3833 = vmatprep.subr.bf16.mxu0 0
        %3834 = vmatpush1.bf16.xpose.msra.mxu0 0
        %3835 = vmatprep.subr.bf16.mxu0 0
        %3836 = vmatpush1.bf16.xpose.msra.mxu0 0
        %3837 = vmatprep.subr.bf16.mxu0 0
        %3838 = vmatpush1.bf16.xpose.msra.mxu0 0
        %3839 = vmatprep.subr.bf16.mxu0 0
        %3840 = vmatpush1.bf16.xpose.msra.mxu0 0
        %3841 = vmatprep.mubr.bf16.mxu0 0
        %3842 = vmatmul.mubr.bf16.gmra.mrb[0].mxu0 %v3804
        %v3843 = vpop.f32.mrb[0].mxu0
        %v3844 = vadd.f32 0.0, %v3843
        %v3845 = vpop.f32.mrb[0].mxu0
        %v3846 = vpop.f32.mrb[0].mxu0
        %v3847 = vadd.f32 0.0, %v3846
        %v3848 = vpop.f32.mrb[0].mxu0
        %3849 = vdwg.mxu0
        %v3850 = vmul.f32 %v3685, 0.17677669
        %v3851 = vmul.f32 %v3688, 0.17677669
        %v3852 = vmul.f32 %v3738, 0.17677669
        %v3853 = vmul.f32 %v3741, 0.17677669
        %v3854 = vmul.f32 %v3791, 0.17677669
        %v3855 = vmul.f32 %v3794, 0.17677669
        %v3856 = vmul.f32 %v3844, 0.17677669
        %v3857 = vmul.f32 %v3847, 0.17677669
        %v3858 = vsel %vm3369, %v3850, -inf
        %3859 = vmax.xlane.f32.xlu0 %v3858
        %v3860 = vpop.xlane.xlu0 %3859
        %v3861 = vsel %vm3369, %v3851, -inf
        %3862 = vmax.xlane.f32.xlu0 %v3861
        %v3863 = vpop.xlane.xlu0 %3862
        %v3864 = vsel %vm3369, %v3852, -inf
        %3865 = vmax.xlane.f32.xlu0 %v3864
        %v3866 = vpop.xlane.xlu0 %3865
        %v3867 = vsel %vm3369, %v3853, -inf
        %3868 = vmax.xlane.f32.xlu0 %v3867
        %v3869 = vpop.xlane.xlu0 %3868
        %v3870 = vsel %vm3369, %v3854, -inf
        %3871 = vmax.xlane.f32.xlu0 %v3870
        %v3872 = vpop.xlane.xlu0 %3871
        %v3873 = vsel %vm3369, %v3855, -inf
        %3874 = vmax.xlane.f32.xlu0 %v3873
        %v3875 = vpop.xlane.xlu0 %3874
        %v3876 = vsel %vm3369, %v3856, -inf
        %3877 = vmax.xlane.f32.xlu0 %v3876
        %v3878 = vpop.xlane.xlu0 %3877
        %v3879 = vsel %vm3369, %v3857, -inf
        %3880 = vmax.xlane.f32.xlu0 %v3879
        %v3881 = vpop.xlane.xlu0 %3880
        %v3882 = vsub.f32 %v3850, %v3860
        %v3883 = vsub.f32 %v3851, %v3863
        %v3884 = vsub.f32 %v3852, %v3866
        %v3885 = vsub.f32 %v3853, %v3869
        %v3886 = vsub.f32 %v3854, %v3872
        %v3887 = vsub.f32 %v3855, %v3875
        %v3888 = vsub.f32 %v3856, %v3878
        %v3889 = vsub.f32 %v3857, %v3881
        %v3890 = vmul.f32 %v3882, 1.442695
        %v3891 = vpow.pop %v3890
        %v3892 = vmul.f32 %v3883, 1.442695
        %v3893 = vpow.pop %v3892
        %v3894 = vmul.f32 %v3884, 1.442695
        %v3895 = vpow.pop %v3894
        %v3896 = vmul.f32 %v3885, 1.442695
        %v3897 = vpow.pop %v3896
        %v3898 = vmul.f32 %v3886, 1.442695
        %v3899 = vpow.pop %v3898
        %v3900 = vmul.f32 %v3887, 1.442695
        %v3901 = vpow.pop %v3900
        %v3902 = vmul.f32 %v3888, 1.442695
        %v3903 = vpow.pop %v3902
        %v3904 = vmul.f32 %v3889, 1.442695
        %v3905 = vpow.pop %v3904
        %v3906 = vsel %vm3369, %v3891, 0.0
        %3907 = vadd.xlane.f32.xlu0 %v3906
        %v3908 = vpop.xlane.xlu0 %3907
        %v3909 = vsel %vm3369, %v3893, 0.0
        %3910 = vadd.xlane.f32.xlu0 %v3909
        %v3911 = vpop.xlane.xlu0 %3910
        %v3912 = vsel %vm3369, %v3895, 0.0
        %3913 = vadd.xlane.f32.xlu0 %v3912
        %v3914 = vpop.xlane.xlu0 %3913
        %v3915 = vsel %vm3369, %v3897, 0.0
        %3916 = vadd.xlane.f32.xlu0 %v3915
        %v3917 = vpop.xlane.xlu0 %3916
        %v3918 = vsel %vm3369, %v3899, 0.0
        %3919 = vadd.xlane.f32.xlu0 %v3918
        %v3920 = vpop.xlane.xlu0 %3919
        %v3921 = vsel %vm3369, %v3901, 0.0
        %3922 = vadd.xlane.f32.xlu0 %v3921
        %v3923 = vpop.xlane.xlu0 %3922
        %v3924 = vsel %vm3369, %v3903, 0.0
        %3925 = vadd.xlane.f32.xlu0 %v3924
        %v3926 = vpop.xlane.xlu0 %3925
        %v3927 = vsel %vm3369, %v3905, 0.0
        %3928 = vadd.xlane.f32.xlu0 %v3927
        %v3929 = vpop.xlane.xlu0 %3928
        %v3930 = vrcp.pop %v3908
        %v3931 = vrcp.pop %v3911
        %v3932 = vrcp.pop %v3914
        %v3933 = vrcp.pop %v3917
        %v3934 = vrcp.pop %v3920
        %v3935 = vrcp.pop %v3923
        %v3936 = vrcp.pop %v3926
        %v3937 = vrcp.pop %v3929
        %v3938 = vmul.f32 %v3891, %v3930
        %v3939 = vmul.f32 %v3893, %v3931
        %v3940 = vmul.f32 %v3895, %v3932
        %v3941 = vmul.f32 %v3897, %v3933
        %v3942 = vmul.f32 %v3899, %v3934
        %v3943 = vmul.f32 %v3901, %v3935
        %v3944 = vmul.f32 %v3903, %v3936
        %v3945 = vmul.f32 %v3905, %v3937
        %v3946 = vpack.c.bf16 %v3939, %v3938
        %v3947 = vpack.c.bf16 %v3941, %v3940
        %v3948 = vpack.c.bf16 %v3943, %v3942
        %v3949 = vpack.c.bf16 %v3945, %v3944
        %3951 = vrot.lane.b32.xlu0 %v3168, 96
        %v3952 = vpop.permute.xlu0 %3951
        %v3955 = vsel %vm3369, %v3946, 0
        %3957 = vmatprep.subr.bf16.mxu0 0
        %3958 = vmatpush1.bf16.msra.mxu0 %v3952
        %3959 = vmatprep.subr.bf16.mxu0 0
        %3960 = vmatpush1.bf16.msra.mxu0 0
        %3961 = vmatprep.subr.bf16.mxu0 0
        %3962 = vmatpush1.bf16.msra.mxu0 0
        %3963 = vmatprep.subr.bf16.mxu0 0
        %3964 = vmatpush1.bf16.msra.mxu0 0
        %3965 = vmatprep.subr.bf16.mxu0 0
        %3966 = vmatpush1.bf16.msra.mxu0 0
        %3967 = vmatprep.subr.bf16.mxu0 0
        %3968 = vmatpush1.bf16.msra.mxu0 0
        %3969 = vmatprep.subr.bf16.mxu0 0
        %3970 = vmatpush1.bf16.msra.mxu0 0
        %3971 = vmatprep.subr.bf16.mxu0 0
        %3972 = vmatpush1.bf16.msra.mxu0 0
        %3973 = vmatprep.subr.bf16.mxu0 0
        %3974 = vmatpush1.bf16.msra.mxu0 0
        %3975 = vmatprep.subr.bf16.mxu0 0
        %3976 = vmatpush1.bf16.msra.mxu0 0
        %3977 = vmatprep.subr.bf16.mxu0 0
        %3978 = vmatpush1.bf16.msra.mxu0 0
        %3979 = vmatprep.subr.bf16.mxu0 0
        %3980 = vmatpush1.bf16.msra.mxu0 0
        %3981 = vmatprep.subr.bf16.mxu0 0
        %3982 = vmatpush1.bf16.msra.mxu0 0
        %3983 = vmatprep.subr.bf16.mxu0 0
        %3984 = vmatpush1.bf16.msra.mxu0 0
        %3985 = vmatprep.subr.bf16.mxu0 0
        %3986 = vmatpush1.bf16.msra.mxu0 0
        %3987 = vmatprep.subr.bf16.mxu0 0
        %3988 = vmatpush1.bf16.msra.mxu0 0
        %3989 = vmatprep.mubr.bf16.mxu0 0
        %3990 = vmatmul.mubr.bf16.gmra.mrb[0].mxu0 %v3955
        %v3991 = vpop.f32.mrb[0].mxu0
        %v3992 = vadd.f32 0.0, %v3991
        %v3993 = vpop.f32.mrb[0].mxu0
        %v3994 = vpop.f32.mrb[0].mxu0
        %v3995 = vadd.f32 0.0, %v3994
        %v3996 = vpop.f32.mrb[0].mxu0
        %3997 = vdwg.mxu0
        %3999 = vrot.lane.b32.xlu0 %v3169, 96
        %v4000 = vpop.permute.xlu0 %3999
        %v4003 = vsel %vm3369, %v3947, 0
        %4005 = vmatprep.subr.bf16.mxu0 0
        %4006 = vmatpush1.bf16.msra.mxu0 %v4000
        %4007 = vmatprep.subr.bf16.mxu0 0
        %4008 = vmatpush1.bf16.msra.mxu0 0
        %4009 = vmatprep.subr.bf16.mxu0 0
        %4010 = vmatpush1.bf16.msra.mxu0 0
        %4011 = vmatprep.subr.bf16.mxu0 0
        %4012 = vmatpush1.bf16.msra.mxu0 0
        %4013 = vmatprep.subr.bf16.mxu0 0
        %4014 = vmatpush1.bf16.msra.mxu0 0
        %4015 = vmatprep.subr.bf16.mxu0 0
        %4016 = vmatpush1.bf16.msra.mxu0 0
        %4017 = vmatprep.subr.bf16.mxu0 0
        %4018 = vmatpush1.bf16.msra.mxu0 0
        %4019 = vmatprep.subr.bf16.mxu0 0
        %4020 = vmatpush1.bf16.msra.mxu0 0
        %4021 = vmatprep.subr.bf16.mxu0 0
        %4022 = vmatpush1.bf16.msra.mxu0 0
        %4023 = vmatprep.subr.bf16.mxu0 0
        %4024 = vmatpush1.bf16.msra.mxu0 0
        %4025 = vmatprep.subr.bf16.mxu0 0
        %4026 = vmatpush1.bf16.msra.mxu0 0
        %4027 = vmatprep.subr.bf16.mxu0 0
        %4028 = vmatpush1.bf16.msra.mxu0 0
        %4029 = vmatprep.subr.bf16.mxu0 0
        %4030 = vmatpush1.bf16.msra.mxu0 0
        %4031 = vmatprep.subr.bf16.mxu0 0
        %4032 = vmatpush1.bf16.msra.mxu0 0
        %4033 = vmatprep.subr.bf16.mxu0 0
        %4034 = vmatpush1.bf16.msra.mxu0 0
        %4035 = vmatprep.subr.bf16.mxu0 0
        %4036 = vmatpush1.bf16.msra.mxu0 0
        %4037 = vmatprep.mubr.bf16.mxu0 0
        %4038 = vmatmul.mubr.bf16.gmra.mrb[0].mxu0 %v4003
        %v4039 = vpop.f32.mrb[0].mxu0
        %v4040 = vadd.f32 0.0, %v4039
        %v4041 = vpop.f32.mrb[0].mxu0
        %v4042 = vpop.f32.mrb[0].mxu0
        %v4043 = vadd.f32 0.0, %v4042
        %v4044 = vpop.f32.mrb[0].mxu0
        %4045 = vdwg.mxu0
        %4047 = vrot.lane.b32.xlu0 %v3170, 96
        %v4048 = vpop.permute.xlu0 %4047
        %v4051 = vsel %vm3369, %v3948, 0
        %4053 = vmatprep.subr.bf16.mxu0 0
        %4054 = vmatpush1.bf16.msra.mxu0 %v4048
        %4055 = vmatprep.subr.bf16.mxu0 0
        %4056 = vmatpush1.bf16.msra.mxu0 0
        %4057 = vmatprep.subr.bf16.mxu0 0
        %4058 = vmatpush1.bf16.msra.mxu0 0
        %4059 = vmatprep.subr.bf16.mxu0 0
        %4060 = vmatpush1.bf16.msra.mxu0 0
        %4061 = vmatprep.subr.bf16.mxu0 0
        %4062 = vmatpush1.bf16.msra.mxu0 0
        %4063 = vmatprep.subr.bf16.mxu0 0
        %4064 = vmatpush1.bf16.msra.mxu0 0
        %4065 = vmatprep.subr.bf16.mxu0 0
        %4066 = vmatpush1.bf16.msra.mxu0 0
        %4067 = vmatprep.subr.bf16.mxu0 0
        %4068 = vmatpush1.bf16.msra.mxu0 0
        %4069 = vmatprep.subr.bf16.mxu0 0
        %4070 = vmatpush1.bf16.msra.mxu0 0
        %4071 = vmatprep.subr.bf16.mxu0 0
        %4072 = vmatpush1.bf16.msra.mxu0 0
        %4073 = vmatprep.subr.bf16.mxu0 0
        %4074 = vmatpush1.bf16.msra.mxu0 0
        %4075 = vmatprep.subr.bf16.mxu0 0
        %4076 = vmatpush1.bf16.msra.mxu0 0
        %4077 = vmatprep.subr.bf16.mxu0 0
        %4078 = vmatpush1.bf16.msra.mxu0 0
        %4079 = vmatprep.subr.bf16.mxu0 0
        %4080 = vmatpush1.bf16.msra.mxu0 0
        %4081 = vmatprep.subr.bf16.mxu0 0
        %4082 = vmatpush1.bf16.msra.mxu0 0
        %4083 = vmatprep.subr.bf16.mxu0 0
        %4084 = vmatpush1.bf16.msra.mxu0 0
        %4085 = vmatprep.mubr.bf16.mxu0 0
        %4086 = vmatmul.mubr.bf16.gmra.mrb[0].mxu0 %v4051
        %v4087 = vpop.f32.mrb[0].mxu0
        %v4088 = vadd.f32 0.0, %v4087
        %v4089 = vpop.f32.mrb[0].mxu0
        %v4090 = vpop.f32.mrb[0].mxu0
        %v4091 = vadd.f32 0.0, %v4090
        %v4092 = vpop.f32.mrb[0].mxu0
        %4093 = vdwg.mxu0
        %4095 = vrot.lane.b32.xlu0 %v3171, 96
        %v4096 = vpop.permute.xlu0 %4095
        %v4099 = vsel %vm3369, %v3949, 0
        %4101 = vmatprep.subr.bf16.mxu0 0
        %4102 = vmatpush1.bf16.msra.mxu0 %v4096
        %4103 = vmatprep.subr.bf16.mxu0 0
        %4104 = vmatpush1.bf16.msra.mxu0 0
        %4105 = vmatprep.subr.bf16.mxu0 0
        %4106 = vmatpush1.bf16.msra.mxu0 0
        %4107 = vmatprep.subr.bf16.mxu0 0
        %4108 = vmatpush1.bf16.msra.mxu0 0
        %4109 = vmatprep.subr.bf16.mxu0 0
        %4110 = vmatpush1.bf16.msra.mxu0 0
        %4111 = vmatprep.subr.bf16.mxu0 0
        %4112 = vmatpush1.bf16.msra.mxu0 0
        %4113 = vmatprep.subr.bf16.mxu0 0
        %4114 = vmatpush1.bf16.msra.mxu0 0
        %4115 = vmatprep.subr.bf16.mxu0 0
        %4116 = vmatpush1.bf16.msra.mxu0 0
        %4117 = vmatprep.subr.bf16.mxu0 0
        %4118 = vmatpush1.bf16.msra.mxu0 0
        %4119 = vmatprep.subr.bf16.mxu0 0
        %4120 = vmatpush1.bf16.msra.mxu0 0
        %4121 = vmatprep.subr.bf16.mxu0 0
        %4122 = vmatpush1.bf16.msra.mxu0 0
        %4123 = vmatprep.subr.bf16.mxu0 0
        %4124 = vmatpush1.bf16.msra.mxu0 0
        %4125 = vmatprep.subr.bf16.mxu0 0
        %4126 = vmatpush1.bf16.msra.mxu0 0
        %4127 = vmatprep.subr.bf16.mxu0 0
        %4128 = vmatpush1.bf16.msra.mxu0 0
        %4129 = vmatprep.subr.bf16.mxu0 0
        %4130 = vmatpush1.bf16.msra.mxu0 0
        %4131 = vmatprep.subr.bf16.mxu0 0
        %4132 = vmatpush1.bf16.msra.mxu0 0
        %4133 = vmatprep.mubr.bf16.mxu0 0
        %4134 = vmatmul.mubr.bf16.gmra.mrb[0].mxu0 %v4099
        %v4135 = vpop.f32.mrb[0].mxu0
        %v4136 = vadd.f32 0.0, %v4135
        %v4137 = vpop.f32.mrb[0].mxu0
        %v4138 = vpop.f32.mrb[0].mxu0
        %v4139 = vadd.f32 0.0, %v4138
        %v4140 = vpop.f32.mrb[0].mxu0
        %4141 = vdwg.mxu0
        %4142 = vrot.lane.b32.xlu0 %v3136, 64
        %v4143 = vpop.permute.xlu0 %4142
        %4144 = vrot.lane.b32.xlu0 %v3152, 64
        %v4145 = vpop.permute.xlu0 %4144
        %v4147 = vsel %vm3172, %v4143, 0
        %v4150 = vsel %vm3172, %v4145, 0
        %4152 = vmatprep.subr.bf16.mxu0 0
        %4153 = vmatpush1.bf16.xpose.msra.mxu0 %v4150
        %4154 = vmatprep.subr.bf16.mxu0 0
        %4155 = vmatpush1.bf16.xpose.msra.mxu0 0
        %4156 = vmatprep.subr.bf16.mxu0 0
        %4157 = vmatpush1.bf16.xpose.msra.mxu0 0
        %4158 = vmatprep.subr.bf16.mxu0 0
        %4159 = vmatpush1.bf16.xpose.msra.mxu0 0
        %4160 = vmatprep.subr.bf16.mxu0 0
        %4161 = vmatpush1.bf16.xpose.msra.mxu0 0
        %4162 = vmatprep.subr.bf16.mxu0 0
        %4163 = vmatpush1.bf16.xpose.msra.mxu0 0
        %4164 = vmatprep.subr.bf16.mxu0 0
        %4165 = vmatpush1.bf16.xpose.msra.mxu0 0
        %4166 = vmatprep.subr.bf16.mxu0 0
        %4167 = vmatpush1.bf16.xpose.msra.mxu0 0
        %4168 = vmatprep.subr.bf16.mxu0 0
        %4169 = vmatpush1.bf16.xpose.msra.mxu0 0
        %4170 = vmatprep.subr.bf16.mxu0 0
        %4171 = vmatpush1.bf16.xpose.msra.mxu0 0
        %4172 = vmatprep.subr.bf16.mxu0 0
        %4173 = vmatpush1.bf16.xpose.msra.mxu0 0
        %4174 = vmatprep.subr.bf16.mxu0 0
        %4175 = vmatpush1.bf16.xpose.msra.mxu0 0
        %4176 = vmatprep.subr.bf16.mxu0 0
        %4177 = vmatpush1.bf16.xpose.msra.mxu0 0
        %4178 = vmatprep.subr.bf16.mxu0 0
        %4179 = vmatpush1.bf16.xpose.msra.mxu0 0
        %4180 = vmatprep.subr.bf16.mxu0 0
        %4181 = vmatpush1.bf16.xpose.msra.mxu0 0
        %4182 = vmatprep.subr.bf16.mxu0 0
        %4183 = vmatpush1.bf16.xpose.msra.mxu0 0
        %4184 = vmatprep.mubr.bf16.mxu0 0
        %4185 = vmatmul.mubr.bf16.gmra.mrb[0].mxu0 %v4147
        %v4186 = vpop.f32.mrb[0].mxu0
        %v4187 = vadd.f32 0.0, %v4186
        %v4188 = vpop.f32.mrb[0].mxu0
        %v4189 = vpop.f32.mrb[0].mxu0
        %v4190 = vadd.f32 0.0, %v4189
        %v4191 = vpop.f32.mrb[0].mxu0
        %4192 = vdwg.mxu0
        %4193 = vrot.lane.b32.xlu0 %v3137, 64
        %v4194 = vpop.permute.xlu0 %4193
        %4195 = vrot.lane.b32.xlu0 %v3153, 64
        %v4196 = vpop.permute.xlu0 %4195
        %v4198 = vsel %vm3172, %v4194, 0
        %v4201 = vsel %vm3172, %v4196, 0
        %4203 = vmatprep.subr.bf16.mxu0 0
        %4204 = vmatpush1.bf16.xpose.msra.mxu0 %v4201
        %4205 = vmatprep.subr.bf16.mxu0 0
        %4206 = vmatpush1.bf16.xpose.msra.mxu0 0
        %4207 = vmatprep.subr.bf16.mxu0 0
        %4208 = vmatpush1.bf16.xpose.msra.mxu0 0
        %4209 = vmatprep.subr.bf16.mxu0 0
        %4210 = vmatpush1.bf16.xpose.msra.mxu0 0
        %4211 = vmatprep.subr.bf16.mxu0 0
        %4212 = vmatpush1.bf16.xpose.msra.mxu0 0
        %4213 = vmatprep.subr.bf16.mxu0 0
        %4214 = vmatpush1.bf16.xpose.msra.mxu0 0
        %4215 = vmatprep.subr.bf16.mxu0 0
        %4216 = vmatpush1.bf16.xpose.msra.mxu0 0
        %4217 = vmatprep.subr.bf16.mxu0 0
        %4218 = vmatpush1.bf16.xpose.msra.mxu0 0
        %4219 = vmatprep.subr.bf16.mxu0 0
        %4220 = vmatpush1.bf16.xpose.msra.mxu0 0
        %4221 = vmatprep.subr.bf16.mxu0 0
        %4222 = vmatpush1.bf16.xpose.msra.mxu0 0
        %4223 = vmatprep.subr.bf16.mxu0 0
        %4224 = vmatpush1.bf16.xpose.msra.mxu0 0
        %4225 = vmatprep.subr.bf16.mxu0 0
        %4226 = vmatpush1.bf16.xpose.msra.mxu0 0
        %4227 = vmatprep.subr.bf16.mxu0 0
        %4228 = vmatpush1.bf16.xpose.msra.mxu0 0
        %4229 = vmatprep.subr.bf16.mxu0 0
        %4230 = vmatpush1.bf16.xpose.msra.mxu0 0
        %4231 = vmatprep.subr.bf16.mxu0 0
        %4232 = vmatpush1.bf16.xpose.msra.mxu0 0
        %4233 = vmatprep.subr.bf16.mxu0 0
        %4234 = vmatpush1.bf16.xpose.msra.mxu0 0
        %4235 = vmatprep.mubr.bf16.mxu0 0
        %4236 = vmatmul.mubr.bf16.gmra.mrb[0].mxu0 %v4198
        %v4237 = vpop.f32.mrb[0].mxu0
        %v4238 = vadd.f32 0.0, %v4237
        %v4239 = vpop.f32.mrb[0].mxu0
        %v4240 = vpop.f32.mrb[0].mxu0
        %v4241 = vadd.f32 0.0, %v4240
        %v4242 = vpop.f32.mrb[0].mxu0
        %4243 = vdwg.mxu0
        %4244 = vrot.lane.b32.xlu0 %v3138, 64
        %v4245 = vpop.permute.xlu0 %4244
        %4246 = vrot.lane.b32.xlu0 %v3154, 64
        %v4247 = vpop.permute.xlu0 %4246
        %v4249 = vsel %vm3172, %v4245, 0
        %v4252 = vsel %vm3172, %v4247, 0
        %4254 = vmatprep.subr.bf16.mxu0 0
        %4255 = vmatpush1.bf16.xpose.msra.mxu0 %v4252
        %4256 = vmatprep.subr.bf16.mxu0 0
        %4257 = vmatpush1.bf16.xpose.msra.mxu0 0
        %4258 = vmatprep.subr.bf16.mxu0 0
        %4259 = vmatpush1.bf16.xpose.msra.mxu0 0
        %4260 = vmatprep.subr.bf16.mxu0 0
        %4261 = vmatpush1.bf16.xpose.msra.mxu0 0
        %4262 = vmatprep.subr.bf16.mxu0 0
        %4263 = vmatpush1.bf16.xpose.msra.mxu0 0
        %4264 = vmatprep.subr.bf16.mxu0 0
        %4265 = vmatpush1.bf16.xpose.msra.mxu0 0
        %4266 = vmatprep.subr.bf16.mxu0 0
        %4267 = vmatpush1.bf16.xpose.msra.mxu0 0
        %4268 = vmatprep.subr.bf16.mxu0 0
        %4269 = vmatpush1.bf16.xpose.msra.mxu0 0
        %4270 = vmatprep.subr.bf16.mxu0 0
        %4271 = vmatpush1.bf16.xpose.msra.mxu0 0
        %4272 = vmatprep.subr.bf16.mxu0 0
        %4273 = vmatpush1.bf16.xpose.msra.mxu0 0
        %4274 = vmatprep.subr.bf16.mxu0 0
        %4275 = vmatpush1.bf16.xpose.msra.mxu0 0
        %4276 = vmatprep.subr.bf16.mxu0 0
        %4277 = vmatpush1.bf16.xpose.msra.mxu0 0
        %4278 = vmatprep.subr.bf16.mxu0 0
        %4279 = vmatpush1.bf16.xpose.msra.mxu0 0
        %4280 = vmatprep.subr.bf16.mxu0 0
        %4281 = vmatpush1.bf16.xpose.msra.mxu0 0
        %4282 = vmatprep.subr.bf16.mxu0 0
        %4283 = vmatpush1.bf16.xpose.msra.mxu0 0
        %4284 = vmatprep.subr.bf16.mxu0 0
        %4285 = vmatpush1.bf16.xpose.msra.mxu0 0
        %4286 = vmatprep.mubr.bf16.mxu0 0
        %4287 = vmatmul.mubr.bf16.gmra.mrb[0].mxu0 %v4249
        %v4288 = vpop.f32.mrb[0].mxu0
        %v4289 = vadd.f32 0.0, %v4288
        %v4290 = vpop.f32.mrb[0].mxu0
        %v4291 = vpop.f32.mrb[0].mxu0
        %v4292 = vadd.f32 0.0, %v4291
        %v4293 = vpop.f32.mrb[0].mxu0
        %4294 = vdwg.mxu0
        %4295 = vrot.lane.b32.xlu0 %v3139, 64
        %v4296 = vpop.permute.xlu0 %4295
        %4297 = vrot.lane.b32.xlu0 %v3155, 64
        %v4298 = vpop.permute.xlu0 %4297
        %v4300 = vsel %vm3172, %v4296, 0
        %v4303 = vsel %vm3172, %v4298, 0
        %4305 = vmatprep.subr.bf16.mxu0 0
        %4306 = vmatpush1.bf16.xpose.msra.mxu0 %v4303
        %4307 = vmatprep.subr.bf16.mxu0 0
        %4308 = vmatpush1.bf16.xpose.msra.mxu0 0
        %4309 = vmatprep.subr.bf16.mxu0 0
        %4310 = vmatpush1.bf16.xpose.msra.mxu0 0
        %4311 = vmatprep.subr.bf16.mxu0 0
        %4312 = vmatpush1.bf16.xpose.msra.mxu0 0
        %4313 = vmatprep.subr.bf16.mxu0 0
        %4314 = vmatpush1.bf16.xpose.msra.mxu0 0
        %4315 = vmatprep.subr.bf16.mxu0 0
        %4316 = vmatpush1.bf16.xpose.msra.mxu0 0
        %4317 = vmatprep.subr.bf16.mxu0 0
        %4318 = vmatpush1.bf16.xpose.msra.mxu0 0
        %4319 = vmatprep.subr.bf16.mxu0 0
        %4320 = vmatpush1.bf16.xpose.msra.mxu0 0
        %4321 = vmatprep.subr.bf16.mxu0 0
        %4322 = vmatpush1.bf16.xpose.msra.mxu0 0
        %4323 = vmatprep.subr.bf16.mxu0 0
        %4324 = vmatpush1.bf16.xpose.msra.mxu0 0
        %4325 = vmatprep.subr.bf16.mxu0 0
        %4326 = vmatpush1.bf16.xpose.msra.mxu0 0
        %4327 = vmatprep.subr.bf16.mxu0 0
        %4328 = vmatpush1.bf16.xpose.msra.mxu0 0
        %4329 = vmatprep.subr.bf16.mxu0 0
        %4330 = vmatpush1.bf16.xpose.msra.mxu0 0
        %4331 = vmatprep.subr.bf16.mxu0 0
        %4332 = vmatpush1.bf16.xpose.msra.mxu0 0
        %4333 = vmatprep.subr.bf16.mxu0 0
        %4334 = vmatpush1.bf16.xpose.msra.mxu0 0
        %4335 = vmatprep.subr.bf16.mxu0 0
        %4336 = vmatpush1.bf16.xpose.msra.mxu0 0
        %4337 = vmatprep.mubr.bf16.mxu0 0
        %4338 = vmatmul.mubr.bf16.gmra.mrb[0].mxu0 %v4300
        %v4339 = vpop.f32.mrb[0].mxu0
        %v4340 = vadd.f32 0.0, %v4339
        %v4341 = vpop.f32.mrb[0].mxu0
        %v4342 = vpop.f32.mrb[0].mxu0
        %v4343 = vadd.f32 0.0, %v4342
        %v4344 = vpop.f32.mrb[0].mxu0
        %4345 = vdwg.mxu0
        %v4346 = vmul.f32 %v4187, 0.17677669
        %v4347 = vmul.f32 %v4190, 0.17677669
        %v4348 = vmul.f32 %v4238, 0.17677669
        %v4349 = vmul.f32 %v4241, 0.17677669
        %v4350 = vmul.f32 %v4289, 0.17677669
        %v4351 = vmul.f32 %v4292, 0.17677669
        %v4352 = vmul.f32 %v4340, 0.17677669
        %v4353 = vmul.f32 %v4343, 0.17677669
        %v4354 = vsel %vm3369, %v4346, -inf
        %4355 = vmax.xlane.f32.xlu0 %v4354
        %v4356 = vpop.xlane.xlu0 %4355
        %v4357 = vsel %vm3369, %v4347, -inf
        %4358 = vmax.xlane.f32.xlu0 %v4357
        %v4359 = vpop.xlane.xlu0 %4358
        %v4360 = vsel %vm3369, %v4348, -inf
        %4361 = vmax.xlane.f32.xlu0 %v4360
        %v4362 = vpop.xlane.xlu0 %4361
        %v4363 = vsel %vm3369, %v4349, -inf
        %4364 = vmax.xlane.f32.xlu0 %v4363
        %v4365 = vpop.xlane.xlu0 %4364
        %v4366 = vsel %vm3369, %v4350, -inf
        %4367 = vmax.xlane.f32.xlu0 %v4366
        %v4368 = vpop.xlane.xlu0 %4367
        %v4369 = vsel %vm3369, %v4351, -inf
        %4370 = vmax.xlane.f32.xlu0 %v4369
        %v4371 = vpop.xlane.xlu0 %4370
        %v4372 = vsel %vm3369, %v4352, -inf
        %4373 = vmax.xlane.f32.xlu0 %v4372
        %v4374 = vpop.xlane.xlu0 %4373
        %v4375 = vsel %vm3369, %v4353, -inf
        %4376 = vmax.xlane.f32.xlu0 %v4375
        %v4377 = vpop.xlane.xlu0 %4376
        %v4378 = vsub.f32 %v4346, %v4356
        %v4379 = vsub.f32 %v4347, %v4359
        %v4380 = vsub.f32 %v4348, %v4362
        %v4381 = vsub.f32 %v4349, %v4365
        %v4382 = vsub.f32 %v4350, %v4368
        %v4383 = vsub.f32 %v4351, %v4371
        %v4384 = vsub.f32 %v4352, %v4374
        %v4385 = vsub.f32 %v4353, %v4377
        %v4386 = vmul.f32 %v4378, 1.442695
        %v4387 = vpow.pop %v4386
        %v4388 = vmul.f32 %v4379, 1.442695
        %v4389 = vpow.pop %v4388
        %v4390 = vmul.f32 %v4380, 1.442695
        %v4391 = vpow.pop %v4390
        %v4392 = vmul.f32 %v4381, 1.442695
        %v4393 = vpow.pop %v4392
        %v4394 = vmul.f32 %v4382, 1.442695
        %v4395 = vpow.pop %v4394
        %v4396 = vmul.f32 %v4383, 1.442695
        %v4397 = vpow.pop %v4396
        %v4398 = vmul.f32 %v4384, 1.442695
        %v4399 = vpow.pop %v4398
        %v4400 = vmul.f32 %v4385, 1.442695
        %v4401 = vpow.pop %v4400
        %v4402 = vsel %vm3369, %v4387, 0.0
        %4403 = vadd.xlane.f32.xlu0 %v4402
        %v4404 = vpop.xlane.xlu0 %4403
        %v4405 = vsel %vm3369, %v4389, 0.0
        %4406 = vadd.xlane.f32.xlu0 %v4405
        %v4407 = vpop.xlane.xlu0 %4406
        %v4408 = vsel %vm3369, %v4391, 0.0
        %4409 = vadd.xlane.f32.xlu0 %v4408
        %v4410 = vpop.xlane.xlu0 %4409
        %v4411 = vsel %vm3369, %v4393, 0.0
        %4412 = vadd.xlane.f32.xlu0 %v4411
        %v4413 = vpop.xlane.xlu0 %4412
        %v4414 = vsel %vm3369, %v4395, 0.0
        %4415 = vadd.xlane.f32.xlu0 %v4414
        %v4416 = vpop.xlane.xlu0 %4415
        %v4417 = vsel %vm3369, %v4397, 0.0
        %4418 = vadd.xlane.f32.xlu0 %v4417
        %v4419 = vpop.xlane.xlu0 %4418
        %v4420 = vsel %vm3369, %v4399, 0.0
        %4421 = vadd.xlane.f32.xlu0 %v4420
        %v4422 = vpop.xlane.xlu0 %4421
        %v4423 = vsel %vm3369, %v4401, 0.0
        %4424 = vadd.xlane.f32.xlu0 %v4423
        %v4425 = vpop.xlane.xlu0 %4424
        %v4426 = vrcp.pop %v4404
        %v4427 = vrcp.pop %v4407
        %v4428 = vrcp.pop %v4410
        %v4429 = vrcp.pop %v4413
        %v4430 = vrcp.pop %v4416
        %v4431 = vrcp.pop %v4419
        %v4432 = vrcp.pop %v4422
        %v4433 = vrcp.pop %v4425
        %v4434 = vmul.f32 %v4387, %v4426
        %v4435 = vmul.f32 %v4389, %v4427
        %v4436 = vmul.f32 %v4391, %v4428
        %v4437 = vmul.f32 %v4393, %v4429
        %v4438 = vmul.f32 %v4395, %v4430
        %v4439 = vmul.f32 %v4397, %v4431
        %v4440 = vmul.f32 %v4399, %v4432
        %v4441 = vmul.f32 %v4401, %v4433
        %v4442 = vpack.c.bf16 %v4435, %v4434
        %v4443 = vpack.c.bf16 %v4437, %v4436
        %v4444 = vpack.c.bf16 %v4439, %v4438
        %v4445 = vpack.c.bf16 %v4441, %v4440
        %4446 = vrot.lane.b32.xlu0 %v3168, 64
        %v4447 = vpop.permute.xlu0 %4446
        %v4450 = vsel %vm3369, %v4442, 0
        %4452 = vmatprep.subr.bf16.mxu0 0
        %4453 = vmatpush1.bf16.msra.mxu0 %v4447
        %4454 = vmatprep.subr.bf16.mxu0 0
        %4455 = vmatpush1.bf16.msra.mxu0 0
        %4456 = vmatprep.subr.bf16.mxu0 0
        %4457 = vmatpush1.bf16.msra.mxu0 0
        %4458 = vmatprep.subr.bf16.mxu0 0
        %4459 = vmatpush1.bf16.msra.mxu0 0
        %4460 = vmatprep.subr.bf16.mxu0 0
        %4461 = vmatpush1.bf16.msra.mxu0 0
        %4462 = vmatprep.subr.bf16.mxu0 0
        %4463 = vmatpush1.bf16.msra.mxu0 0
        %4464 = vmatprep.subr.bf16.mxu0 0
        %4465 = vmatpush1.bf16.msra.mxu0 0
        %4466 = vmatprep.subr.bf16.mxu0 0
        %4467 = vmatpush1.bf16.msra.mxu0 0
        %4468 = vmatprep.subr.bf16.mxu0 0
        %4469 = vmatpush1.bf16.msra.mxu0 0
        %4470 = vmatprep.subr.bf16.mxu0 0
        %4471 = vmatpush1.bf16.msra.mxu0 0
        %4472 = vmatprep.subr.bf16.mxu0 0
        %4473 = vmatpush1.bf16.msra.mxu0 0
        %4474 = vmatprep.subr.bf16.mxu0 0
        %4475 = vmatpush1.bf16.msra.mxu0 0
        %4476 = vmatprep.subr.bf16.mxu0 0
        %4477 = vmatpush1.bf16.msra.mxu0 0
        %4478 = vmatprep.subr.bf16.mxu0 0
        %4479 = vmatpush1.bf16.msra.mxu0 0
        %4480 = vmatprep.subr.bf16.mxu0 0
        %4481 = vmatpush1.bf16.msra.mxu0 0
        %4482 = vmatprep.subr.bf16.mxu0 0
        %4483 = vmatpush1.bf16.msra.mxu0 0
        %4484 = vmatprep.mubr.bf16.mxu0 0
        %4485 = vmatmul.mubr.bf16.gmra.mrb[0].mxu0 %v4450
        %v4486 = vpop.f32.mrb[0].mxu0
        %v4487 = vadd.f32 0.0, %v4486
        %v4488 = vpop.f32.mrb[0].mxu0
        %v4489 = vpop.f32.mrb[0].mxu0
        %v4490 = vadd.f32 0.0, %v4489
        %v4491 = vpop.f32.mrb[0].mxu0
        %4492 = vdwg.mxu0
        %4493 = vrot.lane.b32.xlu0 %v3169, 64
        %v4494 = vpop.permute.xlu0 %4493
        %v4497 = vsel %vm3369, %v4443, 0
        %4499 = vmatprep.subr.bf16.mxu0 0
        %4500 = vmatpush1.bf16.msra.mxu0 %v4494
        %4501 = vmatprep.subr.bf16.mxu0 0
        %4502 = vmatpush1.bf16.msra.mxu0 0
        %4503 = vmatprep.subr.bf16.mxu0 0
        %4504 = vmatpush1.bf16.msra.mxu0 0
        %4505 = vmatprep.subr.bf16.mxu0 0
        %4506 = vmatpush1.bf16.msra.mxu0 0
        %4507 = vmatprep.subr.bf16.mxu0 0
        %4508 = vmatpush1.bf16.msra.mxu0 0
        %4509 = vmatprep.subr.bf16.mxu0 0
        %4510 = vmatpush1.bf16.msra.mxu0 0
        %4511 = vmatprep.subr.bf16.mxu0 0
        %4512 = vmatpush1.bf16.msra.mxu0 0
        %4513 = vmatprep.subr.bf16.mxu0 0
        %4514 = vmatpush1.bf16.msra.mxu0 0
        %4515 = vmatprep.subr.bf16.mxu0 0
        %4516 = vmatpush1.bf16.msra.mxu0 0
        %4517 = vmatprep.subr.bf16.mxu0 0
        %4518 = vmatpush1.bf16.msra.mxu0 0
        %4519 = vmatprep.subr.bf16.mxu0 0
        %4520 = vmatpush1.bf16.msra.mxu0 0
        %4521 = vmatprep.subr.bf16.mxu0 0
        %4522 = vmatpush1.bf16.msra.mxu0 0
        %4523 = vmatprep.subr.bf16.mxu0 0
        %4524 = vmatpush1.bf16.msra.mxu0 0
        %4525 = vmatprep.subr.bf16.mxu0 0
        %4526 = vmatpush1.bf16.msra.mxu0 0
        %4527 = vmatprep.subr.bf16.mxu0 0
        %4528 = vmatpush1.bf16.msra.mxu0 0
        %4529 = vmatprep.subr.bf16.mxu0 0
        %4530 = vmatpush1.bf16.msra.mxu0 0
        %4531 = vmatprep.mubr.bf16.mxu0 0
        %4532 = vmatmul.mubr.bf16.gmra.mrb[0].mxu0 %v4497
        %v4533 = vpop.f32.mrb[0].mxu0
        %v4534 = vadd.f32 0.0, %v4533
        %v4535 = vpop.f32.mrb[0].mxu0
        %v4536 = vpop.f32.mrb[0].mxu0
        %v4537 = vadd.f32 0.0, %v4536
        %v4538 = vpop.f32.mrb[0].mxu0
        %4539 = vdwg.mxu0
        %4540 = vrot.lane.b32.xlu0 %v3170, 64
        %v4541 = vpop.permute.xlu0 %4540
        %v4544 = vsel %vm3369, %v4444, 0
        %4546 = vmatprep.subr.bf16.mxu0 0
        %4547 = vmatpush1.bf16.msra.mxu0 %v4541
        %4548 = vmatprep.subr.bf16.mxu0 0
        %4549 = vmatpush1.bf16.msra.mxu0 0
        %4550 = vmatprep.subr.bf16.mxu0 0
        %4551 = vmatpush1.bf16.msra.mxu0 0
        %4552 = vmatprep.subr.bf16.mxu0 0
        %4553 = vmatpush1.bf16.msra.mxu0 0
        %4554 = vmatprep.subr.bf16.mxu0 0
        %4555 = vmatpush1.bf16.msra.mxu0 0
        %4556 = vmatprep.subr.bf16.mxu0 0
        %4557 = vmatpush1.bf16.msra.mxu0 0
        %4558 = vmatprep.subr.bf16.mxu0 0
        %4559 = vmatpush1.bf16.msra.mxu0 0
        %4560 = vmatprep.subr.bf16.mxu0 0
        %4561 = vmatpush1.bf16.msra.mxu0 0
        %4562 = vmatprep.subr.bf16.mxu0 0
        %4563 = vmatpush1.bf16.msra.mxu0 0
        %4564 = vmatprep.subr.bf16.mxu0 0
        %4565 = vmatpush1.bf16.msra.mxu0 0
        %4566 = vmatprep.subr.bf16.mxu0 0
        %4567 = vmatpush1.bf16.msra.mxu0 0
        %4568 = vmatprep.subr.bf16.mxu0 0
        %4569 = vmatpush1.bf16.msra.mxu0 0
        %4570 = vmatprep.subr.bf16.mxu0 0
        %4571 = vmatpush1.bf16.msra.mxu0 0
        %4572 = vmatprep.subr.bf16.mxu0 0
        %4573 = vmatpush1.bf16.msra.mxu0 0
        %4574 = vmatprep.subr.bf16.mxu0 0
        %4575 = vmatpush1.bf16.msra.mxu0 0
        %4576 = vmatprep.subr.bf16.mxu0 0
        %4577 = vmatpush1.bf16.msra.mxu0 0
        %4578 = vmatprep.mubr.bf16.mxu0 0
        %4579 = vmatmul.mubr.bf16.gmra.mrb[0].mxu0 %v4544
        %v4580 = vpop.f32.mrb[0].mxu0
        %v4581 = vadd.f32 0.0, %v4580
        %v4582 = vpop.f32.mrb[0].mxu0
        %v4583 = vpop.f32.mrb[0].mxu0
        %v4584 = vadd.f32 0.0, %v4583
        %v4585 = vpop.f32.mrb[0].mxu0
        %4586 = vdwg.mxu0
        %4587 = vrot.lane.b32.xlu0 %v3171, 64
        %v4588 = vpop.permute.xlu0 %4587
        %v4591 = vsel %vm3369, %v4445, 0
        %4593 = vmatprep.subr.bf16.mxu0 0
        %4594 = vmatpush1.bf16.msra.mxu0 %v4588
        %4595 = vmatprep.subr.bf16.mxu0 0
        %4596 = vmatpush1.bf16.msra.mxu0 0
        %4597 = vmatprep.subr.bf16.mxu0 0
        %4598 = vmatpush1.bf16.msra.mxu0 0
        %4599 = vmatprep.subr.bf16.mxu0 0
        %4600 = vmatpush1.bf16.msra.mxu0 0
        %4601 = vmatprep.subr.bf16.mxu0 0
        %4602 = vmatpush1.bf16.msra.mxu0 0
        %4603 = vmatprep.subr.bf16.mxu0 0
        %4604 = vmatpush1.bf16.msra.mxu0 0
        %4605 = vmatprep.subr.bf16.mxu0 0
        %4606 = vmatpush1.bf16.msra.mxu0 0
        %4607 = vmatprep.subr.bf16.mxu0 0
        %4608 = vmatpush1.bf16.msra.mxu0 0
        %4609 = vmatprep.subr.bf16.mxu0 0
        %4610 = vmatpush1.bf16.msra.mxu0 0
        %4611 = vmatprep.subr.bf16.mxu0 0
        %4612 = vmatpush1.bf16.msra.mxu0 0
        %4613 = vmatprep.subr.bf16.mxu0 0
        %4614 = vmatpush1.bf16.msra.mxu0 0
        %4615 = vmatprep.subr.bf16.mxu0 0
        %4616 = vmatpush1.bf16.msra.mxu0 0
        %4617 = vmatprep.subr.bf16.mxu0 0
        %4618 = vmatpush1.bf16.msra.mxu0 0
        %4619 = vmatprep.subr.bf16.mxu0 0
        %4620 = vmatpush1.bf16.msra.mxu0 0
        %4621 = vmatprep.subr.bf16.mxu0 0
        %4622 = vmatpush1.bf16.msra.mxu0 0
        %4623 = vmatprep.subr.bf16.mxu0 0
        %4624 = vmatpush1.bf16.msra.mxu0 0
        %4625 = vmatprep.mubr.bf16.mxu0 0
        %4626 = vmatmul.mubr.bf16.gmra.mrb[0].mxu0 %v4591
        %v4627 = vpop.f32.mrb[0].mxu0
        %v4628 = vadd.f32 0.0, %v4627
        %v4629 = vpop.f32.mrb[0].mxu0
        %v4630 = vpop.f32.mrb[0].mxu0
        %v4631 = vadd.f32 0.0, %v4630
        %v4632 = vpop.f32.mrb[0].mxu0
        %4633 = vdwg.mxu0
        %4634 = vrot.lane.b32.xlu0 %v3136, 32
        %v4635 = vpop.permute.xlu0 %4634
        %4636 = vrot.lane.b32.xlu0 %v3152, 32
        %v4637 = vpop.permute.xlu0 %4636
        %v4639 = vsel %vm3172, %v4635, 0
        %v4642 = vsel %vm3172, %v4637, 0
        %4644 = vmatprep.subr.bf16.mxu0 0
        %4645 = vmatpush1.bf16.xpose.msra.mxu0 %v4642
        %4646 = vmatprep.subr.bf16.mxu0 0
        %4647 = vmatpush1.bf16.xpose.msra.mxu0 0
        %4648 = vmatprep.subr.bf16.mxu0 0
        %4649 = vmatpush1.bf16.xpose.msra.mxu0 0
        %4650 = vmatprep.subr.bf16.mxu0 0
        %4651 = vmatpush1.bf16.xpose.msra.mxu0 0
        %4652 = vmatprep.subr.bf16.mxu0 0
        %4653 = vmatpush1.bf16.xpose.msra.mxu0 0
        %4654 = vmatprep.subr.bf16.mxu0 0
        %4655 = vmatpush1.bf16.xpose.msra.mxu0 0
        %4656 = vmatprep.subr.bf16.mxu0 0
        %4657 = vmatpush1.bf16.xpose.msra.mxu0 0
        %4658 = vmatprep.subr.bf16.mxu0 0
        %4659 = vmatpush1.bf16.xpose.msra.mxu0 0
        %4660 = vmatprep.subr.bf16.mxu0 0
        %4661 = vmatpush1.bf16.xpose.msra.mxu0 0
        %4662 = vmatprep.subr.bf16.mxu0 0
        %4663 = vmatpush1.bf16.xpose.msra.mxu0 0
        %4664 = vmatprep.subr.bf16.mxu0 0
        %4665 = vmatpush1.bf16.xpose.msra.mxu0 0
        %4666 = vmatprep.subr.bf16.mxu0 0
        %4667 = vmatpush1.bf16.xpose.msra.mxu0 0
        %4668 = vmatprep.subr.bf16.mxu0 0
        %4669 = vmatpush1.bf16.xpose.msra.mxu0 0
        %4670 = vmatprep.subr.bf16.mxu0 0
        %4671 = vmatpush1.bf16.xpose.msra.mxu0 0
        %4672 = vmatprep.subr.bf16.mxu0 0
        %4673 = vmatpush1.bf16.xpose.msra.mxu0 0
        %4674 = vmatprep.subr.bf16.mxu0 0
        %4675 = vmatpush1.bf16.xpose.msra.mxu0 0
        %4676 = vmatprep.mubr.bf16.mxu0 0
        %4677 = vmatmul.mubr.bf16.gmra.mrb[0].mxu0 %v4639
        %v4678 = vpop.f32.mrb[0].mxu0
        %v4679 = vadd.f32 0.0, %v4678
        %v4680 = vpop.f32.mrb[0].mxu0
        %v4681 = vpop.f32.mrb[0].mxu0
        %v4682 = vadd.f32 0.0, %v4681
        %v4683 = vpop.f32.mrb[0].mxu0
        %4684 = vdwg.mxu0
        %4685 = vrot.lane.b32.xlu0 %v3137, 32
        %v4686 = vpop.permute.xlu0 %4685
        %4687 = vrot.lane.b32.xlu0 %v3153, 32
        %v4688 = vpop.permute.xlu0 %4687
        %v4690 = vsel %vm3172, %v4686, 0
        %v4693 = vsel %vm3172, %v4688, 0
        %4695 = vmatprep.subr.bf16.mxu0 0
        %4696 = vmatpush1.bf16.xpose.msra.mxu0 %v4693
        %4697 = vmatprep.subr.bf16.mxu0 0
        %4698 = vmatpush1.bf16.xpose.msra.mxu0 0
        %4699 = vmatprep.subr.bf16.mxu0 0
        %4700 = vmatpush1.bf16.xpose.msra.mxu0 0
        %4701 = vmatprep.subr.bf16.mxu0 0
        %4702 = vmatpush1.bf16.xpose.msra.mxu0 0
        %4703 = vmatprep.subr.bf16.mxu0 0
        %4704 = vmatpush1.bf16.xpose.msra.mxu0 0
        %4705 = vmatprep.subr.bf16.mxu0 0
        %4706 = vmatpush1.bf16.xpose.msra.mxu0 0
        %4707 = vmatprep.subr.bf16.mxu0 0
        %4708 = vmatpush1.bf16.xpose.msra.mxu0 0
        %4709 = vmatprep.subr.bf16.mxu0 0
        %4710 = vmatpush1.bf16.xpose.msra.mxu0 0
        %4711 = vmatprep.subr.bf16.mxu0 0
        %4712 = vmatpush1.bf16.xpose.msra.mxu0 0
        %4713 = vmatprep.subr.bf16.mxu0 0
        %4714 = vmatpush1.bf16.xpose.msra.mxu0 0
        %4715 = vmatprep.subr.bf16.mxu0 0
        %4716 = vmatpush1.bf16.xpose.msra.mxu0 0
        %4717 = vmatprep.subr.bf16.mxu0 0
        %4718 = vmatpush1.bf16.xpose.msra.mxu0 0
        %4719 = vmatprep.subr.bf16.mxu0 0
        %4720 = vmatpush1.bf16.xpose.msra.mxu0 0
        %4721 = vmatprep.subr.bf16.mxu0 0
        %4722 = vmatpush1.bf16.xpose.msra.mxu0 0
        %4723 = vmatprep.subr.bf16.mxu0 0
        %4724 = vmatpush1.bf16.xpose.msra.mxu0 0
        %4725 = vmatprep.subr.bf16.mxu0 0
        %4726 = vmatpush1.bf16.xpose.msra.mxu0 0
        %4727 = vmatprep.mubr.bf16.mxu0 0
        %4728 = vmatmul.mubr.bf16.gmra.mrb[0].mxu0 %v4690
        %v4729 = vpop.f32.mrb[0].mxu0
        %v4730 = vadd.f32 0.0, %v4729
        %v4731 = vpop.f32.mrb[0].mxu0
        %v4732 = vpop.f32.mrb[0].mxu0
        %v4733 = vadd.f32 0.0, %v4732
        %v4734 = vpop.f32.mrb[0].mxu0
        %4735 = vdwg.mxu0
        %4736 = vrot.lane.b32.xlu0 %v3138, 32
        %v4737 = vpop.permute.xlu0 %4736
        %4738 = vrot.lane.b32.xlu0 %v3154, 32
        %v4739 = vpop.permute.xlu0 %4738
        %v4741 = vsel %vm3172, %v4737, 0
        %v4744 = vsel %vm3172, %v4739, 0
        %4746 = vmatprep.subr.bf16.mxu0 0
        %4747 = vmatpush1.bf16.xpose.msra.mxu0 %v4744
        %4748 = vmatprep.subr.bf16.mxu0 0
        %4749 = vmatpush1.bf16.xpose.msra.mxu0 0
        %4750 = vmatprep.subr.bf16.mxu0 0
        %4751 = vmatpush1.bf16.xpose.msra.mxu0 0
        %4752 = vmatprep.subr.bf16.mxu0 0
        %4753 = vmatpush1.bf16.xpose.msra.mxu0 0
        %4754 = vmatprep.subr.bf16.mxu0 0
        %4755 = vmatpush1.bf16.xpose.msra.mxu0 0
        %4756 = vmatprep.subr.bf16.mxu0 0
        %4757 = vmatpush1.bf16.xpose.msra.mxu0 0
        %4758 = vmatprep.subr.bf16.mxu0 0
        %4759 = vmatpush1.bf16.xpose.msra.mxu0 0
        %4760 = vmatprep.subr.bf16.mxu0 0
        %4761 = vmatpush1.bf16.xpose.msra.mxu0 0
        %4762 = vmatprep.subr.bf16.mxu0 0
        %4763 = vmatpush1.bf16.xpose.msra.mxu0 0
        %4764 = vmatprep.subr.bf16.mxu0 0
        %4765 = vmatpush1.bf16.xpose.msra.mxu0 0
        %4766 = vmatprep.subr.bf16.mxu0 0
        %4767 = vmatpush1.bf16.xpose.msra.mxu0 0
        %4768 = vmatprep.subr.bf16.mxu0 0
        %4769 = vmatpush1.bf16.xpose.msra.mxu0 0
        %4770 = vmatprep.subr.bf16.mxu0 0
        %4771 = vmatpush1.bf16.xpose.msra.mxu0 0
        %4772 = vmatprep.subr.bf16.mxu0 0
        %4773 = vmatpush1.bf16.xpose.msra.mxu0 0
        %4774 = vmatprep.subr.bf16.mxu0 0
        %4775 = vmatpush1.bf16.xpose.msra.mxu0 0
        %4776 = vmatprep.subr.bf16.mxu0 0
        %4777 = vmatpush1.bf16.xpose.msra.mxu0 0
        %4778 = vmatprep.mubr.bf16.mxu0 0
        %4779 = vmatmul.mubr.bf16.gmra.mrb[0].mxu0 %v4741
        %v4780 = vpop.f32.mrb[0].mxu0
        %v4781 = vadd.f32 0.0, %v4780
        %v4782 = vpop.f32.mrb[0].mxu0
        %v4783 = vpop.f32.mrb[0].mxu0
        %v4784 = vadd.f32 0.0, %v4783
        %v4785 = vpop.f32.mrb[0].mxu0
        %4786 = vdwg.mxu0
        %4787 = vrot.lane.b32.xlu0 %v3139, 32
        %v4788 = vpop.permute.xlu0 %4787
        %4789 = vrot.lane.b32.xlu0 %v3155, 32
        %v4790 = vpop.permute.xlu0 %4789
        %v4792 = vsel %vm3172, %v4788, 0
        %v4795 = vsel %vm3172, %v4790, 0
        %4797 = vmatprep.subr.bf16.mxu0 0
        %4798 = vmatpush1.bf16.xpose.msra.mxu0 %v4795
        %4799 = vmatprep.subr.bf16.mxu0 0
        %4800 = vmatpush1.bf16.xpose.msra.mxu0 0
        %4801 = vmatprep.subr.bf16.mxu0 0
        %4802 = vmatpush1.bf16.xpose.msra.mxu0 0
        %4803 = vmatprep.subr.bf16.mxu0 0
        %4804 = vmatpush1.bf16.xpose.msra.mxu0 0
        %4805 = vmatprep.subr.bf16.mxu0 0
        %4806 = vmatpush1.bf16.xpose.msra.mxu0 0
        %4807 = vmatprep.subr.bf16.mxu0 0
        %4808 = vmatpush1.bf16.xpose.msra.mxu0 0
        %4809 = vmatprep.subr.bf16.mxu0 0
        %4810 = vmatpush1.bf16.xpose.msra.mxu0 0
        %4811 = vmatprep.subr.bf16.mxu0 0
        %4812 = vmatpush1.bf16.xpose.msra.mxu0 0
        %4813 = vmatprep.subr.bf16.mxu0 0
        %4814 = vmatpush1.bf16.xpose.msra.mxu0 0
        %4815 = vmatprep.subr.bf16.mxu0 0
        %4816 = vmatpush1.bf16.xpose.msra.mxu0 0
        %4817 = vmatprep.subr.bf16.mxu0 0
        %4818 = vmatpush1.bf16.xpose.msra.mxu0 0
        %4819 = vmatprep.subr.bf16.mxu0 0
        %4820 = vmatpush1.bf16.xpose.msra.mxu0 0
        %4821 = vmatprep.subr.bf16.mxu0 0
        %4822 = vmatpush1.bf16.xpose.msra.mxu0 0
        %4823 = vmatprep.subr.bf16.mxu0 0
        %4824 = vmatpush1.bf16.xpose.msra.mxu0 0
        %4825 = vmatprep.subr.bf16.mxu0 0
        %4826 = vmatpush1.bf16.xpose.msra.mxu0 0
        %4827 = vmatprep.subr.bf16.mxu0 0
        %4828 = vmatpush1.bf16.xpose.msra.mxu0 0
        %4829 = vmatprep.mubr.bf16.mxu0 0
        %4830 = vmatmul.mubr.bf16.gmra.mrb[0].mxu0 %v4792
        %v4831 = vpop.f32.mrb[0].mxu0
        %v4832 = vadd.f32 0.0, %v4831
        %v4833 = vpop.f32.mrb[0].mxu0
        %v4834 = vpop.f32.mrb[0].mxu0
        %v4835 = vadd.f32 0.0, %v4834
        %v4836 = vpop.f32.mrb[0].mxu0
        %4837 = vdwg.mxu0
        %v4838 = vmul.f32 %v4679, 0.17677669
        %v4839 = vmul.f32 %v4682, 0.17677669
        %v4840 = vmul.f32 %v4730, 0.17677669
        %v4841 = vmul.f32 %v4733, 0.17677669
        %v4842 = vmul.f32 %v4781, 0.17677669
        %v4843 = vmul.f32 %v4784, 0.17677669
        %v4844 = vmul.f32 %v4832, 0.17677669
        %v4845 = vmul.f32 %v4835, 0.17677669
        %v4846 = vsel %vm3369, %v4838, -inf
        %4847 = vmax.xlane.f32.xlu0 %v4846
        %v4848 = vpop.xlane.xlu0 %4847
        %v4849 = vsel %vm3369, %v4839, -inf
        %4850 = vmax.xlane.f32.xlu0 %v4849
        %v4851 = vpop.xlane.xlu0 %4850
        %v4852 = vsel %vm3369, %v4840, -inf
        %4853 = vmax.xlane.f32.xlu0 %v4852
        %v4854 = vpop.xlane.xlu0 %4853
        %v4855 = vsel %vm3369, %v4841, -inf
        %4856 = vmax.xlane.f32.xlu0 %v4855
        %v4857 = vpop.xlane.xlu0 %4856
        %v4858 = vsel %vm3369, %v4842, -inf
        %4859 = vmax.xlane.f32.xlu0 %v4858
        %v4860 = vpop.xlane.xlu0 %4859
        %v4861 = vsel %vm3369, %v4843, -inf
        %4862 = vmax.xlane.f32.xlu0 %v4861
        %v4863 = vpop.xlane.xlu0 %4862
        %v4864 = vsel %vm3369, %v4844, -inf
        %4865 = vmax.xlane.f32.xlu0 %v4864
        %v4866 = vpop.xlane.xlu0 %4865
        %v4867 = vsel %vm3369, %v4845, -inf
        %4868 = vmax.xlane.f32.xlu0 %v4867
        %v4869 = vpop.xlane.xlu0 %4868
        %v4870 = vsub.f32 %v4838, %v4848
        %v4871 = vsub.f32 %v4839, %v4851
        %v4872 = vsub.f32 %v4840, %v4854
        %v4873 = vsub.f32 %v4841, %v4857
        %v4874 = vsub.f32 %v4842, %v4860
        %v4875 = vsub.f32 %v4843, %v4863
        %v4876 = vsub.f32 %v4844, %v4866
        %v4877 = vsub.f32 %v4845, %v4869
        %v4878 = vmul.f32 %v4870, 1.442695
        %v4879 = vpow.pop %v4878
        %v4880 = vmul.f32 %v4871, 1.442695
        %v4881 = vpow.pop %v4880
        %v4882 = vmul.f32 %v4872, 1.442695
        %v4883 = vpow.pop %v4882
        %v4884 = vmul.f32 %v4873, 1.442695
        %v4885 = vpow.pop %v4884
        %v4886 = vmul.f32 %v4874, 1.442695
        %v4887 = vpow.pop %v4886
        %v4888 = vmul.f32 %v4875, 1.442695
        %v4889 = vpow.pop %v4888
        %v4890 = vmul.f32 %v4876, 1.442695
        %v4891 = vpow.pop %v4890
        %v4892 = vmul.f32 %v4877, 1.442695
        %v4893 = vpow.pop %v4892
        %v4894 = vsel %vm3369, %v4879, 0.0
        %4895 = vadd.xlane.f32.xlu0 %v4894
        %v4896 = vpop.xlane.xlu0 %4895
        %v4897 = vsel %vm3369, %v4881, 0.0
        %4898 = vadd.xlane.f32.xlu0 %v4897
        %v4899 = vpop.xlane.xlu0 %4898
        %v4900 = vsel %vm3369, %v4883, 0.0
        %4901 = vadd.xlane.f32.xlu0 %v4900
        %v4902 = vpop.xlane.xlu0 %4901
        %v4903 = vsel %vm3369, %v4885, 0.0
        %4904 = vadd.xlane.f32.xlu0 %v4903
        %v4905 = vpop.xlane.xlu0 %4904
        %v4906 = vsel %vm3369, %v4887, 0.0
        %4907 = vadd.xlane.f32.xlu0 %v4906
        %v4908 = vpop.xlane.xlu0 %4907
        %v4909 = vsel %vm3369, %v4889, 0.0
        %4910 = vadd.xlane.f32.xlu0 %v4909
        %v4911 = vpop.xlane.xlu0 %4910
        %v4912 = vsel %vm3369, %v4891, 0.0
        %4913 = vadd.xlane.f32.xlu0 %v4912
        %v4914 = vpop.xlane.xlu0 %4913
        %v4915 = vsel %vm3369, %v4893, 0.0
        %4916 = vadd.xlane.f32.xlu0 %v4915
        %v4917 = vpop.xlane.xlu0 %4916
        %v4918 = vrcp.pop %v4896
        %v4919 = vrcp.pop %v4899
        %v4920 = vrcp.pop %v4902
        %v4921 = vrcp.pop %v4905
        %v4922 = vrcp.pop %v4908
        %v4923 = vrcp.pop %v4911
        %v4924 = vrcp.pop %v4914
        %v4925 = vrcp.pop %v4917
        %v4926 = vmul.f32 %v4879, %v4918
        %v4927 = vmul.f32 %v4881, %v4919
        %v4928 = vmul.f32 %v4883, %v4920
        %v4929 = vmul.f32 %v4885, %v4921
        %v4930 = vmul.f32 %v4887, %v4922
        %v4931 = vmul.f32 %v4889, %v4923
        %v4932 = vmul.f32 %v4891, %v4924
        %v4933 = vmul.f32 %v4893, %v4925
        %v4934 = vpack.c.bf16 %v4927, %v4926
        %v4935 = vpack.c.bf16 %v4929, %v4928
        %v4936 = vpack.c.bf16 %v4931, %v4930
        %v4937 = vpack.c.bf16 %v4933, %v4932
        %4938 = vrot.lane.b32.xlu0 %v3168, 32
        %v4939 = vpop.permute.xlu0 %4938
        %v4942 = vsel %vm3369, %v4934, 0
        %4944 = vmatprep.subr.bf16.mxu0 0
        %4945 = vmatpush1.bf16.msra.mxu0 %v4939
        %4946 = vmatprep.subr.bf16.mxu0 0
        %4947 = vmatpush1.bf16.msra.mxu0 0
        %4948 = vmatprep.subr.bf16.mxu0 0
        %4949 = vmatpush1.bf16.msra.mxu0 0
        %4950 = vmatprep.subr.bf16.mxu0 0
        %4951 = vmatpush1.bf16.msra.mxu0 0
        %4952 = vmatprep.subr.bf16.mxu0 0
        %4953 = vmatpush1.bf16.msra.mxu0 0
        %4954 = vmatprep.subr.bf16.mxu0 0
        %4955 = vmatpush1.bf16.msra.mxu0 0
        %4956 = vmatprep.subr.bf16.mxu0 0
        %4957 = vmatpush1.bf16.msra.mxu0 0
        %4958 = vmatprep.subr.bf16.mxu0 0
        %4959 = vmatpush1.bf16.msra.mxu0 0
        %4960 = vmatprep.subr.bf16.mxu0 0
        %4961 = vmatpush1.bf16.msra.mxu0 0
        %4962 = vmatprep.subr.bf16.mxu0 0
        %4963 = vmatpush1.bf16.msra.mxu0 0
        %4964 = vmatprep.subr.bf16.mxu0 0
        %4965 = vmatpush1.bf16.msra.mxu0 0
        %4966 = vmatprep.subr.bf16.mxu0 0
        %4967 = vmatpush1.bf16.msra.mxu0 0
        %4968 = vmatprep.subr.bf16.mxu0 0
        %4969 = vmatpush1.bf16.msra.mxu0 0
        %4970 = vmatprep.subr.bf16.mxu0 0
        %4971 = vmatpush1.bf16.msra.mxu0 0
        %4972 = vmatprep.subr.bf16.mxu0 0
        %4973 = vmatpush1.bf16.msra.mxu0 0
        %4974 = vmatprep.subr.bf16.mxu0 0
        %4975 = vmatpush1.bf16.msra.mxu0 0
        %4976 = vmatprep.mubr.bf16.mxu0 0
        %4977 = vmatmul.mubr.bf16.gmra.mrb[0].mxu0 %v4942
        %v4978 = vpop.f32.mrb[0].mxu0
        %v4979 = vadd.f32 0.0, %v4978
        %v4980 = vpop.f32.mrb[0].mxu0
        %v4981 = vpop.f32.mrb[0].mxu0
        %v4982 = vadd.f32 0.0, %v4981
        %v4983 = vpop.f32.mrb[0].mxu0
        %4984 = vdwg.mxu0
        %4985 = vrot.lane.b32.xlu0 %v3169, 32
        %v4986 = vpop.permute.xlu0 %4985
        %v4989 = vsel %vm3369, %v4935, 0
        %4991 = vmatprep.subr.bf16.mxu0 0
        %4992 = vmatpush1.bf16.msra.mxu0 %v4986
        %4993 = vmatprep.subr.bf16.mxu0 0
        %4994 = vmatpush1.bf16.msra.mxu0 0
        %4995 = vmatprep.subr.bf16.mxu0 0
        %4996 = vmatpush1.bf16.msra.mxu0 0
        %4997 = vmatprep.subr.bf16.mxu0 0
        %4998 = vmatpush1.bf16.msra.mxu0 0
        %4999 = vmatprep.subr.bf16.mxu0 0
        %5000 = vmatpush1.bf16.msra.mxu0 0
        %5001 = vmatprep.subr.bf16.mxu0 0
        %5002 = vmatpush1.bf16.msra.mxu0 0
        %5003 = vmatprep.subr.bf16.mxu0 0
        %5004 = vmatpush1.bf16.msra.mxu0 0
        %5005 = vmatprep.subr.bf16.mxu0 0
        %5006 = vmatpush1.bf16.msra.mxu0 0
        %5007 = vmatprep.subr.bf16.mxu0 0
        %5008 = vmatpush1.bf16.msra.mxu0 0
        %5009 = vmatprep.subr.bf16.mxu0 0
        %5010 = vmatpush1.bf16.msra.mxu0 0
        %5011 = vmatprep.subr.bf16.mxu0 0
        %5012 = vmatpush1.bf16.msra.mxu0 0
        %5013 = vmatprep.subr.bf16.mxu0 0
        %5014 = vmatpush1.bf16.msra.mxu0 0
        %5015 = vmatprep.subr.bf16.mxu0 0
        %5016 = vmatpush1.bf16.msra.mxu0 0
        %5017 = vmatprep.subr.bf16.mxu0 0
        %5018 = vmatpush1.bf16.msra.mxu0 0
        %5019 = vmatprep.subr.bf16.mxu0 0
        %5020 = vmatpush1.bf16.msra.mxu0 0
        %5021 = vmatprep.subr.bf16.mxu0 0
        %5022 = vmatpush1.bf16.msra.mxu0 0
        %5023 = vmatprep.mubr.bf16.mxu0 0
        %5024 = vmatmul.mubr.bf16.gmra.mrb[0].mxu0 %v4989
        %v5025 = vpop.f32.mrb[0].mxu0
        %v5026 = vadd.f32 0.0, %v5025
        %v5027 = vpop.f32.mrb[0].mxu0
        %v5028 = vpop.f32.mrb[0].mxu0
        %v5029 = vadd.f32 0.0, %v5028
        %v5030 = vpop.f32.mrb[0].mxu0
        %5031 = vdwg.mxu0
        %5032 = vrot.lane.b32.xlu0 %v3170, 32
        %v5033 = vpop.permute.xlu0 %5032
        %v5036 = vsel %vm3369, %v4936, 0
        %5038 = vmatprep.subr.bf16.mxu0 0
        %5039 = vmatpush1.bf16.msra.mxu0 %v5033
        %5040 = vmatprep.subr.bf16.mxu0 0
        %5041 = vmatpush1.bf16.msra.mxu0 0
        %5042 = vmatprep.subr.bf16.mxu0 0
        %5043 = vmatpush1.bf16.msra.mxu0 0
        %5044 = vmatprep.subr.bf16.mxu0 0
        %5045 = vmatpush1.bf16.msra.mxu0 0
        %5046 = vmatprep.subr.bf16.mxu0 0
        %5047 = vmatpush1.bf16.msra.mxu0 0
        %5048 = vmatprep.subr.bf16.mxu0 0
        %5049 = vmatpush1.bf16.msra.mxu0 0
        %5050 = vmatprep.subr.bf16.mxu0 0
        %5051 = vmatpush1.bf16.msra.mxu0 0
        %5052 = vmatprep.subr.bf16.mxu0 0
        %5053 = vmatpush1.bf16.msra.mxu0 0
        %5054 = vmatprep.subr.bf16.mxu0 0
        %5055 = vmatpush1.bf16.msra.mxu0 0
        %5056 = vmatprep.subr.bf16.mxu0 0
        %5057 = vmatpush1.bf16.msra.mxu0 0
        %5058 = vmatprep.subr.bf16.mxu0 0
        %5059 = vmatpush1.bf16.msra.mxu0 0
        %5060 = vmatprep.subr.bf16.mxu0 0
        %5061 = vmatpush1.bf16.msra.mxu0 0
        %5062 = vmatprep.subr.bf16.mxu0 0
        %5063 = vmatpush1.bf16.msra.mxu0 0
        %5064 = vmatprep.subr.bf16.mxu0 0
        %5065 = vmatpush1.bf16.msra.mxu0 0
        %5066 = vmatprep.subr.bf16.mxu0 0
        %5067 = vmatpush1.bf16.msra.mxu0 0
        %5068 = vmatprep.subr.bf16.mxu0 0
        %5069 = vmatpush1.bf16.msra.mxu0 0
        %5070 = vmatprep.mubr.bf16.mxu0 0
        %5071 = vmatmul.mubr.bf16.gmra.mrb[0].mxu0 %v5036
        %v5072 = vpop.f32.mrb[0].mxu0
        %v5073 = vadd.f32 0.0, %v5072
        %v5074 = vpop.f32.mrb[0].mxu0
        %v5075 = vpop.f32.mrb[0].mxu0
        %v5076 = vadd.f32 0.0, %v5075
        %v5077 = vpop.f32.mrb[0].mxu0
        %5078 = vdwg.mxu0
        %5079 = vrot.lane.b32.xlu0 %v3171, 32
        %v5080 = vpop.permute.xlu0 %5079
        %v5083 = vsel %vm3369, %v4937, 0
        %5085 = vmatprep.subr.bf16.mxu0 0
        %5086 = vmatpush1.bf16.msra.mxu0 %v5080
        %5087 = vmatprep.subr.bf16.mxu0 0
        %5088 = vmatpush1.bf16.msra.mxu0 0
        %5089 = vmatprep.subr.bf16.mxu0 0
        %5090 = vmatpush1.bf16.msra.mxu0 0
        %5091 = vmatprep.subr.bf16.mxu0 0
        %5092 = vmatpush1.bf16.msra.mxu0 0
        %5093 = vmatprep.subr.bf16.mxu0 0
        %5094 = vmatpush1.bf16.msra.mxu0 0
        %5095 = vmatprep.subr.bf16.mxu0 0
        %5096 = vmatpush1.bf16.msra.mxu0 0
        %5097 = vmatprep.subr.bf16.mxu0 0
        %5098 = vmatpush1.bf16.msra.mxu0 0
        %5099 = vmatprep.subr.bf16.mxu0 0
        %5100 = vmatpush1.bf16.msra.mxu0 0
        %5101 = vmatprep.subr.bf16.mxu0 0
        %5102 = vmatpush1.bf16.msra.mxu0 0
        %5103 = vmatprep.subr.bf16.mxu0 0
        %5104 = vmatpush1.bf16.msra.mxu0 0
        %5105 = vmatprep.subr.bf16.mxu0 0
        %5106 = vmatpush1.bf16.msra.mxu0 0
        %5107 = vmatprep.subr.bf16.mxu0 0
        %5108 = vmatpush1.bf16.msra.mxu0 0
        %5109 = vmatprep.subr.bf16.mxu0 0
        %5110 = vmatpush1.bf16.msra.mxu0 0
        %5111 = vmatprep.subr.bf16.mxu0 0
        %5112 = vmatpush1.bf16.msra.mxu0 0
        %5113 = vmatprep.subr.bf16.mxu0 0
        %5114 = vmatpush1.bf16.msra.mxu0 0
        %5115 = vmatprep.subr.bf16.mxu0 0
        %5116 = vmatpush1.bf16.msra.mxu0 0
        %5117 = vmatprep.mubr.bf16.mxu0 0
        %5118 = vmatmul.mubr.bf16.gmra.mrb[0].mxu0 %v5083
        %v5119 = vpop.f32.mrb[0].mxu0
        %v5120 = vadd.f32 0.0, %v5119
        %v5121 = vpop.f32.mrb[0].mxu0
        %v5122 = vpop.f32.mrb[0].mxu0
        %v5123 = vadd.f32 0.0, %v5122
        %v5124 = vpop.f32.mrb[0].mxu0
        %5125 = vdwg.mxu0
        %5134 = vrot.lane.b32.xlu0 %v3992, 32
        %v5135 = vpop.permute.xlu0 %5134
        %5136 = vrot.lane.b32.xlu0 %v3995, 32
        %v5137 = vpop.permute.xlu0 %5136
        %5138 = vrot.lane.b32.xlu0 %v4040, 32
        %v5139 = vpop.permute.xlu0 %5138
        %5140 = vrot.lane.b32.xlu0 %v4043, 32
        %v5141 = vpop.permute.xlu0 %5140
        %5142 = vrot.lane.b32.xlu0 %v4088, 32
        %v5143 = vpop.permute.xlu0 %5142
        %5144 = vrot.lane.b32.xlu0 %v4091, 32
        %v5145 = vpop.permute.xlu0 %5144
        %5146 = vrot.lane.b32.xlu0 %v4136, 32
        %v5147 = vpop.permute.xlu0 %5146
        %5148 = vrot.lane.b32.xlu0 %v4139, 32
        %v5149 = vpop.permute.xlu0 %5148
        %5166 = vrot.lane.b32.xlu0 %v4487, 64
        %v5167 = vpop.permute.xlu0 %5166
        %5168 = vrot.lane.b32.xlu0 %v4490, 64
        %v5169 = vpop.permute.xlu0 %5168
        %5170 = vrot.lane.b32.xlu0 %v4534, 64
        %v5171 = vpop.permute.xlu0 %5170
        %5172 = vrot.lane.b32.xlu0 %v4537, 64
        %v5173 = vpop.permute.xlu0 %5172
        %5174 = vrot.lane.b32.xlu0 %v4581, 64
        %v5175 = vpop.permute.xlu0 %5174
        %5176 = vrot.lane.b32.xlu0 %v4584, 64
        %v5177 = vpop.permute.xlu0 %5176
        %5178 = vrot.lane.b32.xlu0 %v4628, 64
        %v5179 = vpop.permute.xlu0 %5178
        %5180 = vrot.lane.b32.xlu0 %v4631, 64
        %v5181 = vpop.permute.xlu0 %5180
        %5198 = vrot.lane.b32.xlu0 %v4979, 96
        %v5199 = vpop.permute.xlu0 %5198
        %5200 = vrot.lane.b32.xlu0 %v4982, 96
        %v5201 = vpop.permute.xlu0 %5200
        %5202 = vrot.lane.b32.xlu0 %v5026, 96
        %v5203 = vpop.permute.xlu0 %5202
        %5204 = vrot.lane.b32.xlu0 %v5029, 96
        %v5205 = vpop.permute.xlu0 %5204
        %5206 = vrot.lane.b32.xlu0 %v5073, 96
        %v5207 = vpop.permute.xlu0 %5206
        %5208 = vrot.lane.b32.xlu0 %v5076, 96
        %v5209 = vpop.permute.xlu0 %5208
        %5210 = vrot.lane.b32.xlu0 %v5120, 96
        %v5211 = vpop.permute.xlu0 %5210
        %5212 = vrot.lane.b32.xlu0 %v5123, 96
        %v5213 = vpop.permute.xlu0 %5212
        %v5222 = vsel %vm3172, %v3500, %v5135
        %v5223 = vsel %vm3172, %v3503, %v5137
        %v5224 = vsel %vm3172, %v3544, %v5139
        %v5225 = vsel %vm3172, %v3547, %v5141
        %v5226 = vsel %vm3172, %v3588, %v5143
        %v5227 = vsel %vm3172, %v3591, %v5145
        %v5228 = vsel %vm3172, %v3632, %v5147
        %v5229 = vsel %vm3172, %v3635, %v5149
        %vm5230 = vcmask 523264
        %v5231 = vsel %vm5230, %v5222, %v5167
        %v5232 = vsel %vm5230, %v5223, %v5169
        %v5233 = vsel %vm5230, %v5224, %v5171
        %v5234 = vsel %vm5230, %v5225, %v5173
        %v5235 = vsel %vm5230, %v5226, %v5175
        %v5236 = vsel %vm5230, %v5227, %v5177
        %v5237 = vsel %vm5230, %v5228, %v5179
        %v5238 = vsel %vm5230, %v5229, %v5181
        %vm5239 = vcmask 785408
        %v5240 = vsel %vm5239, %v5231, %v5199
        %v5241 = vsel %vm5239, %v5232, %v5201
        %v5242 = vsel %vm5239, %v5233, %v5203
        %v5243 = vsel %vm5239, %v5234, %v5205
        %v5244 = vsel %vm5239, %v5235, %v5207
        %v5245 = vsel %vm5239, %v5236, %v5209
        %v5246 = vsel %vm5239, %v5237, %v5211
        %v5247 = vsel %vm5239, %v5238, %v5213
        %v5248 = vpack.c.bf16 %v5241, %v5240
        %v5249 = vpack.c.bf16 %v5243, %v5242
        %v5250 = vpack.c.bf16 %v5245, %v5244
        %v5251 = vpack.c.bf16 %v5247, %v5246
        %v5252 = vlaneseq
        %v5253 = vshrl.u32 %v5252, 7
        %v5254 = vsub.s32 3, %v5253
        %v5255 = vrot.slane %v2844, %v5254
        %v5272 = vunpack.c.l.b16 %v2779
        %v5273 = vunpack.c.l.b16 %v2780
        %v5274 = vunpack.c.l.b16 %v2781
        %v5275 = vunpack.c.l.b16 %v2782
        %v5276 = vunpack.c.l.b16 %v2783
        %v5277 = vunpack.c.l.b16 %v2784
        %v5278 = vunpack.c.l.b16 %v2785
        %v5279 = vunpack.c.l.b16 %v2786
        %v5280 = vunpack.c.l.b16 %v2787
        %v5281 = vunpack.c.l.b16 %v2788
        %v5282 = vunpack.c.l.b16 %v2789
        %v5283 = vunpack.c.l.b16 %v2790
        %v5284 = vunpack.c.l.b16 %v2791
        %v5285 = vunpack.c.l.b16 %v2792
        %v5286 = vunpack.c.l.b16 %v2793
        %v5287 = vunpack.c.l.b16 %v2794
        %v5288 = vpack.c.b16 %v5273, %v5272
        %v5289 = vpack.c.b16 %v5275, %v5274
        %v5290 = vpack.c.b16 %v5277, %v5276
        %v5291 = vpack.c.b16 %v5279, %v5278
        %v5292 = vpack.c.b16 %v5281, %v5280
        %v5293 = vpack.c.b16 %v5283, %v5282
        %v5294 = vpack.c.b16 %v5285, %v5284
        %v5295 = vpack.c.b16 %v5287, %v5286
        %5304 = vmatprep.subr.bf16.mxu0 0
        %5305 = vmatpush1.bf16.msra.mxu0 %v5288
        %5306 = vmatprep.subr.bf16.mxu0 0
        %5307 = vmatpush1.bf16.msra.mxu0 %v5289
        %5308 = vmatprep.subr.bf16.mxu0 0
        %5309 = vmatpush1.bf16.msra.mxu0 %v5290
        %5310 = vmatprep.subr.bf16.mxu0 0
        %5311 = vmatpush1.bf16.msra.mxu0 %v5291
        %5312 = vmatprep.subr.bf16.mxu0 0
        %5313 = vmatpush1.bf16.msra.mxu0 %v5292
        %5314 = vmatprep.subr.bf16.mxu0 0
        %5315 = vmatpush1.bf16.msra.mxu0 %v5293
        %5316 = vmatprep.subr.bf16.mxu0 0
        %5317 = vmatpush1.bf16.msra.mxu0 %v5294
        %5318 = vmatprep.subr.bf16.mxu0 0
        %5319 = vmatpush1.bf16.msra.mxu0 %v5295
        %5320 = vmatprep.subr.bf16.mxu0 0
        %5321 = vmatpush1.bf16.msra.mxu0 0
        %5322 = vmatprep.subr.bf16.mxu0 0
        %5323 = vmatpush1.bf16.msra.mxu0 0
        %5324 = vmatprep.subr.bf16.mxu0 0
        %5325 = vmatpush1.bf16.msra.mxu0 0
        %5326 = vmatprep.subr.bf16.mxu0 0
        %5327 = vmatpush1.bf16.msra.mxu0 0
        %5328 = vmatprep.subr.bf16.mxu0 0
        %5329 = vmatpush1.bf16.msra.mxu0 0
        %5330 = vmatprep.subr.bf16.mxu0 0
        %5331 = vmatpush1.bf16.msra.mxu0 0
        %5332 = vmatprep.subr.bf16.mxu0 0
        %5333 = vmatpush1.bf16.msra.mxu0 0
        %5334 = vmatprep.subr.bf16.mxu0 0
        %5335 = vmatpush1.bf16.msra.mxu0 0
        %5336 = vmatprep.mubr.bf16.mxu0 0
        %5337 = vmatmul.mubr.bf16.gmra.mrb[0].mxu0 %v5248
        %v5338 = vpop.f32.mrb[0].mxu0
        %v5339 = vadd.f32 %v5255, %v5338
        %v5340 = vpop.f32.mrb[0].mxu0
        %v5341 = vpop.f32.mrb[0].mxu0
        %v5342 = vadd.f32 %v5255, %v5341
        %v5343 = vpop.f32.mrb[0].mxu0
        %5344 = vmatprep.mubr.bf16.mxu0 0
        %5345 = vmatmul.mubr.bf16.gmra.mrb[0].mxu0 %v5249
        %v5346 = vpop.f32.mrb[0].mxu0
        %v5347 = vadd.f32 %v5255, %v5346
        %v5348 = vpop.f32.mrb[0].mxu0
        %v5349 = vpop.f32.mrb[0].mxu0
        %v5350 = vadd.f32 %v5255, %v5349
        %v5351 = vpop.f32.mrb[0].mxu0
        %5352 = vmatprep.mubr.bf16.mxu0 0
        %5353 = vmatmul.mubr.bf16.gmra.mrb[0].mxu0 %v5250
        %v5354 = vpop.f32.mrb[0].mxu0
        %v5355 = vadd.f32 %v5255, %v5354
        %v5356 = vpop.f32.mrb[0].mxu0
        %v5357 = vpop.f32.mrb[0].mxu0
        %v5358 = vadd.f32 %v5255, %v5357
        %v5359 = vpop.f32.mrb[0].mxu0
        %5360 = vmatprep.mubr.bf16.mxu0 0
        %5361 = vmatmul.mubr.bf16.gmra.mrb[0].mxu0 %v5251
        %v5362 = vpop.f32.mrb[0].mxu0
        %v5363 = vadd.f32 %v5255, %v5362
        %v5364 = vpop.f32.mrb[0].mxu0
        %v5365 = vpop.f32.mrb[0].mxu0
        %v5366 = vadd.f32 %v5255, %v5365
        %v5367 = vpop.f32.mrb[0].mxu0
        %5368 = vdwg.mxu0
        %v5369 = vadd.f32 %v2846, %v5339
        %v5370 = vadd.f32 %v2847, %v5342
        %v5371 = vadd.f32 %v2848, %v5347
        %v5372 = vadd.f32 %v2849, %v5350
        %v5373 = vadd.f32 %v2850, %v5355
        %v5374 = vadd.f32 %v2851, %v5358
        %v5375 = vadd.f32 %v2852, %v5363
        %v5376 = vadd.f32 %v2853, %v5366
        %5377 = vadd.xlane.f32.xlu0 %v5369
        %v5378 = vpop.xlane.xlu0 %5377
        %5379 = vadd.xlane.f32.xlu0 %v5370
        %v5380 = vpop.xlane.xlu0 %5379
        %5381 = vadd.xlane.f32.xlu0 %v5371
        %v5382 = vpop.xlane.xlu0 %5381
        %5383 = vadd.xlane.f32.xlu0 %v5372
        %v5384 = vpop.xlane.xlu0 %5383
        %5385 = vadd.xlane.f32.xlu0 %v5373
        %v5386 = vpop.xlane.xlu0 %5385
        %5387 = vadd.xlane.f32.xlu0 %v5374
        %v5388 = vpop.xlane.xlu0 %5387
        %5389 = vadd.xlane.f32.xlu0 %v5375
        %v5390 = vpop.xlane.xlu0 %5389
        %5391 = vadd.xlane.f32.xlu0 %v5376
        %v5392 = vpop.xlane.xlu0 %5391
        %v5393 = vrcp.pop 128.0
        %v5394 = vmul.f32 %v5378, %v5393
        %v5395 = vmul.f32 %v5380, %v5393
        %v5396 = vmul.f32 %v5382, %v5393
        %v5397 = vmul.f32 %v5384, %v5393
        %v5398 = vmul.f32 %v5386, %v5393
        %v5399 = vmul.f32 %v5388, %v5393
        %v5400 = vmul.f32 %v5390, %v5393
        %v5401 = vmul.f32 %v5392, %v5393
        %v5402 = vsub.f32 %v5369, %v5394
        %v5403 = vsub.f32 %v5370, %v5395
        %v5404 = vsub.f32 %v5371, %v5396
        %v5405 = vsub.f32 %v5372, %v5397
        %v5406 = vsub.f32 %v5373, %v5398
        %v5407 = vsub.f32 %v5374, %v5399
        %v5408 = vsub.f32 %v5375, %v5400
        %v5409 = vsub.f32 %v5376, %v5401
        %v5410 = vmul.f32 %v5402, %v5402
        %v5411 = vmul.f32 %v5403, %v5403
        %v5412 = vmul.f32 %v5404, %v5404
        %v5413 = vmul.f32 %v5405, %v5405
        %v5414 = vmul.f32 %v5406, %v5406
        %v5415 = vmul.f32 %v5407, %v5407
        %v5416 = vmul.f32 %v5408, %v5408
        %v5417 = vmul.f32 %v5409, %v5409
        %5418 = vadd.xlane.f32.xlu0 %v5410
        %v5419 = vpop.xlane.xlu0 %5418
        %5420 = vadd.xlane.f32.xlu0 %v5411
        %v5421 = vpop.xlane.xlu0 %5420
        %5422 = vadd.xlane.f32.xlu0 %v5412
        %v5423 = vpop.xlane.xlu0 %5422
        %5424 = vadd.xlane.f32.xlu0 %v5413
        %v5425 = vpop.xlane.xlu0 %5424
        %5426 = vadd.xlane.f32.xlu0 %v5414
        %v5427 = vpop.xlane.xlu0 %5426
        %5428 = vadd.xlane.f32.xlu0 %v5415
        %v5429 = vpop.xlane.xlu0 %5428
        %5430 = vadd.xlane.f32.xlu0 %v5416
        %v5431 = vpop.xlane.xlu0 %5430
        %5432 = vadd.xlane.f32.xlu0 %v5417
        %v5433 = vpop.xlane.xlu0 %5432
        %v5434 = vmul.f32 %v5419, %v5393
        %v5435 = vmul.f32 %v5421, %v5393
        %v5436 = vmul.f32 %v5423, %v5393
        %v5437 = vmul.f32 %v5425, %v5393
        %v5438 = vmul.f32 %v5427, %v5393
        %v5439 = vmul.f32 %v5429, %v5393
        %v5440 = vmul.f32 %v5431, %v5393
        %v5441 = vmul.f32 %v5433, %v5393
        %v5442 = vadd.f32 %v5434, 1e-05
        %v5443 = vadd.f32 %v5435, 1e-05
        %v5444 = vadd.f32 %v5436, 1e-05
        %v5445 = vadd.f32 %v5437, 1e-05
        %v5446 = vadd.f32 %v5438, 1e-05
        %v5447 = vadd.f32 %v5439, 1e-05
        %v5448 = vadd.f32 %v5440, 1e-05
        %v5449 = vadd.f32 %v5441, 1e-05
        %v5450 = vrsqrt.pop %v5442
        %v5451 = vrsqrt.pop %v5443
        %v5452 = vrsqrt.pop %v5444
        %v5453 = vrsqrt.pop %v5445
        %v5454 = vrsqrt.pop %v5446
        %v5455 = vrsqrt.pop %v5447
        %v5456 = vrsqrt.pop %v5448
        %v5457 = vrsqrt.pop %v5449
        %v5458 = vmul.f32 %v5402, %v5450
        %v5459 = vmul.f32 %v5403, %v5451
        %v5460 = vmul.f32 %v5404, %v5452
        %v5461 = vmul.f32 %v5405, %v5453
        %v5462 = vmul.f32 %v5406, %v5454
        %v5463 = vmul.f32 %v5407, %v5455
        %v5464 = vmul.f32 %v5408, %v5456
        %v5465 = vmul.f32 %v5409, %v5457
        %v5466 = vlaneseq
        %v5467 = vshrl.u32 %v5466, 7
        %v5468 = vsub.s32 4, %v5467
        %v5469 = vrot.slane %v2844, %v5468
        %v5470 = vmul.f32 %v5458, %v5469
        %v5471 = vmul.f32 %v5459, %v5469
        %v5472 = vmul.f32 %v5460, %v5469
        %v5473 = vmul.f32 %v5461, %v5469
        %v5474 = vmul.f32 %v5462, %v5469
        %v5475 = vmul.f32 %v5463, %v5469
        %v5476 = vmul.f32 %v5464, %v5469
        %v5477 = vmul.f32 %v5465, %v5469
        %v5478 = vlaneseq
        %v5479 = vshrl.u32 %v5478, 7
        %v5480 = vsub.s32 5, %v5479
        %v5481 = vrot.slane %v2844, %v5480
        %v5482 = vadd.f32 %v5470, %v5481
        %v5483 = vadd.f32 %v5471, %v5481
        %v5484 = vadd.f32 %v5472, %v5481
        %v5485 = vadd.f32 %v5473, %v5481
        %v5486 = vadd.f32 %v5474, %v5481
        %v5487 = vadd.f32 %v5475, %v5481
        %v5488 = vadd.f32 %v5476, %v5481
        %v5489 = vadd.f32 %v5477, %v5481
        %v5490 = vpack.c.bf16 %v5483, %v5482
        %v5491 = vpack.c.bf16 %v5485, %v5484
        %v5492 = vpack.c.bf16 %v5487, %v5486
        %v5493 = vpack.c.bf16 %v5489, %v5488
        %v5495 = vlaneseq
        %v5496 = vshrl.u32 %v5495, 7
        %v5497 = vsub.s32 0, %v5496
        %v5498 = vrot.slane %v2843, %v5497
        %v5499 = vlaneseq
        %v5500 = vshrl.u32 %v5499, 7
        %v5501 = vsub.s32 1, %v5500
        %v5502 = vrot.slane %v2843, %v5501
        %v5521 = vunpack.c.l.b16 %v2795
        %v5522 = vunpack.c.h.b16 %v2795
        %v5523 = vunpack.c.l.b16 %v2796
        %v5524 = vunpack.c.h.b16 %v2796
        %v5525 = vunpack.c.l.b16 %v2797
        %v5526 = vunpack.c.h.b16 %v2797
        %v5527 = vunpack.c.l.b16 %v2798
        %v5528 = vunpack.c.h.b16 %v2798
        %v5529 = vunpack.c.l.b16 %v2799
        %v5530 = vunpack.c.h.b16 %v2799
        %v5531 = vunpack.c.l.b16 %v2800
        %v5532 = vunpack.c.h.b16 %v2800
        %v5533 = vunpack.c.l.b16 %v2801
        %v5534 = vunpack.c.h.b16 %v2801
        %v5535 = vunpack.c.l.b16 %v2802
        %v5536 = vunpack.c.h.b16 %v2802
        %v5537 = vunpack.c.l.b16 %v2803
        %v5538 = vunpack.c.h.b16 %v2803
        %v5539 = vunpack.c.l.b16 %v2804
        %v5540 = vunpack.c.h.b16 %v2804
        %v5541 = vunpack.c.l.b16 %v2805
        %v5542 = vunpack.c.h.b16 %v2805
        %v5543 = vunpack.c.l.b16 %v2806
        %v5544 = vunpack.c.h.b16 %v2806
        %v5545 = vunpack.c.l.b16 %v2807
        %v5546 = vunpack.c.h.b16 %v2807
        %v5547 = vunpack.c.l.b16 %v2808
        %v5548 = vunpack.c.h.b16 %v2808
        %v5549 = vunpack.c.l.b16 %v2809
        %v5550 = vunpack.c.h.b16 %v2809
        %v5551 = vunpack.c.l.b16 %v2810
        %v5552 = vunpack.c.h.b16 %v2810
        %v5553 = vpack.c.b16 %v5523, %v5521
        %v5554 = vpack.c.b16 %v5524, %v5522
        %v5555 = vpack.c.b16 %v5527, %v5525
        %v5556 = vpack.c.b16 %v5528, %v5526
        %v5557 = vpack.c.b16 %v5531, %v5529
        %v5558 = vpack.c.b16 %v5532, %v5530
        %v5559 = vpack.c.b16 %v5535, %v5533
        %v5560 = vpack.c.b16 %v5536, %v5534
        %v5561 = vpack.c.b16 %v5539, %v5537
        %v5562 = vpack.c.b16 %v5540, %v5538
        %v5563 = vpack.c.b16 %v5543, %v5541
        %v5564 = vpack.c.b16 %v5544, %v5542
        %v5565 = vpack.c.b16 %v5547, %v5545
        %v5566 = vpack.c.b16 %v5548, %v5546
        %v5567 = vpack.c.b16 %v5551, %v5549
        %v5568 = vpack.c.b16 %v5552, %v5550
        %5585 = vmatprep.subr.bf16.mxu0 %v5554
        %5586 = vmatpush1.bf16.msra.mxu0 %v5553
        %5587 = vmatprep.subr.bf16.mxu0 %v5556
        %5588 = vmatpush1.bf16.msra.mxu0 %v5555
        %5589 = vmatprep.subr.bf16.mxu0 %v5558
        %5590 = vmatpush1.bf16.msra.mxu0 %v5557
        %5591 = vmatprep.subr.bf16.mxu0 %v5560
        %5592 = vmatpush1.bf16.msra.mxu0 %v5559
        %5593 = vmatprep.subr.bf16.mxu0 %v5562
        %5594 = vmatpush1.bf16.msra.mxu0 %v5561
        %5595 = vmatprep.subr.bf16.mxu0 %v5564
        %5596 = vmatpush1.bf16.msra.mxu0 %v5563
        %5597 = vmatprep.subr.bf16.mxu0 %v5566
        %5598 = vmatpush1.bf16.msra.mxu0 %v5565
        %5599 = vmatprep.subr.bf16.mxu0 %v5568
        %5600 = vmatpush1.bf16.msra.mxu0 %v5567
        %5601 = vmatprep.subr.bf16.mxu0 0
        %5602 = vmatpush1.bf16.msra.mxu0 0
        %5603 = vmatprep.subr.bf16.mxu0 0
        %5604 = vmatpush1.bf16.msra.mxu0 0
        %5605 = vmatprep.subr.bf16.mxu0 0
        %5606 = vmatpush1.bf16.msra.mxu0 0
        %5607 = vmatprep.subr.bf16.mxu0 0
        %5608 = vmatpush1.bf16.msra.mxu0 0
        %5609 = vmatprep.subr.bf16.mxu0 0
        %5610 = vmatpush1.bf16.msra.mxu0 0
        %5611 = vmatprep.subr.bf16.mxu0 0
        %5612 = vmatpush1.bf16.msra.mxu0 0
        %5613 = vmatprep.subr.bf16.mxu0 0
        %5614 = vmatpush1.bf16.msra.mxu0 0
        %5615 = vmatprep.subr.bf16.mxu0 0
        %5616 = vmatpush1.bf16.msra.mxu0 0
        %5617 = vmatprep.mubr.bf16.mxu0 0
        %5618 = vmatmul.mubr.bf16.gmra.mrb[0].mxu0 %v5490
        %v5619 = vpop.f32.mrb[0].mxu0
        %v5620 = vadd.f32 %v5498, %v5619
        %v5621 = vpop.f32.mrb[0].mxu0
        %v5622 = vadd.f32 %v5502, %v5621
        %v5623 = vpop.f32.mrb[0].mxu0
        %v5624 = vadd.f32 %v5498, %v5623
        %v5625 = vpop.f32.mrb[0].mxu0
        %v5626 = vadd.f32 %v5502, %v5625
        %5627 = vmatprep.mubr.bf16.mxu0 0
        %5628 = vmatmul.mubr.bf16.gmra.mrb[0].mxu0 %v5491
        %v5629 = vpop.f32.mrb[0].mxu0
        %v5630 = vadd.f32 %v5498, %v5629
        %v5631 = vpop.f32.mrb[0].mxu0
        %v5632 = vadd.f32 %v5502, %v5631
        %v5633 = vpop.f32.mrb[0].mxu0
        %v5634 = vadd.f32 %v5498, %v5633
        %v5635 = vpop.f32.mrb[0].mxu0
        %v5636 = vadd.f32 %v5502, %v5635
        %5637 = vmatprep.mubr.bf16.mxu0 0
        %5638 = vmatmul.mubr.bf16.gmra.mrb[0].mxu0 %v5492
        %v5639 = vpop.f32.mrb[0].mxu0
        %v5640 = vadd.f32 %v5498, %v5639
        %v5641 = vpop.f32.mrb[0].mxu0
        %v5642 = vadd.f32 %v5502, %v5641
        %v5643 = vpop.f32.mrb[0].mxu0
        %v5644 = vadd.f32 %v5498, %v5643
        %v5645 = vpop.f32.mrb[0].mxu0
        %v5646 = vadd.f32 %v5502, %v5645
        %5647 = vmatprep.mubr.bf16.mxu0 0
        %5648 = vmatmul.mubr.bf16.gmra.mrb[0].mxu0 %v5493
        %v5649 = vpop.f32.mrb[0].mxu0
        %v5650 = vadd.f32 %v5498, %v5649
        %v5651 = vpop.f32.mrb[0].mxu0
        %v5652 = vadd.f32 %v5502, %v5651
        %v5653 = vpop.f32.mrb[0].mxu0
        %v5654 = vadd.f32 %v5498, %v5653
        %v5655 = vpop.f32.mrb[0].mxu0
        %v5656 = vadd.f32 %v5502, %v5655
        %5657 = vdwg.mxu0
        %v5658 = vmax.f32 %v5620, 0.0
        %v5659 = vmax.f32 %v5622, 0.0
        %v5660 = vmax.f32 %v5624, 0.0
        %v5661 = vmax.f32 %v5626, 0.0
        %v5662 = vmax.f32 %v5630, 0.0
        %v5663 = vmax.f32 %v5632, 0.0
        %v5664 = vmax.f32 %v5634, 0.0
        %v5665 = vmax.f32 %v5636, 0.0
        %v5666 = vmax.f32 %v5640, 0.0
        %v5667 = vmax.f32 %v5642, 0.0
        %v5668 = vmax.f32 %v5644, 0.0
        %v5669 = vmax.f32 %v5646, 0.0
        %v5670 = vmax.f32 %v5650, 0.0
        %v5671 = vmax.f32 %v5652, 0.0
        %v5672 = vmax.f32 %v5654, 0.0
        %v5673 = vmax.f32 %v5656, 0.0
        %v5674 = vpack.c.bf16 %v5660, %v5658
        %v5675 = vpack.c.bf16 %v5661, %v5659
        %v5676 = vpack.c.bf16 %v5664, %v5662
        %v5677 = vpack.c.bf16 %v5665, %v5663
        %v5678 = vpack.c.bf16 %v5668, %v5666
        %v5679 = vpack.c.bf16 %v5669, %v5667
        %v5680 = vpack.c.bf16 %v5672, %v5670
        %v5681 = vpack.c.bf16 %v5673, %v5671
        %v5682 = vlaneseq
        %v5683 = vshrl.u32 %v5682, 7
        %v5684 = vsub.s32 6, %v5683
        %v5685 = vrot.slane %v2844, %v5684
        %v5718 = vunpack.c.l.b16 %v2811
        %v5719 = vunpack.c.l.b16 %v2812
        %v5720 = vunpack.c.l.b16 %v2813
        %v5721 = vunpack.c.l.b16 %v2814
        %v5722 = vunpack.c.l.b16 %v2815
        %v5723 = vunpack.c.l.b16 %v2816
        %v5724 = vunpack.c.l.b16 %v2817
        %v5725 = vunpack.c.l.b16 %v2818
        %v5726 = vunpack.c.l.b16 %v2819
        %v5727 = vunpack.c.l.b16 %v2820
        %v5728 = vunpack.c.l.b16 %v2821
        %v5729 = vunpack.c.l.b16 %v2822
        %v5730 = vunpack.c.l.b16 %v2823
        %v5731 = vunpack.c.l.b16 %v2824
        %v5732 = vunpack.c.l.b16 %v2825
        %v5733 = vunpack.c.l.b16 %v2826
        %v5734 = vunpack.c.l.b16 %v2827
        %v5735 = vunpack.c.l.b16 %v2828
        %v5736 = vunpack.c.l.b16 %v2829
        %v5737 = vunpack.c.l.b16 %v2830
        %v5738 = vunpack.c.l.b16 %v2831
        %v5739 = vunpack.c.l.b16 %v2832
        %v5740 = vunpack.c.l.b16 %v2833
        %v5741 = vunpack.c.l.b16 %v2834
        %v5742 = vunpack.c.l.b16 %v2835
        %v5743 = vunpack.c.l.b16 %v2836
        %v5744 = vunpack.c.l.b16 %v2837
        %v5745 = vunpack.c.l.b16 %v2838
        %v5746 = vunpack.c.l.b16 %v2839
        %v5747 = vunpack.c.l.b16 %v2840
        %v5748 = vunpack.c.l.b16 %v2841
        %v5749 = vunpack.c.l.b16 %v2842
        %v5750 = vpack.c.b16 %v5719, %v5718
        %v5751 = vpack.c.b16 %v5721, %v5720
        %v5752 = vpack.c.b16 %v5723, %v5722
        %v5753 = vpack.c.b16 %v5725, %v5724
        %v5754 = vpack.c.b16 %v5727, %v5726
        %v5755 = vpack.c.b16 %v5729, %v5728
        %v5756 = vpack.c.b16 %v5731, %v5730
        %v5757 = vpack.c.b16 %v5733, %v5732
        %v5758 = vpack.c.b16 %v5735, %v5734
        %v5759 = vpack.c.b16 %v5737, %v5736
        %v5760 = vpack.c.b16 %v5739, %v5738
        %v5761 = vpack.c.b16 %v5741, %v5740
        %v5762 = vpack.c.b16 %v5743, %v5742
        %v5763 = vpack.c.b16 %v5745, %v5744
        %v5764 = vpack.c.b16 %v5747, %v5746
        %v5765 = vpack.c.b16 %v5749, %v5748
        %5782 = vmatprep.subr.bf16.mxu0 0
        %5783 = vmatpush1.bf16.msra.mxu0 %v5750
        %5784 = vmatprep.subr.bf16.mxu0 0
        %5785 = vmatpush1.bf16.msra.mxu0 %v5751
        %5786 = vmatprep.subr.bf16.mxu0 0
        %5787 = vmatpush1.bf16.msra.mxu0 %v5752
        %5788 = vmatprep.subr.bf16.mxu0 0
        %5789 = vmatpush1.bf16.msra.mxu0 %v5753
        %5790 = vmatprep.subr.bf16.mxu0 0
        %5791 = vmatpush1.bf16.msra.mxu0 %v5754
        %5792 = vmatprep.subr.bf16.mxu0 0
        %5793 = vmatpush1.bf16.msra.mxu0 %v5755
        %5794 = vmatprep.subr.bf16.mxu0 0
        %5795 = vmatpush1.bf16.msra.mxu0 %v5756
        %5796 = vmatprep.subr.bf16.mxu0 0
        %5797 = vmatpush1.bf16.msra.mxu0 %v5757
        %5798 = vmatprep.subr.bf16.mxu0 0
        %5799 = vmatpush1.bf16.msra.mxu0 %v5758
        %5800 = vmatprep.subr.bf16.mxu0 0
        %5801 = vmatpush1.bf16.msra.mxu0 %v5759
        %5802 = vmatprep.subr.bf16.mxu0 0
        %5803 = vmatpush1.bf16.msra.mxu0 %v5760
        %5804 = vmatprep.subr.bf16.mxu0 0
        %5805 = vmatpush1.bf16.msra.mxu0 %v5761
        %5806 = vmatprep.subr.bf16.mxu0 0
        %5807 = vmatpush1.bf16.msra.mxu0 %v5762
        %5808 = vmatprep.subr.bf16.mxu0 0
        %5809 = vmatpush1.bf16.msra.mxu0 %v5763
        %5810 = vmatprep.subr.bf16.mxu0 0
        %5811 = vmatpush1.bf16.msra.mxu0 %v5764
        %5812 = vmatprep.subr.bf16.mxu0 0
        %5813 = vmatpush1.bf16.msra.mxu0 %v5765
        %5814 = vmatprep.mubr.bf16.mxu0 %v5675
        %5815 = vmatmul.mubr.bf16.gmra.mrb[0].mxu0 %v5674
        %v5816 = vpop.f32.mrb[0].mxu0
        %v5817 = vadd.f32 %v5685, %v5816
        %v5818 = vpop.f32.mrb[0].mxu0
        %v5819 = vpop.f32.mrb[0].mxu0
        %v5820 = vadd.f32 %v5685, %v5819
        %v5821 = vpop.f32.mrb[0].mxu0
        %5822 = vmatprep.mubr.bf16.mxu0 %v5677
        %5823 = vmatmul.mubr.bf16.gmra.mrb[0].mxu0 %v5676
        %v5824 = vpop.f32.mrb[0].mxu0
        %v5825 = vadd.f32 %v5685, %v5824
        %v5826 = vpop.f32.mrb[0].mxu0
        %v5827 = vpop.f32.mrb[0].mxu0
        %v5828 = vadd.f32 %v5685, %v5827
        %v5829 = vpop.f32.mrb[0].mxu0
        %5830 = vmatprep.mubr.bf16.mxu0 %v5679
        %5831 = vmatmul.mubr.bf16.gmra.mrb[0].mxu0 %v5678
        %v5832 = vpop.f32.mrb[0].mxu0
        %v5833 = vadd.f32 %v5685, %v5832
        %v5834 = vpop.f32.mrb[0].mxu0
        %v5835 = vpop.f32.mrb[0].mxu0
        %v5836 = vadd.f32 %v5685, %v5835
        %v5837 = vpop.f32.mrb[0].mxu0
        %5838 = vmatprep.mubr.bf16.mxu0 %v5681
        %5839 = vmatmul.mubr.bf16.gmra.mrb[0].mxu0 %v5680
        %v5840 = vpop.f32.mrb[0].mxu0
        %v5841 = vadd.f32 %v5685, %v5840
        %v5842 = vpop.f32.mrb[0].mxu0
        %v5843 = vpop.f32.mrb[0].mxu0
        %v5844 = vadd.f32 %v5685, %v5843
        %v5845 = vpop.f32.mrb[0].mxu0
        %5846 = vdwg.mxu0
        %v5847 = vadd.f32 %v5482, %v5817
        %v5848 = vadd.f32 %v5483, %v5820
        %v5849 = vadd.f32 %v5484, %v5825
        %v5850 = vadd.f32 %v5485, %v5828
        %v5851 = vadd.f32 %v5486, %v5833
        %v5852 = vadd.f32 %v5487, %v5836
        %v5853 = vadd.f32 %v5488, %v5841
        %v5854 = vadd.f32 %v5489, %v5844
        %5855 = vadd.xlane.f32.xlu0 %v5847
        %v5856 = vpop.xlane.xlu0 %5855
        %5857 = vadd.xlane.f32.xlu0 %v5848
        %v5858 = vpop.xlane.xlu0 %5857
        %5859 = vadd.xlane.f32.xlu0 %v5849
        %v5860 = vpop.xlane.xlu0 %5859
        %5861 = vadd.xlane.f32.xlu0 %v5850
        %v5862 = vpop.xlane.xlu0 %5861
        %5863 = vadd.xlane.f32.xlu0 %v5851
        %v5864 = vpop.xlane.xlu0 %5863
        %5865 = vadd.xlane.f32.xlu0 %v5852
        %v5866 = vpop.xlane.xlu0 %5865
        %5867 = vadd.xlane.f32.xlu0 %v5853
        %v5868 = vpop.xlane.xlu0 %5867
        %5869 = vadd.xlane.f32.xlu0 %v5854
        %v5870 = vpop.xlane.xlu0 %5869
        %v5871 = vmul.f32 %v5856, %v5393
        %v5872 = vmul.f32 %v5858, %v5393
        %v5873 = vmul.f32 %v5860, %v5393
        %v5874 = vmul.f32 %v5862, %v5393
        %v5875 = vmul.f32 %v5864, %v5393
        %v5876 = vmul.f32 %v5866, %v5393
        %v5877 = vmul.f32 %v5868, %v5393
        %v5878 = vmul.f32 %v5870, %v5393
        %v5879 = vsub.f32 %v5847, %v5871
        %v5880 = vsub.f32 %v5848, %v5872
        %v5881 = vsub.f32 %v5849, %v5873
        %v5882 = vsub.f32 %v5850, %v5874
        %v5883 = vsub.f32 %v5851, %v5875
        %v5884 = vsub.f32 %v5852, %v5876
        %v5885 = vsub.f32 %v5853, %v5877
        %v5886 = vsub.f32 %v5854, %v5878
        %v5887 = vmul.f32 %v5879, %v5879
        %v5888 = vmul.f32 %v5880, %v5880
        %v5889 = vmul.f32 %v5881, %v5881
        %v5890 = vmul.f32 %v5882, %v5882
        %v5891 = vmul.f32 %v5883, %v5883
        %v5892 = vmul.f32 %v5884, %v5884
        %v5893 = vmul.f32 %v5885, %v5885
        %v5894 = vmul.f32 %v5886, %v5886
        %5895 = vadd.xlane.f32.xlu0 %v5887
        %v5896 = vpop.xlane.xlu0 %5895
        %5897 = vadd.xlane.f32.xlu0 %v5888
        %v5898 = vpop.xlane.xlu0 %5897
        %5899 = vadd.xlane.f32.xlu0 %v5889
        %v5900 = vpop.xlane.xlu0 %5899
        %5901 = vadd.xlane.f32.xlu0 %v5890
        %v5902 = vpop.xlane.xlu0 %5901
        %5903 = vadd.xlane.f32.xlu0 %v5891
        %v5904 = vpop.xlane.xlu0 %5903
        %5905 = vadd.xlane.f32.xlu0 %v5892
        %v5906 = vpop.xlane.xlu0 %5905
        %5907 = vadd.xlane.f32.xlu0 %v5893
        %v5908 = vpop.xlane.xlu0 %5907
        %5909 = vadd.xlane.f32.xlu0 %v5894
        %v5910 = vpop.xlane.xlu0 %5909
        %v5911 = vmul.f32 %v5896, %v5393
        %v5912 = vmul.f32 %v5898, %v5393
        %v5913 = vmul.f32 %v5900, %v5393
        %v5914 = vmul.f32 %v5902, %v5393
        %v5915 = vmul.f32 %v5904, %v5393
        %v5916 = vmul.f32 %v5906, %v5393
        %v5917 = vmul.f32 %v5908, %v5393
        %v5918 = vmul.f32 %v5910, %v5393
        %v5919 = vadd.f32 %v5911, 1e-05
        %v5920 = vadd.f32 %v5912, 1e-05
        %v5921 = vadd.f32 %v5913, 1e-05
        %v5922 = vadd.f32 %v5914, 1e-05
        %v5923 = vadd.f32 %v5915, 1e-05
        %v5924 = vadd.f32 %v5916, 1e-05
        %v5925 = vadd.f32 %v5917, 1e-05
        %v5926 = vadd.f32 %v5918, 1e-05
        %v5927 = vrsqrt.pop %v5919
        %v5928 = vrsqrt.pop %v5920
        %v5929 = vrsqrt.pop %v5921
        %v5930 = vrsqrt.pop %v5922
        %v5931 = vrsqrt.pop %v5923
        %v5932 = vrsqrt.pop %v5924
        %v5933 = vrsqrt.pop %v5925
        %v5934 = vrsqrt.pop %v5926
        %v5935 = vmul.f32 %v5879, %v5927
        %v5936 = vmul.f32 %v5880, %v5928
        %v5937 = vmul.f32 %v5881, %v5929
        %v5938 = vmul.f32 %v5882, %v5930
        %v5939 = vmul.f32 %v5883, %v5931
        %v5940 = vmul.f32 %v5884, %v5932
        %v5941 = vmul.f32 %v5885, %v5933
        %v5942 = vmul.f32 %v5886, %v5934
        %v5943 = vlaneseq
        %v5944 = vshrl.u32 %v5943, 7
        %v5945 = vsub.s32 7, %v5944
        %v5946 = vrot.slane %v2844, %v5945
        %v5947 = vmul.f32 %v5935, %v5946
        %v5948 = vmul.f32 %v5936, %v5946
        %v5949 = vmul.f32 %v5937, %v5946
        %v5950 = vmul.f32 %v5938, %v5946
        %v5951 = vmul.f32 %v5939, %v5946
        %v5952 = vmul.f32 %v5940, %v5946
        %v5953 = vmul.f32 %v5941, %v5946
        %v5954 = vmul.f32 %v5942, %v5946
        %v5955 = vlaneseq
        %v5956 = vshrl.u32 %v5955, 7
        %v5957 = vsub.s32 0, %v5956
        %v5958 = vrot.slane %v2845, %v5957
        %v5959 = vadd.f32 %v5947, %v5958
        %v5960 = vadd.f32 %v5948, %v5958
        %v5961 = vadd.f32 %v5949, %v5958
        %v5962 = vadd.f32 %v5950, %v5958
        %v5963 = vadd.f32 %v5951, %v5958
        %v5964 = vadd.f32 %v5952, %v5958
        %v5965 = vadd.f32 %v5953, %v5958
        %v5966 = vadd.f32 %v5954, %v5958
        %5967 = vst [vmem:[#allocation2] sm:$0xff] %v5959
        %5968 = vst [vmem:[#allocation2 + $0x8] sm:$0xff] %v5960
        %5969 = vst [vmem:[#allocation2 + $0x10] sm:$0xff] %v5961
        %5970 = vst [vmem:[#allocation2 + $0x18] sm:$0xff] %v5962
        %5971 = vst [vmem:[#allocation2 + $0x20] sm:$0xff] %v5963
        %5972 = vst [vmem:[#allocation2 + $0x28] sm:$0xff] %v5964
        %5973 = vst [vmem:[#allocation2 + $0x30] sm:$0xff] %v5965
        %5974 = vst [vmem:[#allocation2 + $0x38] sm:$0xff] %v5966
        %p5975 = scmp.eq.s32.totalorder %s37, 1
        // Predicated region
        $region85: #{tpu_custom_call.1} parent=63 // pred_check
          %p5976 = pneg %p5975
        $region86: #{tpu_custom_call.1} parent=63 // pred_check_branch
          %5978 = sbr.rel (%p5976) target = $region88
        $region87: #{tpu_custom_call.1} parent=63 // pred_region
          %5979 = vst [vmem:[%s569] sm:$0xff] %v5959
          %5980 = vst [vmem:[%s569 + $0x8] sm:$0xff] %v5960
          %5981 = vst [vmem:[%s569 + $0x10] sm:$0xff] %v5961
          %5982 = vst [vmem:[%s569 + $0x18] sm:$0xff] %v5962
          %5983 = vst [vmem:[%s569 + $0x20] sm:$0xff] %v5963
          %5984 = vst [vmem:[%s569 + $0x28] sm:$0xff] %v5964
          %5985 = vst [vmem:[%s569 + $0x30] sm:$0xff] %v5965
          %5986 = vst [vmem:[%s569 + $0x38] sm:$0xff] %v5966
        $region88: #{tpu_custom_call.1} parent=63 // pred_fallthru
          _
        %s5987 = sand.u32 %s318, 1
        %s5988 = scalar_lea.sflag [#allocation5], %s5987
        %s5989 = sand.u32 %s318, 1
        %s5990 = smul.addr %s5989, 64
        %s5991 = scalar_lea.vmem [#allocation11], %s5990
        // Predicated region
        $region89: #{tpu_custom_call.1} parent=63 // pred_check
          %p5992 = pneg %p328
        $region90: #{tpu_custom_call.1} parent=63 // pred_check_branch
          %5994 = sbr.rel (%p5992) target = $region92
        $region91: #{tpu_custom_call.1} parent=63 // pred_region
          %s5995 = smul.u32 8, %s36
          %s5997 = ssub.s32 1024, 1024
          %5998 = vsyncadd %s5988, %s5997
          %s5999 = smul.addr %s5995, 128
          %s6000 = scalar_lea.hbm %s11, %s5999
          %s6001 = sshll.u32 %s5991, 4
          %s6002 = int_to_ptr.vmem [resolvable:$true] %s6001
          %6007 = dma.vmem_to_hbm [thread:$0]  %s6002, 1024, %s6000, %s5988, 128, 128, 8
        $region92: #{tpu_custom_call.1} parent=63 // pred_fallthru
          _
      $region64: #{tpu_custom_call.1} parent=5 // pred_fallthru
        _
      %p6008 = scmp.le.s32.totalorder 2, %s27
      // Predicated region
      $region93: #{tpu_custom_call.1} parent=5 // pred_check
        %p6009 = pneg %p6008
      $region94: #{tpu_custom_call.1} parent=5 // pred_check_branch
        %6011 = sbr.rel (%p6009) target = $region96
      $region95: #{tpu_custom_call.1} parent=5 // pred_region
        %s6012 = ssub.s32 %s27, 2
        // Predicated region
        $region97: #{tpu_custom_call.1} parent=95 // pred_check
          %p6013 = pneg %p334
        $region98: #{tpu_custom_call.1} parent=95 // pred_check_branch
          %6015 = sbr.rel (%p6013) target = $region100
        $region99: #{tpu_custom_call.1} parent=95 // pred_region
          %s6016 = sand.u32 %s319, 1
          %s6017 = scalar_lea.sflag [#allocation5], %s6016
          %s6018 = sand.u32 %s319, 1
          %s6019 = smul.addr %s6018, 64
          %s6020 = scalar_lea.vmem [#allocation11], %s6019
          %6021 = dma.done %s6017, 1024
        $region100: #{tpu_custom_call.1} parent=95 // pred_fallthru
          _
      $region96: #{tpu_custom_call.1} parent=5 // pred_fallthru
        _
    $region6: #{tpu_custom_call.1} parent=1 // loop_footer
      %s31 = sadd.s32 1, %s27
    $region7: #{tpu_custom_call.1} parent=1 // loop_footer_branch
      %26 = sbr.rel target = $region3
    $region8: #{tpu_custom_call.1} parent=1 // loop_exit
      _
    %6022 = vsyncpa [#allocation4], 1
    %s6023 = scalar_lea.sflag [#allocation4], 1
    %6024 = vsyncpa %s6023, 1
    %6025 = vsyncpa [#allocation7], 1
    %s6026 = scalar_lea.sflag [#allocation7], 1
    %6027 = vsyncpa %s6026, 1
    %6028 = vsyncpa [#allocation10], 1
    %s6029 = scalar_lea.sflag [#allocation10], 1
    %6030 = vsyncpa %s6029, 1
    %6031 = vsyncpa [#allocation5], 1
    %s6032 = scalar_lea.sflag [#allocation5], 1
    %6033 = vsyncpa %s6032, 1

</llo_original>
